<compile_context>
chip_gen: v7x
topology: tpu7x:2x2x1
jax: 0.10.0
libtpu: 0.0.40
codegen_flags: <defaults>
</compile_context>

<pallas_src>
import jax
import jax.numpy as jnp
from jax import lax
from jax.experimental import pallas as pl
from jax.experimental.pallas import tpu as pltpu

_EPS = 1e-5
_VMEM_LIMIT = 32 * 1024 * 1024   # explicit scoped-VMEM budget, safe on v5e/v6e/v7x


def _round_up(x, m):
    return ((x + m - 1) // m) * m


# ---------------------------------------------------------------------------
# Conv kernel: 3x3 partial conv as 9 shifted-tap MXU matmuls + fused BN stats.
# Optionally fuses the previous layer's BN affine + ReLU into the input path.
# ---------------------------------------------------------------------------
def _make_conv_kernel(shifts, fused):
    def conv_body(xb, w_ref, r_ref, y_ref, s_ref, q_ref):
        # xb:    (C_in, L) bf16 activation tile in padded-grid flat layout
        # w_ref: (9, C_out, C_in) bf16 conv weights (resident)
        # r_ref: (1, L) f32 partial-conv ratio, 0 at non-valid positions
        l = xb.shape[-1]
        acc = None
        for t, s in enumerate(shifts):
            if s == 0:
                xs = xb
            else:
                k = s % l                                   # xs[:, p] = xb[:, (p+s) % l]
                xs = jnp.concatenate([xb[:, k:], xb[:, :k]], axis=1)
            d = jnp.dot(w_ref[t], xs, preferred_element_type=jnp.float32)  # MXU, f32 acc
            acc = d if acc is None else acc + d
        out = acc * r_ref[...]                              # partial-conv renorm (+0 mask)
        y_ref[0] = out.astype(y_ref.dtype)
        s_ref[0] = jnp.sum(out, axis=1, keepdims=True)      # BN partial sums (f32)
        q_ref[0] = jnp.sum(out * out, axis=1, keepdims=True)

    if fused:
        def kernel(x_ref, w_ref, r_ref, v_ref, sc_ref, sh_ref, y_ref, s_ref, q_ref):
            # fused BN1 affine + ReLU + re-zero padded-grid cells, then conv
            a = jnp.maximum(x_ref[0] * sc_ref[...] + sh_ref[...], 0.0) * v_ref[...]
            conv_body(a.astype(jnp.bfloat16), w_ref, r_ref, y_ref, s_ref, q_ref)
    else:
        def kernel(x_ref, w_ref, r_ref, y_ref, s_ref, q_ref):
            conv_body(x_ref[0].astype(jnp.bfloat16), w_ref, r_ref, y_ref, s_ref, q_ref)
    return kernel


def _conv3x3_stats(x, w9, ratio, shifts, scale=None, shift=None, valid=None):
    n, c_in, l = x.shape
    c_out = w9.shape[1]
    fused = scale is not None
    kernel = _make_conv_kernel(shifts, fused)

    in_specs = [
        pl.BlockSpec((1, c_in, l), lambda i: (i, 0, 0)),        # activation tile
        pl.BlockSpec((9, c_out, c_in), lambda i: (0, 0, 0)),    # resident weights
        pl.BlockSpec((1, l), lambda i: (0, 0)),                 # resident ratio map
    ]
    args = [x, w9, ratio]
    if fused:
        in_specs += [
            pl.BlockSpec((1, l), lambda i: (0, 0)),             # resident validity map
            pl.BlockSpec((c_in, 1), lambda i: (0, 0)),          # resident BN1 scale
            pl.BlockSpec((c_in, 1), lambda i: (0, 0)),          # resident BN1 shift
        ]
        args += [valid, scale, shift]

    return pl.pallas_call(
        kernel,
        out_shape=(
            jax.ShapeDtypeStruct((n, c_out, l), jnp.float32),
            jax.ShapeDtypeStruct((n, c_out, 1), jnp.float32),
            jax.ShapeDtypeStruct((n, c_out, 1), jnp.float32),
        ),
        grid_spec=pltpu.PrefetchScalarGridSpec(
            num_scalar_prefetch=0,
            grid=(n,),
            in_specs=in_specs,
            out_specs=(
                pl.BlockSpec((1, c_out, l), lambda i: (i, 0, 0)),
                pl.BlockSpec((1, c_out, 1), lambda i: (i, 0, 0)),
                pl.BlockSpec((1, c_out, 1), lambda i: (i, 0, 0)),
            ),
        ),
        compiler_params=pltpu.CompilerParams(
            dimension_semantics=("parallel",),          # independent per image
            vmem_limit_bytes=_VMEM_LIMIT),
    )(*args)


# ---------------------------------------------------------------------------
# Final elementwise kernel: BN2 affine + residual add + ReLU, lane-tiled.
# ---------------------------------------------------------------------------
def _bn_add_relu_kernel(x_ref, sc_ref, sh_ref, res_ref, o_ref):
    y = x_ref[0] * sc_ref[...] + sh_ref[...] + res_ref[0]
    o_ref[0] = jnp.maximum(y, 0.0).astype(o_ref.dtype)


def _lane_tile(l, target=4096):
    if l % 128 != 0:
        return l
    t = min(l, target)
    t -= t % 128
    while l % t != 0:
        t -= 128
    return t


def _bn_add_relu(x, scale, shift, residual):
    n, c, l = x.shape
    tl = _lane_tile(l)
    blk = pl.BlockSpec((1, c, tl), lambda i, j: (i, 0, j))
    par = pl.BlockSpec((c, 1), lambda i, j: (0, 0))
    return pl.pallas_call(
        _bn_add_relu_kernel,
        out_shape=jax.ShapeDtypeStruct((n, c, l), x.dtype),
        grid_spec=pltpu.PrefetchScalarGridSpec(
            num_scalar_prefetch=0,
            grid=(n, l // tl),
            in_specs=[blk, par, par, blk],
            out_specs=blk,
        ),
        compiler_params=pltpu.CompilerParams(
            dimension_semantics=("parallel", "parallel"),
            vmem_limit_bytes=_VMEM_LIMIT),
    )(x, scale, shift, residual)


# ---------------------------------------------------------------------------
# Wrapper glue (cheap, layout-preserving).
# ---------------------------------------------------------------------------
def _pconv_maps(h, w, lout):
    """Ratio (9 / #in-bounds cells, 0 off-image) and validity maps in padded-flat layout."""
    hp, wp = h + 2, w + 2
    ih, iw = jnp.arange(h), jnp.arange(w)
    cnt_h = 1.0 + (ih >= 1).astype(jnp.float32) + (ih <= h - 2).astype(jnp.float32)
    cnt_w = 1.0 + (iw >= 1).astype(jnp.float32) + (iw <= w - 2).astype(jnp.float32)
    ratio_hw = 9.0 / (cnt_h[:, None] * cnt_w[None, :])
    ratio_p = jnp.zeros((hp, wp), jnp.float32).at[1:1 + h, 1:1 + w].set(ratio_hw)
    valid_p = jnp.zeros((hp, wp), jnp.float32).at[1:1 + h, 1:1 + w].set(1.0)
    pad = lout - hp * wp
    ratio = jnp.pad(ratio_p.reshape(1, hp * wp), ((0, 0), (0, pad)))
    valid = jnp.pad(valid_p.reshape(1, hp * wp), ((0, 0), (0, pad)))
    return ratio, valid


def _fold_bn_affine(sums, sqsums, gamma, beta, count):
    """Reduce per-image partial stats, fold BN(train) affine into per-channel scale/shift."""
    s = jnp.sum(sums, axis=0)[:, 0]
    q = jnp.sum(sqsums, axis=0)[:, 0]
    mean = s / count
    var = q / count - mean * mean                  # biased variance (BN training mode)
    scale = gamma * lax.rsqrt(var + _EPS)
    shift = beta - mean * scale
    return (scale.reshape(-1, 1).astype(jnp.float32),
            shift.reshape(-1, 1).astype(jnp.float32))


def basic_block_forward(x, conv1_w, bn1_gamma, bn1_beta, conv2_w, bn2_gamma, bn2_beta):
    """BasicBlock forward, stride=1, downsample=None, training-mode BatchNorm."""
    n, c_in, h, w = x.shape
    c_out = conv1_w.shape[0]
    assert conv1_w.shape[1] == c_in and conv2_w.shape[:2] == (c_out, c_out)
    assert c_in == c_out, "downsample=None requires inplanes == planes"

    hp, wp = h + 2, w + 2
    lp = hp * wp
    lout = _round_up(lp, 128)                      # lane-dense flat length
    # Flat offset of tap (dy, dx) in the padded grid (never wraps for valid pixels).
    shifts = tuple((dy - 1) * wp + (dx - 1) for dy in range(3) for dx in range(3))

    # Zero-padded, flattened input; doubles as conv1 input and residual.
    xpf = jnp.pad(x, ((0, 0), (0, 0), (1, 1), (1, 1))).reshape(n, c_in, lp)
    xpf = jnp.pad(xpf, ((0, 0), (0, 0), (0, lout - lp)))

    ratio, valid = _pconv_maps(h, w, lout)
    w1_9 = jnp.transpose(conv1_w, (2, 3, 0, 1)).reshape(9, c_out, c_in).astype(jnp.bfloat16)
    w2_9 = jnp.transpose(conv2_w, (2, 3, 0, 1)).reshape(9, c_out, c_out).astype(jnp.bfloat16)
    count = n * h * w                              # true BN element count (excludes padding)

    # conv1 (+ fused BN1 statistics)
    y1, s1, q1 = _conv3x3_stats(xpf, w1_9, ratio, shifts)
    sc1, sh1 = _fold_bn_affine(s1, q1, bn1_gamma, bn1_beta, count)

    # conv2 with BN1 affine + ReLU fused into its input path (+ fused BN2 statistics)
    y2, s2, q2 = _conv3x3_stats(y1, w2_9, ratio, shifts, scale=sc1, shift=sh1, valid=valid)
    sc2, sh2 = _fold_bn_affine(s2, q2, bn2_gamma, bn2_beta, count)

    # BN2 affine + residual + ReLU, then un-pad.
    out = _bn_add_relu(y2, sc2, sh2, xpf)
    out = out[:, :, :lp].reshape(n, c_out, hp, wp)[:, :, 1:1 + h, 1:1 + w]
    return out


# ---------------------------------------------------------------------------
# Pure-JAX reference (for verification only).  It mirrors the kernel's bf16
# rounding of the MXU operands so the comparison isolates implementation bugs
# from the (intentional) bf16 matmul quantization.
# ---------------------------------------------------------------------------
def _bf16_round(a):
    return a.astype(jnp.bfloat16).astype(jnp.float32)


def _partial_conv3x3_ref(x, wt):
    n, c, h, w = x.shape
    dn = ('NCHW', 'OIHW', 'NCHW')
    raw = lax.conv_general_dilated(_bf16_round(x), _bf16_round(wt), (1, 1), ((1, 1), (1, 1)),
                                   dimension_numbers=dn, precision=lax.Precision.HIGHEST)
    um = lax.conv_general_dilated(jnp.ones((1, 1, h, w), jnp.float32),
                                  jnp.ones((1, 1, 3, 3), jnp.float32),
                                  (1, 1), ((1, 1), (1, 1)), dimension_numbers=dn,
                                  precision=lax.Precision.HIGHEST)
    return raw * (9.0 / um)


def _bn_train_ref(x, gamma, beta):
    mean = jnp.mean(x, axis=(0, 2, 3), keepdims=True)
    var = jnp.mean((x - mean) ** 2, axis=(0, 2, 3), keepdims=True)
    return ((x - mean) * lax.rsqrt(var + _EPS) * gamma.reshape(1, -1, 1, 1)
            + beta.reshape(1, -1, 1, 1))


def basic_block_ref(x, w1, g1, b1, w2, g2, b2):
    out = jnp.maximum(_bn_train_ref(_partial_conv3x3_ref(x, w1), g1, b1), 0.0)
    out = _bn_train_ref(_partial_conv3x3_ref(out, w2), g2, b2) + x
    return jnp.maximum(out, 0.0)


if __name__ == "__main__":
    key = jax.random.PRNGKey(0)
    kx, k1, k2 = jax.random.split(key, 3)

    N, C, H, W = 2, 4, 16, 16          # inplanes == planes == 4, stride=1, downsample=None
    x = jax.random.normal(kx, (N, C, H, W), dtype=jnp.float32)

    fan_in = 9 * C                     # kaiming-style init for 3x3 convs (bias=False)
    w1 = jax.random.normal(k1, (C, C, 3, 3), dtype=jnp.float32) * (2.0 / fan_in) ** 0.5
    w2 = jax.random.normal(k2, (C, C, 3, 3), dtype=jnp.float32) * (2.0 / fan_in) ** 0.5
    # nn.BatchNorm2d default affine init: weight = ones, bias = zeros
    g1 = jnp.ones((C,), jnp.float32)
    b1 = jnp.zeros((C,), jnp.float32)
    g2 = jnp.ones((C,), jnp.float32)
    b2 = jnp.zeros((C,), jnp.float32)

    out = jax.jit(basic_block_forward)(x, w1, g1, b1, w2, g2, b2)
    jax.block_until_ready(out)

    ref = basic_block_ref(x, w1, g1, b1, w2, g2, b2)
    assert out.shape == ref.shape
    max_diff = float(jnp.max(jnp.abs(out - ref)))
    assert jnp.allclose(out, ref, atol=5e-3, rtol=5e-3), f"mismatch vs reference: {max_diff}"
    print("KERNEL_OK")
</pallas_src>

<mosaic_0001>
module attributes {stable_mosaic.version = 11 : i64} {
  func.func @kernel(%arg0: i32, %arg1: memref<1x4x384xf32, #tpu.memory_space<vmem>>, %arg2: memref<9x4x4xbf16, #tpu.memory_space<vmem>>, %arg3: memref<1x384xf32, #tpu.memory_space<vmem>>, %arg4: memref<1x4x384xf32, #tpu.memory_space<vmem>>, %arg5: memref<1x4x1xf32, #tpu.memory_space<vmem>>, %arg6: memref<1x4x1xf32, #tpu.memory_space<vmem>>) attributes {dimension_semantics = [#tpu.dimension_semantics<parallel>], iteration_bounds = array<i64: 2>, scalar_prefetch = 0 : i64, scratch_operands = 0 : i64, tpu.core_type = #tpu.core_type<tc>, window_params = [{transform_indices = @transform_0, window_bounds = array<i64: 1, 4, 384>}, {pipeline_mode = #tpu.pipeline_mode<synchronous>, transform_indices = @transform_1, window_bounds = array<i64: 9, 4, 4>}, {pipeline_mode = #tpu.pipeline_mode<synchronous>, transform_indices = @transform_2, window_bounds = array<i64: 1, 384>}, {transform_indices = @transform_3, window_bounds = array<i64: 1, 4, 384>}, {transform_indices = @transform_4, window_bounds = array<i64: 1, 4, 1>}, {transform_indices = @transform_5, window_bounds = array<i64: 1, 4, 1>}]} {
    %c0 = arith.constant 0 : index
    %c0_0 = arith.constant 0 : index
    %c0_1 = arith.constant 0 : index
    %0 = vector.load %arg1[%c0, %c0_0, %c0_1] : memref<1x4x384xf32, #tpu.memory_space<vmem>>, vector<1x4x384xf32>
    %1 = vector.shape_cast %0 : vector<1x4x384xf32> to vector<4x384xf32>
    %2 = arith.truncf %1 : vector<4x384xf32> to vector<4x384xbf16>
    %3 = vector.extract_strided_slice %2 {offsets = [0, 365], sizes = [4, 19], strides = [1, 1]} : vector<4x384xbf16> to vector<4x19xbf16>
    %4 = vector.extract_strided_slice %2 {offsets = [0, 0], sizes = [4, 365], strides = [1, 1]} : vector<4x384xbf16> to vector<4x365xbf16>
    %5 = tpu.concatenate %3, %4 in 1 : vector<4x19xbf16>, vector<4x365xbf16> -> vector<4x384xbf16>
    %c0_2 = arith.constant 0 : index
    %c0_3 = arith.constant 0 : index
    %c0_4 = arith.constant 0 : index
    %6 = vector.load %arg2[%c0_2, %c0_3, %c0_4] : memref<9x4x4xbf16, #tpu.memory_space<vmem>>, vector<1x4x4xbf16>
    %7 = vector.shape_cast %6 : vector<1x4x4xbf16> to vector<4x4xbf16>
    %cst = arith.constant dense<0.000000e+00> : vector<4x384xf32>
    %8 = tpu.matmul %7, %5, %cst {dimension_numbers = #tpu.dot_dimension_numbers<[1], [0], [0], [1], [0, 0, 1, 1], [], []>} : vector<4x4xbf16>, vector<4x384xbf16>, vector<4x384xf32> -> vector<4x384xf32>
    %9 = vector.extract_strided_slice %2 {offsets = [0, 366], sizes = [4, 18], strides = [1, 1]} : vector<4x384xbf16> to vector<4x18xbf16>
    %10 = vector.extract_strided_slice %2 {offsets = [0, 0], sizes = [4, 366], strides = [1, 1]} : vector<4x384xbf16> to vector<4x366xbf16>
    %11 = tpu.concatenate %9, %10 in 1 : vector<4x18xbf16>, vector<4x366xbf16> -> vector<4x384xbf16>
    %c1 = arith.constant 1 : index
    %c0_5 = arith.constant 0 : index
    %c0_6 = arith.constant 0 : index
    %12 = vector.load %arg2[%c1, %c0_5, %c0_6] : memref<9x4x4xbf16, #tpu.memory_space<vmem>>, vector<1x4x4xbf16>
    %13 = vector.shape_cast %12 : vector<1x4x4xbf16> to vector<4x4xbf16>
    %cst_7 = arith.constant dense<0.000000e+00> : vector<4x384xf32>
    %14 = tpu.matmul %13, %11, %cst_7 {dimension_numbers = #tpu.dot_dimension_numbers<[1], [0], [0], [1], [0, 0, 1, 1], [], []>} : vector<4x4xbf16>, vector<4x384xbf16>, vector<4x384xf32> -> vector<4x384xf32>
    %15 = arith.addf %8, %14 : vector<4x384xf32>
    %16 = vector.extract_strided_slice %2 {offsets = [0, 367], sizes = [4, 17], strides = [1, 1]} : vector<4x384xbf16> to vector<4x17xbf16>
    %17 = vector.extract_strided_slice %2 {offsets = [0, 0], sizes = [4, 367], strides = [1, 1]} : vector<4x384xbf16> to vector<4x367xbf16>
    %18 = tpu.concatenate %16, %17 in 1 : vector<4x17xbf16>, vector<4x367xbf16> -> vector<4x384xbf16>
    %c2 = arith.constant 2 : index
    %c0_8 = arith.constant 0 : index
    %c0_9 = arith.constant 0 : index
    %19 = vector.load %arg2[%c2, %c0_8, %c0_9] : memref<9x4x4xbf16, #tpu.memory_space<vmem>>, vector<1x4x4xbf16>
    %20 = vector.shape_cast %19 : vector<1x4x4xbf16> to vector<4x4xbf16>
    %cst_10 = arith.constant dense<0.000000e+00> : vector<4x384xf32>
    %21 = tpu.matmul %20, %18, %cst_10 {dimension_numbers = #tpu.dot_dimension_numbers<[1], [0], [0], [1], [0, 0, 1, 1], [], []>} : vector<4x4xbf16>, vector<4x384xbf16>, vector<4x384xf32> -> vector<4x384xf32>
    %22 = arith.addf %15, %21 : vector<4x384xf32>
    %23 = vector.extract_strided_slice %2 {offsets = [0, 383], sizes = [4, 1], strides = [1, 1]} : vector<4x384xbf16> to vector<4x1xbf16>
    %24 = vector.extract_strided_slice %2 {offsets = [0, 0], sizes = [4, 383], strides = [1, 1]} : vector<4x384xbf16> to vector<4x383xbf16>
    %25 = tpu.concatenate %23, %24 in 1 : vector<4x1xbf16>, vector<4x383xbf16> -> vector<4x384xbf16>
    %c3 = arith.constant 3 : index
    %c0_11 = arith.constant 0 : index
    %c0_12 = arith.constant 0 : index
    %26 = vector.load %arg2[%c3, %c0_11, %c0_12] : memref<9x4x4xbf16, #tpu.memory_space<vmem>>, vector<1x4x4xbf16>
    %27 = vector.shape_cast %26 : vector<1x4x4xbf16> to vector<4x4xbf16>
    %cst_13 = arith.constant dense<0.000000e+00> : vector<4x384xf32>
    %28 = tpu.matmul %27, %25, %cst_13 {dimension_numbers = #tpu.dot_dimension_numbers<[1], [0], [0], [1], [0, 0, 1, 1], [], []>} : vector<4x4xbf16>, vector<4x384xbf16>, vector<4x384xf32> -> vector<4x384xf32>
    %29 = arith.addf %22, %28 : vector<4x384xf32>
    %c4 = arith.constant 4 : index
    %c0_14 = arith.constant 0 : index
    %c0_15 = arith.constant 0 : index
    %30 = vector.load %arg2[%c4, %c0_14, %c0_15] : memref<9x4x4xbf16, #tpu.memory_space<vmem>>, vector<1x4x4xbf16>
    %31 = vector.shape_cast %30 : vector<1x4x4xbf16> to vector<4x4xbf16>
    %cst_16 = arith.constant dense<0.000000e+00> : vector<4x384xf32>
    %32 = tpu.matmul %31, %2, %cst_16 {dimension_numbers = #tpu.dot_dimension_numbers<[1], [0], [0], [1], [0, 0, 1, 1], [], []>} : vector<4x4xbf16>, vector<4x384xbf16>, vector<4x384xf32> -> vector<4x384xf32>
    %33 = arith.addf %29, %32 : vector<4x384xf32>
    %34 = vector.extract_strided_slice %2 {offsets = [0, 1], sizes = [4, 383], strides = [1, 1]} : vector<4x384xbf16> to vector<4x383xbf16>
    %35 = vector.extract_strided_slice %2 {offsets = [0, 0], sizes = [4, 1], strides = [1, 1]} : vector<4x384xbf16> to vector<4x1xbf16>
    %36 = tpu.concatenate %34, %35 in 1 : vector<4x383xbf16>, vector<4x1xbf16> -> vector<4x384xbf16>
    %c5 = arith.constant 5 : index
    %c0_17 = arith.constant 0 : index
    %c0_18 = arith.constant 0 : index
    %37 = vector.load %arg2[%c5, %c0_17, %c0_18] : memref<9x4x4xbf16, #tpu.memory_space<vmem>>, vector<1x4x4xbf16>
    %38 = vector.shape_cast %37 : vector<1x4x4xbf16> to vector<4x4xbf16>
    %cst_19 = arith.constant dense<0.000000e+00> : vector<4x384xf32>
    %39 = tpu.matmul %38, %36, %cst_19 {dimension_numbers = #tpu.dot_dimension_numbers<[1], [0], [0], [1], [0, 0, 1, 1], [], []>} : vector<4x4xbf16>, vector<4x384xbf16>, vector<4x384xf32> -> vector<4x384xf32>
    %40 = arith.addf %33, %39 : vector<4x384xf32>
    %41 = vector.extract_strided_slice %2 {offsets = [0, 17], sizes = [4, 367], strides = [1, 1]} : vector<4x384xbf16> to vector<4x367xbf16>
    %42 = vector.extract_strided_slice %2 {offsets = [0, 0], sizes = [4, 17], strides = [1, 1]} : vector<4x384xbf16> to vector<4x17xbf16>
    %43 = tpu.concatenate %41, %42 in 1 : vector<4x367xbf16>, vector<4x17xbf16> -> vector<4x384xbf16>
    %c6 = arith.constant 6 : index
    %c0_20 = arith.constant 0 : index
    %c0_21 = arith.constant 0 : index
    %44 = vector.load %arg2[%c6, %c0_20, %c0_21] : memref<9x4x4xbf16, #tpu.memory_space<vmem>>, vector<1x4x4xbf16>
    %45 = vector.shape_cast %44 : vector<1x4x4xbf16> to vector<4x4xbf16>
    %cst_22 = arith.constant dense<0.000000e+00> : vector<4x384xf32>
    %46 = tpu.matmul %45, %43, %cst_22 {dimension_numbers = #tpu.dot_dimension_numbers<[1], [0], [0], [1], [0, 0, 1, 1], [], []>} : vector<4x4xbf16>, vector<4x384xbf16>, vector<4x384xf32> -> vector<4x384xf32>
    %47 = arith.addf %40, %46 : vector<4x384xf32>
    %48 = vector.extract_strided_slice %2 {offsets = [0, 18], sizes = [4, 366], strides = [1, 1]} : vector<4x384xbf16> to vector<4x366xbf16>
    %49 = vector.extract_strided_slice %2 {offsets = [0, 0], sizes = [4, 18], strides = [1, 1]} : vector<4x384xbf16> to vector<4x18xbf16>
    %50 = tpu.concatenate %48, %49 in 1 : vector<4x366xbf16>, vector<4x18xbf16> -> vector<4x384xbf16>
    %c7 = arith.constant 7 : index
    %c0_23 = arith.constant 0 : index
    %c0_24 = arith.constant 0 : index
    %51 = vector.load %arg2[%c7, %c0_23, %c0_24] : memref<9x4x4xbf16, #tpu.memory_space<vmem>>, vector<1x4x4xbf16>
    %52 = vector.shape_cast %51 : vector<1x4x4xbf16> to vector<4x4xbf16>
    %cst_25 = arith.constant dense<0.000000e+00> : vector<4x384xf32>
    %53 = tpu.matmul %52, %50, %cst_25 {dimension_numbers = #tpu.dot_dimension_numbers<[1], [0], [0], [1], [0, 0, 1, 1], [], []>} : vector<4x4xbf16>, vector<4x384xbf16>, vector<4x384xf32> -> vector<4x384xf32>
    %54 = arith.addf %47, %53 : vector<4x384xf32>
    %55 = vector.extract_strided_slice %2 {offsets = [0, 19], sizes = [4, 365], strides = [1, 1]} : vector<4x384xbf16> to vector<4x365xbf16>
    %56 = vector.extract_strided_slice %2 {offsets = [0, 0], sizes = [4, 19], strides = [1, 1]} : vector<4x384xbf16> to vector<4x19xbf16>
    %57 = tpu.concatenate %55, %56 in 1 : vector<4x365xbf16>, vector<4x19xbf16> -> vector<4x384xbf16>
    %c8 = arith.constant 8 : index
    %c0_26 = arith.constant 0 : index
    %c0_27 = arith.constant 0 : index
    %58 = vector.load %arg2[%c8, %c0_26, %c0_27] : memref<9x4x4xbf16, #tpu.memory_space<vmem>>, vector<1x4x4xbf16>
    %59 = vector.shape_cast %58 : vector<1x4x4xbf16> to vector<4x4xbf16>
    %cst_28 = arith.constant dense<0.000000e+00> : vector<4x384xf32>
    %60 = tpu.matmul %59, %57, %cst_28 {dimension_numbers = #tpu.dot_dimension_numbers<[1], [0], [0], [1], [0, 0, 1, 1], [], []>} : vector<4x4xbf16>, vector<4x384xbf16>, vector<4x384xf32> -> vector<4x384xf32>
    %61 = arith.addf %54, %60 : vector<4x384xf32>
    %c0_29 = arith.constant 0 : index
    %c0_30 = arith.constant 0 : index
    %62 = vector.load %arg3[%c0_29, %c0_30] : memref<1x384xf32, #tpu.memory_space<vmem>>, vector<1x384xf32>
    %63 = vector.broadcast %62 : vector<1x384xf32> to vector<4x384xf32>
    %64 = arith.mulf %61, %63 : vector<4x384xf32>
    %c0_31 = arith.constant 0 : index
    %c0_32 = arith.constant 0 : index
    %c0_33 = arith.constant 0 : index
    %65 = vector.load %arg4[%c0_31, %c0_32, %c0_33] : memref<1x4x384xf32, #tpu.memory_space<vmem>>, vector<1x4x384xf32>
    %66 = vector.shape_cast %65 : vector<1x4x384xf32> to vector<4x384xf32>
    %67 = vector.shape_cast %64 : vector<4x384xf32> to vector<1x4x384xf32>
    tpu.vector_store %arg4[%c0_31, %c0_32, %c0_33], %67 {strides = array<i32>} : memref<1x4x384xf32, #tpu.memory_space<vmem>>, vector<1x4x384xf32>,
    %cst_34 = arith.constant dense<0.000000e+00> : vector<4xf32>
    %68 = vector.multi_reduction <add>, %64, %cst_34 [1] : vector<4x384xf32> to vector<4xf32>
    %69 = vector.shape_cast %68 : vector<4xf32> to vector<4x1xf32>
    %c0_35 = arith.constant 0 : index
    %c0_36 = arith.constant 0 : index
    %c0_37 = arith.constant 0 : index
    %70 = vector.load %arg5[%c0_35, %c0_36, %c0_37] : memref<1x4x1xf32, #tpu.memory_space<vmem>>, vector<1x4x1xf32>
    %71 = vector.shape_cast %70 : vector<1x4x1xf32> to vector<4x1xf32>
    %72 = vector.shape_cast %69 : vector<4x1xf32> to vector<1x4x1xf32>
    tpu.vector_store %arg5[%c0_35, %c0_36, %c0_37], %72 {strides = array<i32>} : memref<1x4x1xf32, #tpu.memory_space<vmem>>, vector<1x4x1xf32>,
    %73 = arith.mulf %64, %64 : vector<4x384xf32>
    %cst_38 = arith.constant dense<0.000000e+00> : vector<4xf32>
    %74 = vector.multi_reduction <add>, %73, %cst_38 [1] : vector<4x384xf32> to vector<4xf32>
    %75 = vector.shape_cast %74 : vector<4xf32> to vector<4x1xf32>
    %c0_39 = arith.constant 0 : index
    %c0_40 = arith.constant 0 : index
    %c0_41 = arith.constant 0 : index
    %76 = vector.load %arg6[%c0_39, %c0_40, %c0_41] : memref<1x4x1xf32, #tpu.memory_space<vmem>>, vector<1x4x1xf32>
    %77 = vector.shape_cast %76 : vector<1x4x1xf32> to vector<4x1xf32>
    %78 = vector.shape_cast %75 : vector<4x1xf32> to vector<1x4x1xf32>
    tpu.vector_store %arg6[%c0_39, %c0_40, %c0_41], %78 {strides = array<i32>} : memref<1x4x1xf32, #tpu.memory_space<vmem>>, vector<1x4x1xf32>,
    return
  }
  func.func @transform_0(%arg0: i32) -> (i32, i32, i32) {
    %c0_i32 = arith.constant 0 : i32
    %c0_i32_0 = arith.constant 0 : i32
    %c0_i32_1 = arith.constant 0 : i32
    return %arg0, %c0_i32, %c0_i32_0 : i32, i32, i32
  }
  func.func @transform_1(%arg0: i32) -> (i32, i32, i32) {
    %c0_i32 = arith.constant 0 : i32
    %c0_i32_0 = arith.constant 0 : i32
    %c0_i32_1 = arith.constant 0 : i32
    %c0_i32_2 = arith.constant 0 : i32
    return %c0_i32, %c0_i32_0, %c0_i32_1 : i32, i32, i32
  }
  func.func @transform_2(%arg0: i32) -> (i32, i32) {
    %c0_i32 = arith.constant 0 : i32
    %c0_i32_0 = arith.constant 0 : i32
    %c0_i32_1 = arith.constant 0 : i32
    return %c0_i32, %c0_i32_0 : i32, i32
  }
  func.func @transform_3(%arg0: i32) -> (i32, i32, i32) {
    %c0_i32 = arith.constant 0 : i32
    %c0_i32_0 = arith.constant 0 : i32
    %c0_i32_1 = arith.constant 0 : i32
    return %arg0, %c0_i32, %c0_i32_0 : i32, i32, i32
  }
  func.func @transform_4(%arg0: i32) -> (i32, i32, i32) {
    %c0_i32 = arith.constant 0 : i32
    %c0_i32_0 = arith.constant 0 : i32
    %c0_i32_1 = arith.constant 0 : i32
    return %arg0, %c0_i32, %c0_i32_0 : i32, i32, i32
  }
  func.func @transform_5(%arg0: i32) -> (i32, i32, i32) {
    %c0_i32 = arith.constant 0 : i32
    %c0_i32_0 = arith.constant 0 : i32
    %c0_i32_1 = arith.constant 0 : i32
    return %arg0, %c0_i32, %c0_i32_0 : i32, i32, i32
  }
}

module attributes {stable_mosaic.version = 11 : i64} {
  func.func @kernel(%arg0: i32, %arg1: memref<1x4x384xf32, #tpu.memory_space<vmem>>, %arg2: memref<9x4x4xbf16, #tpu.memory_space<vmem>>, %arg3: memref<1x384xf32, #tpu.memory_space<vmem>>, %arg4: memref<1x384xf32, #tpu.memory_space<vmem>>, %arg5: memref<4x1xf32, #tpu.memory_space<vmem>>, %arg6: memref<4x1xf32, #tpu.memory_space<vmem>>, %arg7: memref<1x4x384xf32, #tpu.memory_space<vmem>>, %arg8: memref<1x4x1xf32, #tpu.memory_space<vmem>>, %arg9: memref<1x4x1xf32, #tpu.memory_space<vmem>>) attributes {dimension_semantics = [#tpu.dimension_semantics<parallel>], iteration_bounds = array<i64: 2>, scalar_prefetch = 0 : i64, scratch_operands = 0 : i64, tpu.core_type = #tpu.core_type<tc>, window_params = [{transform_indices = @transform_0, window_bounds = array<i64: 1, 4, 384>}, {pipeline_mode = #tpu.pipeline_mode<synchronous>, transform_indices = @transform_1, window_bounds = array<i64: 9, 4, 4>}, {pipeline_mode = #tpu.pipeline_mode<synchronous>, transform_indices = @transform_2, window_bounds = array<i64: 1, 384>}, {pipeline_mode = #tpu.pipeline_mode<synchronous>, transform_indices = @transform_3, window_bounds = array<i64: 1, 384>}, {pipeline_mode = #tpu.pipeline_mode<synchronous>, transform_indices = @transform_4, window_bounds = array<i64: 4, 1>}, {pipeline_mode = #tpu.pipeline_mode<synchronous>, transform_indices = @transform_5, window_bounds = array<i64: 4, 1>}, {transform_indices = @transform_6, window_bounds = array<i64: 1, 4, 384>}, {transform_indices = @transform_7, window_bounds = array<i64: 1, 4, 1>}, {transform_indices = @transform_8, window_bounds = array<i64: 1, 4, 1>}]} {
    %c0 = arith.constant 0 : index
    %c0_0 = arith.constant 0 : index
    %c0_1 = arith.constant 0 : index
    %0 = vector.load %arg1[%c0, %c0_0, %c0_1] : memref<1x4x384xf32, #tpu.memory_space<vmem>>, vector<1x4x384xf32>
    %1 = vector.shape_cast %0 : vector<1x4x384xf32> to vector<4x384xf32>
    %c0_2 = arith.constant 0 : index
    %c0_3 = arith.constant 0 : index
    %2 = vector.load %arg5[%c0_2, %c0_3] : memref<4x1xf32, #tpu.memory_space<vmem>>, vector<4x1xf32>
    %3 = vector.broadcast %2 : vector<4x1xf32> to vector<4x384xf32>
    %4 = arith.mulf %1, %3 : vector<4x384xf32>
    %c0_4 = arith.constant 0 : index
    %c0_5 = arith.constant 0 : index
    %5 = vector.load %arg6[%c0_4, %c0_5] : memref<4x1xf32, #tpu.memory_space<vmem>>, vector<4x1xf32>
    %6 = vector.broadcast %5 : vector<4x1xf32> to vector<4x384xf32>
    %7 = arith.addf %4, %6 : vector<4x384xf32>
    %cst = arith.constant 0.000000e+00 : f32
    %8 = vector.broadcast %cst : f32 to vector<4x384xf32>
    %9 = arith.maximumf %7, %8 : vector<4x384xf32>
    %c0_6 = arith.constant 0 : index
    %c0_7 = arith.constant 0 : index
    %10 = vector.load %arg4[%c0_6, %c0_7] : memref<1x384xf32, #tpu.memory_space<vmem>>, vector<1x384xf32>
    %11 = vector.broadcast %10 : vector<1x384xf32> to vector<4x384xf32>
    %12 = arith.mulf %9, %11 : vector<4x384xf32>
    %13 = arith.truncf %12 : vector<4x384xf32> to vector<4x384xbf16>
    %14 = vector.extract_strided_slice %13 {offsets = [0, 365], sizes = [4, 19], strides = [1, 1]} : vector<4x384xbf16> to vector<4x19xbf16>
    %15 = vector.extract_strided_slice %13 {offsets = [0, 0], sizes = [4, 365], strides = [1, 1]} : vector<4x384xbf16> to vector<4x365xbf16>
    %16 = tpu.concatenate %14, %15 in 1 : vector<4x19xbf16>, vector<4x365xbf16> -> vector<4x384xbf16>
    %c0_8 = arith.constant 0 : index
    %c0_9 = arith.constant 0 : index
    %c0_10 = arith.constant 0 : index
    %17 = vector.load %arg2[%c0_8, %c0_9, %c0_10] : memref<9x4x4xbf16, #tpu.memory_space<vmem>>, vector<1x4x4xbf16>
    %18 = vector.shape_cast %17 : vector<1x4x4xbf16> to vector<4x4xbf16>
    %cst_11 = arith.constant dense<0.000000e+00> : vector<4x384xf32>
    %19 = tpu.matmul %18, %16, %cst_11 {dimension_numbers = #tpu.dot_dimension_numbers<[1], [0], [0], [1], [0, 0, 1, 1], [], []>} : vector<4x4xbf16>, vector<4x384xbf16>, vector<4x384xf32> -> vector<4x384xf32>
    %20 = vector.extract_strided_slice %13 {offsets = [0, 366], sizes = [4, 18], strides = [1, 1]} : vector<4x384xbf16> to vector<4x18xbf16>
    %21 = vector.extract_strided_slice %13 {offsets = [0, 0], sizes = [4, 366], strides = [1, 1]} : vector<4x384xbf16> to vector<4x366xbf16>
    %22 = tpu.concatenate %20, %21 in 1 : vector<4x18xbf16>, vector<4x366xbf16> -> vector<4x384xbf16>
    %c1 = arith.constant 1 : index
    %c0_12 = arith.constant 0 : index
    %c0_13 = arith.constant 0 : index
    %23 = vector.load %arg2[%c1, %c0_12, %c0_13] : memref<9x4x4xbf16, #tpu.memory_space<vmem>>, vector<1x4x4xbf16>
    %24 = vector.shape_cast %23 : vector<1x4x4xbf16> to vector<4x4xbf16>
    %cst_14 = arith.constant dense<0.000000e+00> : vector<4x384xf32>
    %25 = tpu.matmul %24, %22, %cst_14 {dimension_numbers = #tpu.dot_dimension_numbers<[1], [0], [0], [1], [0, 0, 1, 1], [], []>} : vector<4x4xbf16>, vector<4x384xbf16>, vector<4x384xf32> -> vector<4x384xf32>
    %26 = arith.addf %19, %25 : vector<4x384xf32>
    %27 = vector.extract_strided_slice %13 {offsets = [0, 367], sizes = [4, 17], strides = [1, 1]} : vector<4x384xbf16> to vector<4x17xbf16>
    %28 = vector.extract_strided_slice %13 {offsets = [0, 0], sizes = [4, 367], strides = [1, 1]} : vector<4x384xbf16> to vector<4x367xbf16>
    %29 = tpu.concatenate %27, %28 in 1 : vector<4x17xbf16>, vector<4x367xbf16> -> vector<4x384xbf16>
    %c2 = arith.constant 2 : index
    %c0_15 = arith.constant 0 : index
    %c0_16 = arith.constant 0 : index
    %30 = vector.load %arg2[%c2, %c0_15, %c0_16] : memref<9x4x4xbf16, #tpu.memory_space<vmem>>, vector<1x4x4xbf16>
    %31 = vector.shape_cast %30 : vector<1x4x4xbf16> to vector<4x4xbf16>
    %cst_17 = arith.constant dense<0.000000e+00> : vector<4x384xf32>
    %32 = tpu.matmul %31, %29, %cst_17 {dimension_numbers = #tpu.dot_dimension_numbers<[1], [0], [0], [1], [0, 0, 1, 1], [], []>} : vector<4x4xbf16>, vector<4x384xbf16>, vector<4x384xf32> -> vector<4x384xf32>
    %33 = arith.addf %26, %32 : vector<4x384xf32>
    %34 = vector.extract_strided_slice %13 {offsets = [0, 383], sizes = [4, 1], strides = [1, 1]} : vector<4x384xbf16> to vector<4x1xbf16>
    %35 = vector.extract_strided_slice %13 {offsets = [0, 0], sizes = [4, 383], strides = [1, 1]} : vector<4x384xbf16> to vector<4x383xbf16>
    %36 = tpu.concatenate %34, %35 in 1 : vector<4x1xbf16>, vector<4x383xbf16> -> vector<4x384xbf16>
    %c3 = arith.constant 3 : index
    %c0_18 = arith.constant 0 : index
    %c0_19 = arith.constant 0 : index
    %37 = vector.load %arg2[%c3, %c0_18, %c0_19] : memref<9x4x4xbf16, #tpu.memory_space<vmem>>, vector<1x4x4xbf16>
    %38 = vector.shape_cast %37 : vector<1x4x4xbf16> to vector<4x4xbf16>
    %cst_20 = arith.constant dense<0.000000e+00> : vector<4x384xf32>
    %39 = tpu.matmul %38, %36, %cst_20 {dimension_numbers = #tpu.dot_dimension_numbers<[1], [0], [0], [1], [0, 0, 1, 1], [], []>} : vector<4x4xbf16>, vector<4x384xbf16>, vector<4x384xf32> -> vector<4x384xf32>
    %40 = arith.addf %33, %39 : vector<4x384xf32>
    %c4 = arith.constant 4 : index
    %c0_21 = arith.constant 0 : index
    %c0_22 = arith.constant 0 : index
    %41 = vector.load %arg2[%c4, %c0_21, %c0_22] : memref<9x4x4xbf16, #tpu.memory_space<vmem>>, vector<1x4x4xbf16>
    %42 = vector.shape_cast %41 : vector<1x4x4xbf16> to vector<4x4xbf16>
    %cst_23 = arith.constant dense<0.000000e+00> : vector<4x384xf32>
    %43 = tpu.matmul %42, %13, %cst_23 {dimension_numbers = #tpu.dot_dimension_numbers<[1], [0], [0], [1], [0, 0, 1, 1], [], []>} : vector<4x4xbf16>, vector<4x384xbf16>, vector<4x384xf32> -> vector<4x384xf32>
    %44 = arith.addf %40, %43 : vector<4x384xf32>
    %45 = vector.extract_strided_slice %13 {offsets = [0, 1], sizes = [4, 383], strides = [1, 1]} : vector<4x384xbf16> to vector<4x383xbf16>
    %46 = vector.extract_strided_slice %13 {offsets = [0, 0], sizes = [4, 1], strides = [1, 1]} : vector<4x384xbf16> to vector<4x1xbf16>
    %47 = tpu.concatenate %45, %46 in 1 : vector<4x383xbf16>, vector<4x1xbf16> -> vector<4x384xbf16>
    %c5 = arith.constant 5 : index
    %c0_24 = arith.constant 0 : index
    %c0_25 = arith.constant 0 : index
    %48 = vector.load %arg2[%c5, %c0_24, %c0_25] : memref<9x4x4xbf16, #tpu.memory_space<vmem>>, vector<1x4x4xbf16>
    %49 = vector.shape_cast %48 : vector<1x4x4xbf16> to vector<4x4xbf16>
    %cst_26 = arith.constant dense<0.000000e+00> : vector<4x384xf32>
    %50 = tpu.matmul %49, %47, %cst_26 {dimension_numbers = #tpu.dot_dimension_numbers<[1], [0], [0], [1], [0, 0, 1, 1], [], []>} : vector<4x4xbf16>, vector<4x384xbf16>, vector<4x384xf32> -> vector<4x384xf32>
    %51 = arith.addf %44, %50 : vector<4x384xf32>
    %52 = vector.extract_strided_slice %13 {offsets = [0, 17], sizes = [4, 367], strides = [1, 1]} : vector<4x384xbf16> to vector<4x367xbf16>
    %53 = vector.extract_strided_slice %13 {offsets = [0, 0], sizes = [4, 17], strides = [1, 1]} : vector<4x384xbf16> to vector<4x17xbf16>
    %54 = tpu.concatenate %52, %53 in 1 : vector<4x367xbf16>, vector<4x17xbf16> -> vector<4x384xbf16>
    %c6 = arith.constant 6 : index
    %c0_27 = arith.constant 0 : index
    %c0_28 = arith.constant 0 : index
    %55 = vector.load %arg2[%c6, %c0_27, %c0_28] : memref<9x4x4xbf16, #tpu.memory_space<vmem>>, vector<1x4x4xbf16>
    %56 = vector.shape_cast %55 : vector<1x4x4xbf16> to vector<4x4xbf16>
    %cst_29 = arith.constant dense<0.000000e+00> : vector<4x384xf32>
    %57 = tpu.matmul %56, %54, %cst_29 {dimension_numbers = #tpu.dot_dimension_numbers<[1], [0], [0], [1], [0, 0, 1, 1], [], []>} : vector<4x4xbf16>, vector<4x384xbf16>, vector<4x384xf32> -> vector<4x384xf32>
    %58 = arith.addf %51, %57 : vector<4x384xf32>
    %59 = vector.extract_strided_slice %13 {offsets = [0, 18], sizes = [4, 366], strides = [1, 1]} : vector<4x384xbf16> to vector<4x366xbf16>
    %60 = vector.extract_strided_slice %13 {offsets = [0, 0], sizes = [4, 18], strides = [1, 1]} : vector<4x384xbf16> to vector<4x18xbf16>
    %61 = tpu.concatenate %59, %60 in 1 : vector<4x366xbf16>, vector<4x18xbf16> -> vector<4x384xbf16>
    %c7 = arith.constant 7 : index
    %c0_30 = arith.constant 0 : index
    %c0_31 = arith.constant 0 : index
    %62 = vector.load %arg2[%c7, %c0_30, %c0_31] : memref<9x4x4xbf16, #tpu.memory_space<vmem>>, vector<1x4x4xbf16>
    %63 = vector.shape_cast %62 : vector<1x4x4xbf16> to vector<4x4xbf16>
    %cst_32 = arith.constant dense<0.000000e+00> : vector<4x384xf32>
    %64 = tpu.matmul %63, %61, %cst_32 {dimension_numbers = #tpu.dot_dimension_numbers<[1], [0], [0], [1], [0, 0, 1, 1], [], []>} : vector<4x4xbf16>, vector<4x384xbf16>, vector<4x384xf32> -> vector<4x384xf32>
    %65 = arith.addf %58, %64 : vector<4x384xf32>
    %66 = vector.extract_strided_slice %13 {offsets = [0, 19], sizes = [4, 365], strides = [1, 1]} : vector<4x384xbf16> to vector<4x365xbf16>
    %67 = vector.extract_strided_slice %13 {offsets = [0, 0], sizes = [4, 19], strides = [1, 1]} : vector<4x384xbf16> to vector<4x19xbf16>
    %68 = tpu.concatenate %66, %67 in 1 : vector<4x365xbf16>, vector<4x19xbf16> -> vector<4x384xbf16>
    %c8 = arith.constant 8 : index
    %c0_33 = arith.constant 0 : index
    %c0_34 = arith.constant 0 : index
    %69 = vector.load %arg2[%c8, %c0_33, %c0_34] : memref<9x4x4xbf16, #tpu.memory_space<vmem>>, vector<1x4x4xbf16>
    %70 = vector.shape_cast %69 : vector<1x4x4xbf16> to vector<4x4xbf16>
    %cst_35 = arith.constant dense<0.000000e+00> : vector<4x384xf32>
    %71 = tpu.matmul %70, %68, %cst_35 {dimension_numbers = #tpu.dot_dimension_numbers<[1], [0], [0], [1], [0, 0, 1, 1], [], []>} : vector<4x4xbf16>, vector<4x384xbf16>, vector<4x384xf32> -> vector<4x384xf32>
    %72 = arith.addf %65, %71 : vector<4x384xf32>
    %c0_36 = arith.constant 0 : index
    %c0_37 = arith.constant 0 : index
    %73 = vector.load %arg3[%c0_36, %c0_37] : memref<1x384xf32, #tpu.memory_space<vmem>>, vector<1x384xf32>
    %74 = vector.broadcast %73 : vector<1x384xf32> to vector<4x384xf32>
    %75 = arith.mulf %72, %74 : vector<4x384xf32>
    %c0_38 = arith.constant 0 : index
    %c0_39 = arith.constant 0 : index
    %c0_40 = arith.constant 0 : index
    %76 = vector.load %arg7[%c0_38, %c0_39, %c0_40] : memref<1x4x384xf32, #tpu.memory_space<vmem>>, vector<1x4x384xf32>
    %77 = vector.shape_cast %76 : vector<1x4x384xf32> to vector<4x384xf32>
    %78 = vector.shape_cast %75 : vector<4x384xf32> to vector<1x4x384xf32>
    tpu.vector_store %arg7[%c0_38, %c0_39, %c0_40], %78 {strides = array<i32>} : memref<1x4x384xf32, #tpu.memory_space<vmem>>, vector<1x4x384xf32>,
    %cst_41 = arith.constant dense<0.000000e+00> : vector<4xf32>
    %79 = vector.multi_reduction <add>, %75, %cst_41 [1] : vector<4x384xf32> to vector<4xf32>
    %80 = vector.shape_cast %79 : vector<4xf32> to vector<4x1xf32>
    %c0_42 = arith.constant 0 : index
    %c0_43 = arith.constant 0 : index
    %c0_44 = arith.constant 0 : index
    %81 = vector.load %arg8[%c0_42, %c0_43, %c0_44] : memref<1x4x1xf32, #tpu.memory_space<vmem>>, vector<1x4x1xf32>
    %82 = vector.shape_cast %81 : vector<1x4x1xf32> to vector<4x1xf32>
    %83 = vector.shape_cast %80 : vector<4x1xf32> to vector<1x4x1xf32>
    tpu.vector_store %arg8[%c0_42, %c0_43, %c0_44], %83 {strides = array<i32>} : memref<1x4x1xf32, #tpu.memory_space<vmem>>, vector<1x4x1xf32>,
    %84 = arith.mulf %75, %75 : vector<4x384xf32>
    %cst_45 = arith.constant dense<0.000000e+00> : vector<4xf32>
    %85 = vector.multi_reduction <add>, %84, %cst_45 [1] : vector<4x384xf32> to vector<4xf32>
    %86 = vector.shape_cast %85 : vector<4xf32> to vector<4x1xf32>
    %c0_46 = arith.constant 0 : index
    %c0_47 = arith.constant 0 : index
    %c0_48 = arith.constant 0 : index
    %87 = vector.load %arg9[%c0_46, %c0_47, %c0_48] : memref<1x4x1xf32, #tpu.memory_space<vmem>>, vector<1x4x1xf32>
    %88 = vector.shape_cast %87 : vector<1x4x1xf32> to vector<4x1xf32>
    %89 = vector.shape_cast %86 : vector<4x1xf32> to vector<1x4x1xf32>
    tpu.vector_store %arg9[%c0_46, %c0_47, %c0_48], %89 {strides = array<i32>} : memref<1x4x1xf32, #tpu.memory_space<vmem>>, vector<1x4x1xf32>,
    return
  }
  func.func @transform_0(%arg0: i32) -> (i32, i32, i32) {
    %c0_i32 = arith.constant 0 : i32
    %c0_i32_0 = arith.constant 0 : i32
    %c0_i32_1 = arith.constant 0 : i32
    return %arg0, %c0_i32, %c0_i32_0 : i32, i32, i32
  }
  func.func @transform_1(%arg0: i32) -> (i32, i32, i32) {
    %c0_i32 = arith.constant 0 : i32
    %c0_i32_0 = arith.constant 0 : i32
    %c0_i32_1 = arith.constant 0 : i32
    %c0_i32_2 = arith.constant 0 : i32
    return %c0_i32, %c0_i32_0, %c0_i32_1 : i32, i32, i32
  }
  func.func @transform_2(%arg0: i32) -> (i32, i32) {
    %c0_i32 = arith.constant 0 : i32
    %c0_i32_0 = arith.constant 0 : i32
    %c0_i32_1 = arith.constant 0 : i32
    return %c0_i32, %c0_i32_0 : i32, i32
  }
  func.func @transform_3(%arg0: i32) -> (i32, i32) {
    %c0_i32 = arith.constant 0 : i32
    %c0_i32_0 = arith.constant 0 : i32
    %c0_i32_1 = arith.constant 0 : i32
    return %c0_i32, %c0_i32_0 : i32, i32
  }
  func.func @transform_4(%arg0: i32) -> (i32, i32) {
    %c0_i32 = arith.constant 0 : i32
    %c0_i32_0 = arith.constant 0 : i32
    %c0_i32_1 = arith.constant 0 : i32
    return %c0_i32, %c0_i32_0 : i32, i32
  }
  func.func @transform_5(%arg0: i32) -> (i32, i32) {
    %c0_i32 = arith.constant 0 : i32
    %c0_i32_0 = arith.constant 0 : i32
    %c0_i32_1 = arith.constant 0 : i32
    return %c0_i32, %c0_i32_0 : i32, i32
  }
  func.func @transform_6(%arg0: i32) -> (i32, i32, i32) {
    %c0_i32 = arith.constant 0 : i32
    %c0_i32_0 = arith.constant 0 : i32
    %c0_i32_1 = arith.constant 0 : i32
    return %arg0, %c0_i32, %c0_i32_0 : i32, i32, i32
  }
  func.func @transform_7(%arg0: i32) -> (i32, i32, i32) {
    %c0_i32 = arith.constant 0 : i32
    %c0_i32_0 = arith.constant 0 : i32
    %c0_i32_1 = arith.constant 0 : i32
    return %arg0, %c0_i32, %c0_i32_0 : i32, i32, i32
  }
  func.func @transform_8(%arg0: i32) -> (i32, i32, i32) {
    %c0_i32 = arith.constant 0 : i32
    %c0_i32_0 = arith.constant 0 : i32
    %c0_i32_1 = arith.constant 0 : i32
    return %arg0, %c0_i32, %c0_i32_0 : i32, i32, i32
  }
}

module attributes {stable_mosaic.version = 11 : i64} {
  func.func @_bn_add_relu_kernel(%arg0: i32, %arg1: i32, %arg2: memref<1x4x384xf32, #tpu.memory_space<vmem>>, %arg3: memref<4x1xf32, #tpu.memory_space<vmem>>, %arg4: memref<4x1xf32, #tpu.memory_space<vmem>>, %arg5: memref<1x4x384xf32, #tpu.memory_space<vmem>>, %arg6: memref<1x4x384xf32, #tpu.memory_space<vmem>>) attributes {dimension_semantics = [#tpu.dimension_semantics<parallel>, #tpu.dimension_semantics<parallel>], iteration_bounds = array<i64: 2, 1>, scalar_prefetch = 0 : i64, scratch_operands = 0 : i64, tpu.core_type = #tpu.core_type<tc>, window_params = [{transform_indices = @transform_0, window_bounds = array<i64: 1, 4, 384>}, {pipeline_mode = #tpu.pipeline_mode<synchronous>, transform_indices = @transform_1, window_bounds = array<i64: 4, 1>}, {pipeline_mode = #tpu.pipeline_mode<synchronous>, transform_indices = @transform_2, window_bounds = array<i64: 4, 1>}, {transform_indices = @transform_3, window_bounds = array<i64: 1, 4, 384>}, {transform_indices = @transform_4, window_bounds = array<i64: 1, 4, 384>}]} {
    %c0 = arith.constant 0 : index
    %c0_0 = arith.constant 0 : index
    %c0_1 = arith.constant 0 : index
    %0 = vector.load %arg2[%c0, %c0_0, %c0_1] : memref<1x4x384xf32, #tpu.memory_space<vmem>>, vector<1x4x384xf32>
    %1 = vector.shape_cast %0 : vector<1x4x384xf32> to vector<4x384xf32>
    %c0_2 = arith.constant 0 : index
    %c0_3 = arith.constant 0 : index
    %2 = vector.load %arg3[%c0_2, %c0_3] : memref<4x1xf32, #tpu.memory_space<vmem>>, vector<4x1xf32>
    %3 = vector.broadcast %2 : vector<4x1xf32> to vector<4x384xf32>
    %4 = arith.mulf %1, %3 : vector<4x384xf32>
    %c0_4 = arith.constant 0 : index
    %c0_5 = arith.constant 0 : index
    %5 = vector.load %arg4[%c0_4, %c0_5] : memref<4x1xf32, #tpu.memory_space<vmem>>, vector<4x1xf32>
    %6 = vector.broadcast %5 : vector<4x1xf32> to vector<4x384xf32>
    %7 = arith.addf %4, %6 : vector<4x384xf32>
    %c0_6 = arith.constant 0 : index
    %c0_7 = arith.constant 0 : index
    %c0_8 = arith.constant 0 : index
    %8 = vector.load %arg5[%c0_6, %c0_7, %c0_8] : memref<1x4x384xf32, #tpu.memory_space<vmem>>, vector<1x4x384xf32>
    %9 = vector.shape_cast %8 : vector<1x4x384xf32> to vector<4x384xf32>
    %10 = arith.addf %7, %9 : vector<4x384xf32>
    %cst = arith.constant 0.000000e+00 : f32
    %11 = vector.broadcast %cst : f32 to vector<4x384xf32>
    %12 = arith.maximumf %10, %11 : vector<4x384xf32>
    %c0_9 = arith.constant 0 : index
    %c0_10 = arith.constant 0 : index
    %c0_11 = arith.constant 0 : index
    %13 = vector.load %arg6[%c0_9, %c0_10, %c0_11] : memref<1x4x384xf32, #tpu.memory_space<vmem>>, vector<1x4x384xf32>
    %14 = vector.shape_cast %13 : vector<1x4x384xf32> to vector<4x384xf32>
    %15 = vector.shape_cast %12 : vector<4x384xf32> to vector<1x4x384xf32>
    tpu.vector_store %arg6[%c0_9, %c0_10, %c0_11], %15 {strides = array<i32>} : memref<1x4x384xf32, #tpu.memory_space<vmem>>, vector<1x4x384xf32>,
    return
  }
  func.func @transform_0(%arg0: i32, %arg1: i32) -> (i32, i32, i32) {
    %c0_i32 = arith.constant 0 : i32
    %c0_i32_0 = arith.constant 0 : i32
    return %arg0, %c0_i32, %arg1 : i32, i32, i32
  }
  func.func @transform_1(%arg0: i32, %arg1: i32) -> (i32, i32) {
    %c0_i32 = arith.constant 0 : i32
    %c0_i32_0 = arith.constant 0 : i32
    %c0_i32_1 = arith.constant 0 : i32
    return %c0_i32, %c0_i32_0 : i32, i32
  }
  func.func @transform_2(%arg0: i32, %arg1: i32) -> (i32, i32) {
    %c0_i32 = arith.constant 0 : i32
    %c0_i32_0 = arith.constant 0 : i32
    %c0_i32_1 = arith.constant 0 : i32
    return %c0_i32, %c0_i32_0 : i32, i32
  }
  func.func @transform_3(%arg0: i32, %arg1: i32) -> (i32, i32, i32) {
    %c0_i32 = arith.constant 0 : i32
    %c0_i32_0 = arith.constant 0 : i32
    return %arg0, %c0_i32, %arg1 : i32, i32, i32
  }
  func.func @transform_4(%arg0: i32, %arg1: i32) -> (i32, i32, i32) {
    %c0_i32 = arith.constant 0 : i32
    %c0_i32_0 = arith.constant 0 : i32
    return %arg0, %c0_i32, %arg1 : i32, i32, i32
  }
}

</mosaic_0001>

<llo_original>
// kernel: basic_block_forward.5
$region0: #{basic_block_forward.5}
  #allocation0 [shape = 'u32[]', space=smem, size = 0x4, offset = 0x4, fixed_abs, tag = 'smem constant byte address 0x4 - core index']
  #allocation1 [shape = 'u32[144,128]{1,0:T(1,128)}', space=vmem, size = 0x12000, scoped, tag = 'internal scratch']
  %s0 = inlined_call_operand.vmem [shape: f32[2,4,384], index: 0, kind: input, shape index: {}]
  %s1 = inlined_call_operand.vmem [shape: f32[4,1], index: 1, kind: input, shape index: {}]
  %s2 = inlined_call_operand.vmem [shape: f32[4,1], index: 2, kind: input, shape index: {}]
  %s3 = inlined_call_operand.vmem [shape: f32[2,4,384], index: 3, kind: input, shape index: {}]
  %s4 = inlined_call_operand.vmem [shape: f32[2,4,384], index: 4, kind: output, shape index: {}]
  %s5 = sld [smem:[#allocation0]]
  $region49: #{basic_block_forward.5} parent=0
    _
  %s7 = ssub.s32 1, %s5
  %s8 = scalar_select 0, %s7, %s5
  loop: start=0, step=1, limit=4
  $region2: #{basic_block_forward.5} parent=0 // loop_pre_header
    _
  $region3: #{basic_block_forward.5} parent=0 // loop_header
    %s10 = sphi 0, %s14
    %p11 = scmp.ge.s32.totalorder %s10, 4
    %s17 = sphi 0, %s29
    %s18 = sphi 0, %s25
    %s19 = sphi 0, %s17
    %s20 = sphi 0, %s18
    %s21 = sphi 0, %s19
    %s22 = sphi 0, %s20
    %s34 = sphi 0, %s36
    %s37 = sphi 0, %s34
    %s38 = sphi 0, %s37
    %s54 = sphi 0, %s38
    %s58 = sphi 0, %s58
    %s60 = sphi 0, %s58
    %s61 = sphi 0, %s60
    %s75 = sphi 0, %s61
    %s79 = sphi 0, %s79
    %s81 = sphi 0, %s79
    %s82 = sphi 0, %s81
    %s96 = sphi 0, %s82
    %s104 = sphi 0, %s106
    %s107 = sphi 0, %s104
    %s108 = sphi 0, %s107
    %s124 = sphi 0, %s108
    %s132 = sphi 0, %s134
    %s135 = sphi 0, %s132
    %s136 = sphi 0, %s135
    %s152 = sphi 0, %s136
  $region4: #{basic_block_forward.5} parent=0 // loop_header_branch
    %13 = sbr.rel (%p11) target = $region8
  $region5: #{basic_block_forward.5} parent=0 // loop_body
    %s15 = ssub.s32 %s10, 1
    %s16 = ssub.s32 %s10, 2
    %s23 = sadd.s32 1, %s18
    %p24 = scmp.ge.s32.totalorder %s23, 1
    %s25 = scalar_select %p24, 0, %s23
    %s26 = sadd.s32 1, %s17
    %s27 = scalar_select %p24, %s26, %s17
    %p28 = scmp.ge.s32.totalorder %s27, 2
    %s29 = scalar_select %p28, 0, %s27
    %s30 = ssub.s32 %s17, %s29
    %s31 = ssub.s32 %s18, %s25
    %s32 = sor.u32 %s30, %s31
    %p33 = scmp.eq.s32.totalorder %s32, 0
    %s35 = sadd.s32 %s34, 1
    %s36 = scalar_select %p33, %s34, %s35
    %p39 = pneg %p33
    %p40 = scmp.eq.s32.totalorder %s10, 1
    %p41 = por %p39, %p40
    %p42 = scmp.ne.s32.totalorder %s34, %s37
    %p43 = scmp.eq.s32.totalorder %s10, 0
    %p44 = por %p42, %p43
    %p45 = scmp.ne.s32.totalorder %s34, %s37
    %p46 = scmp.eq.s32.totalorder %s15, 1
    %p47 = por %p45, %p46
    %p48 = scmp.ne.s32.totalorder %s37, %s38
    %p49 = scmp.eq.s32.totalorder %s15, 0
    %p50 = por %p48, %p49
    %p51 = scmp.ne.s32.totalorder %s37, %s38
    %p52 = scmp.eq.s32.totalorder %s16, 1
    %p53 = por %p51, %p52
    %p55 = scmp.ne.s32.totalorder %s38, %s54
    %p56 = scmp.eq.s32.totalorder %s16, 0
    %p57 = por %p55, %p56
    %s59 = sadd.s32 %s58, 1
    %p62 = scmp.eq.s32.totalorder %s10, 1
    %p63 = scmp.ne.s32.totalorder %s58, %s60
    %p64 = scmp.eq.s32.totalorder %s10, 0
    %p65 = por %p63, %p64
    %p66 = scmp.ne.s32.totalorder %s58, %s60
    %p67 = scmp.eq.s32.totalorder %s15, 1
    %p68 = por %p66, %p67
    %p69 = scmp.ne.s32.totalorder %s60, %s61
    %p70 = scmp.eq.s32.totalorder %s15, 0
    %p71 = por %p69, %p70
    %p72 = scmp.ne.s32.totalorder %s60, %s61
    %p73 = scmp.eq.s32.totalorder %s16, 1
    %p74 = por %p72, %p73
    %p76 = scmp.ne.s32.totalorder %s61, %s75
    %p77 = scmp.eq.s32.totalorder %s16, 0
    %p78 = por %p76, %p77
    %s80 = sadd.s32 %s79, 1
    %p83 = scmp.eq.s32.totalorder %s10, 1
    %p84 = scmp.ne.s32.totalorder %s79, %s81
    %p85 = scmp.eq.s32.totalorder %s10, 0
    %p86 = por %p84, %p85
    %p87 = scmp.ne.s32.totalorder %s79, %s81
    %p88 = scmp.eq.s32.totalorder %s15, 1
    %p89 = por %p87, %p88
    %p90 = scmp.ne.s32.totalorder %s81, %s82
    %p91 = scmp.eq.s32.totalorder %s15, 0
    %p92 = por %p90, %p91
    %p93 = scmp.ne.s32.totalorder %s81, %s82
    %p94 = scmp.eq.s32.totalorder %s16, 1
    %p95 = por %p93, %p94
    %p97 = scmp.ne.s32.totalorder %s82, %s96
    %p98 = scmp.eq.s32.totalorder %s16, 0
    %p99 = por %p97, %p98
    %s100 = ssub.s32 %s17, %s29
    %s101 = ssub.s32 %s18, %s25
    %s102 = sor.u32 %s100, %s101
    %p103 = scmp.eq.s32.totalorder %s102, 0
    %s105 = sadd.s32 %s104, 1
    %s106 = scalar_select %p103, %s104, %s105
    %p109 = pneg %p103
    %p110 = scmp.eq.s32.totalorder %s10, 1
    %p111 = por %p109, %p110
    %p112 = scmp.ne.s32.totalorder %s104, %s107
    %p113 = scmp.eq.s32.totalorder %s10, 0
    %p114 = por %p112, %p113
    %p115 = scmp.ne.s32.totalorder %s104, %s107
    %p116 = scmp.eq.s32.totalorder %s15, 1
    %p117 = por %p115, %p116
    %p118 = scmp.ne.s32.totalorder %s107, %s108
    %p119 = scmp.eq.s32.totalorder %s15, 0
    %p120 = por %p118, %p119
    %p121 = scmp.ne.s32.totalorder %s107, %s108
    %p122 = scmp.eq.s32.totalorder %s16, 1
    %p123 = por %p121, %p122
    %p125 = scmp.ne.s32.totalorder %s108, %s124
    %p126 = scmp.eq.s32.totalorder %s16, 0
    %p127 = por %p125, %p126
    %s128 = ssub.s32 %s17, %s29
    %s129 = ssub.s32 %s18, %s25
    %s130 = sor.u32 %s128, %s129
    %p131 = scmp.eq.s32.totalorder %s130, 0
    %s133 = sadd.s32 %s132, 1
    %s134 = scalar_select %p131, %s132, %s133
    %p137 = pneg %p131
    %p138 = scmp.eq.s32.totalorder %s10, 1
    %p139 = por %p137, %p138
    %p140 = scmp.ne.s32.totalorder %s132, %s135
    %p141 = scmp.eq.s32.totalorder %s10, 0
    %p142 = por %p140, %p141
    %p143 = scmp.ne.s32.totalorder %s132, %s135
    %p144 = scmp.eq.s32.totalorder %s15, 1
    %p145 = por %p143, %p144
    %p146 = scmp.ne.s32.totalorder %s135, %s136
    %p147 = scmp.eq.s32.totalorder %s15, 0
    %p148 = por %p146, %p147
    %p149 = scmp.ne.s32.totalorder %s135, %s136
    %p150 = scmp.eq.s32.totalorder %s16, 1
    %p151 = por %p149, %p150
    %p153 = scmp.ne.s32.totalorder %s136, %s152
    %p154 = scmp.eq.s32.totalorder %s16, 0
    %p155 = por %p153, %p154
    %p156 = scmp.le.s32.totalorder 1, %s10
    %p157 = scmp.lt.s32.totalorder %s10, 3
    %p158 = pnand %p156, %p157
    %p159 = pneg %p158
    // Predicated region
    $region9: #{basic_block_forward.5} parent=5 // pred_check
      _
    $region10: #{basic_block_forward.5} parent=5 // pred_check_branch
      %161 = sbr.rel (%p158) target = $region12
    $region11: #{basic_block_forward.5} parent=5 // pred_region
      %s162 = ssub.s32 %s10, 1
      // Predicated region
      $region13: #{basic_block_forward.5} parent=11 // pred_check
        %p163 = pneg %p71
      $region14: #{basic_block_forward.5} parent=11 // pred_check_branch
        %165 = sbr.rel (%p163) target = $region16
      $region15: #{basic_block_forward.5} parent=11 // pred_region
        _
      $region16: #{basic_block_forward.5} parent=11 // pred_fallthru
        _
      // Predicated region
      $region17: #{basic_block_forward.5} parent=11 // pred_check
        %p166 = pneg %p92
      $region18: #{basic_block_forward.5} parent=11 // pred_check_branch
        %168 = sbr.rel (%p166) target = $region20
      $region19: #{basic_block_forward.5} parent=11 // pred_region
        _
      $region20: #{basic_block_forward.5} parent=11 // pred_fallthru
        _
    $region12: #{basic_block_forward.5} parent=5 // pred_fallthru
      _
    %p169 = scmp.lt.s32.totalorder %s10, 2
    // Predicated region
    $region21: #{basic_block_forward.5} parent=5 // pred_check
      %p170 = pneg %p169
    $region22: #{basic_block_forward.5} parent=5 // pred_check_branch
      %172 = sbr.rel (%p170) target = $region24
    $region23: #{basic_block_forward.5} parent=5 // pred_region
      // Predicated region
      $region25: #{basic_block_forward.5} parent=23 // pred_check
        %p173 = pneg %p44
      $region26: #{basic_block_forward.5} parent=23 // pred_check_branch
        %175 = sbr.rel (%p173) target = $region28
      $region27: #{basic_block_forward.5} parent=23 // pred_region
        %s176 = smul.u32 3, %s18
        %p177 = scmp.lt.s32.totalorder %s17, 1
        %s178 = scalar_select %p177, %s17, 1
        %p179 = scmp.lt.s32.totalorder %s176, 2
        %s180 = scalar_select %p179, %s176, 2
        %s181 = smul.addr %s178, 3
        %s182 = sadd.s32 %s180, %s181
        %s183 = smul.addr %s182, 4
        %s184 = scalar_lea.vmem %s0, %s183
        %s185 = smul.u32 3, %s18
      $region28: #{basic_block_forward.5} parent=23 // pred_fallthru
        _
      // Predicated region
      $region29: #{basic_block_forward.5} parent=23 // pred_check
        %p186 = pneg %p114
      $region30: #{basic_block_forward.5} parent=23 // pred_check_branch
        %188 = sbr.rel (%p186) target = $region32
      $region31: #{basic_block_forward.5} parent=23 // pred_region
        %s189 = smul.u32 3, %s18
        %p190 = scmp.lt.s32.totalorder %s17, 1
        %s191 = scalar_select %p190, %s17, 1
        %p192 = scmp.lt.s32.totalorder %s189, 2
        %s193 = scalar_select %p192, %s189, 2
        %s194 = smul.addr %s191, 3
        %s195 = sadd.s32 %s193, %s194
        %s196 = smul.addr %s195, 4
        %s197 = scalar_lea.vmem %s3, %s196
        %s198 = smul.u32 3, %s18
      $region32: #{basic_block_forward.5} parent=23 // pred_fallthru
        _
    $region24: #{basic_block_forward.5} parent=5 // pred_fallthru
      _
    %p199 = scmp.le.s32.totalorder 1, %s10
    %p200 = scmp.lt.s32.totalorder %s10, 3
    %p201 = pnand %p199, %p200
    %p202 = pneg %p201
    // Predicated region
    $region33: #{basic_block_forward.5} parent=5 // pred_check
      _
    $region34: #{basic_block_forward.5} parent=5 // pred_check_branch
      %204 = sbr.rel (%p201) target = $region36
    $region35: #{basic_block_forward.5} parent=5 // pred_region
      %s205 = ssub.s32 %s10, 1
      %s206 = smul.u32 3, %s20
      %p207 = scmp.lt.s32.totalorder %s19, 1
      %s208 = scalar_select %p207, %s19, 1
      %p209 = scmp.lt.s32.totalorder %s206, 2
      %s210 = scalar_select %p209, %s206, 2
      %s211 = smul.addr %s208, 3
      %s212 = sadd.s32 %s210, %s211
      %s213 = smul.addr %s212, 4
      %s214 = scalar_lea.vmem %s0, %s213
      %p215 = pneg %p50
      %p216 = pneg %p47
      %p217 = pneg %p71
      %p218 = pneg %p68
      %p219 = pneg %p92
      %p220 = pneg %p89
      %s221 = smul.u32 3, %s20
      %p222 = scmp.lt.s32.totalorder %s19, 1
      %s223 = scalar_select %p222, %s19, 1
      %p224 = scmp.lt.s32.totalorder %s221, 2
      %s225 = scalar_select %p224, %s221, 2
      %s226 = smul.addr %s223, 3
      %s227 = sadd.s32 %s225, %s226
      %s228 = smul.addr %s227, 4
      %s229 = scalar_lea.vmem %s3, %s228
      %p230 = pneg %p120
      %p231 = pneg %p117
      %p232 = pneg %p148
      %p233 = pneg %p145
      %s234 = smul.u32 3, %s20
      %p235 = scmp.lt.s32.totalorder %s19, 1
      %s236 = scalar_select %p235, %s19, 1
      %p237 = scmp.lt.s32.totalorder %s234, 2
      %s238 = scalar_select %p237, %s234, 2
      %s239 = smul.addr %s236, 3
      %s240 = sadd.s32 %s238, %s239
      %s241 = smul.addr %s240, 4
      %s242 = scalar_lea.vmem %s4, %s241
      %s243 = smul.u32 3, %s20
      %p244 = scmp.lt.s32.totalorder %s19, 1
      %s245 = scalar_select %p244, %s19, 1
      %p246 = scmp.lt.s32.totalorder %s243, 2
      %s247 = scalar_select %p246, %s243, 2
      %s248 = smul.addr %s245, 3
      %s249 = sadd.s32 %s247, %s248
      %s250 = smul.addr %s249, 4
      %s251 = scalar_lea.vmem %s0, %s250
      %s252 = smul.u32 3, %s20
      %s253 = smul.u32 3, %s20
      %p254 = scmp.lt.s32.totalorder %s19, 1
      %s255 = scalar_select %p254, %s19, 1
      %p256 = scmp.lt.s32.totalorder %s253, 2
      %s257 = scalar_select %p256, %s253, 2
      %s258 = smul.addr %s255, 3
      %s259 = sadd.s32 %s257, %s258
      %s260 = smul.addr %s259, 4
      %s261 = scalar_lea.vmem %s3, %s260
      %s262 = smul.u32 3, %s20
      %s263 = smul.u32 3, %s20
      %p264 = scmp.lt.s32.totalorder %s19, 1
      %s265 = scalar_select %p264, %s19, 1
      %p266 = scmp.lt.s32.totalorder %s263, 2
      %s267 = scalar_select %p266, %s263, 2
      %s268 = smul.addr %s265, 3
      %s269 = sadd.s32 %s267, %s268
      %s270 = smul.addr %s269, 4
      %s271 = scalar_lea.vmem %s4, %s270
      %s272 = smul.u32 3, %s20
      %v273 = vld [vmem:[%s251] sm:$0xff]
      %v274 = vld [vmem:[%s251 + $0x8] sm:$0xf]
      %v275 = vld [vmem:[%s1] sm:$0xf]
      %277 = vset.pattern.permute.xlu0 0
      %278 = vperm.xlu0 %277, %v275
      %v279 = vpop.permute.xlu0 %278
      %v281 = vunpack.c.l.s4 839922192
      %v282 = vunpack.c.0.s8 %v281
      %v283 = vlaneseq
      %v284 = vshrl.u32 %v283, 7
      %v285 = vsub.s32 %v282, %v284
      %v286 = vrot.slane %v279, %v285
      %v288 = vmul.f32 %v273, %v286
      %v289 = vmul.f32 %v274, %v286
      %v290 = vld [vmem:[%s2] sm:$0xf]
      %292 = vset.pattern.permute.xlu0 0
      %293 = vperm.xlu0 %292, %v290
      %v294 = vpop.permute.xlu0 %293
      %v296 = vunpack.c.l.s4 839922192
      %v297 = vunpack.c.0.s8 %v296
      %v298 = vlaneseq
      %v299 = vshrl.u32 %v298, 7
      %v300 = vsub.s32 %v297, %v299
      %v301 = vrot.slane %v294, %v300
      %v303 = vadd.f32 %v288, %v301
      %v304 = vadd.f32 %v289, %v301
      %v305 = vld [vmem:[%s261] sm:$0xff]
      %v306 = vld [vmem:[%s261 + $0x8] sm:$0xf]
      %v307 = vadd.f32 %v303, %v305
      %v308 = vadd.f32 %v304, %v306
      %v309 = vmax.f32 %v307, 0.0
      %v310 = vmax.f32 %v308, 0.0
      %311 = vst [vmem:[%s271] sm:$0xff] %v309
      %312 = vst [vmem:[%s271 + $0x8] sm:$0xf] %v310
      %s313 = smul.u32 3, %s20
      %p314 = scmp.lt.s32.totalorder %s19, 1
      %s315 = scalar_select %p314, %s19, 1
      %p316 = scmp.lt.s32.totalorder %s313, 2
      %s317 = scalar_select %p316, %s313, 2
      %s318 = smul.addr %s315, 3
      %s319 = sadd.s32 %s317, %s318
      %s320 = smul.addr %s319, 4
      %s321 = scalar_lea.vmem %s4, %s320
      // Predicated region
      $region37: #{basic_block_forward.5} parent=35 // pred_check
        %p322 = pneg %p145
      $region38: #{basic_block_forward.5} parent=35 // pred_check_branch
        %324 = sbr.rel (%p322) target = $region40
      $region39: #{basic_block_forward.5} parent=35 // pred_region
        %s325 = smul.u32 3, %s20
      $region40: #{basic_block_forward.5} parent=35 // pred_fallthru
        _
    $region36: #{basic_block_forward.5} parent=5 // pred_fallthru
      _
    %p326 = scmp.le.s32.totalorder 2, %s10
    // Predicated region
    $region41: #{basic_block_forward.5} parent=5 // pred_check
      %p327 = pneg %p326
    $region42: #{basic_block_forward.5} parent=5 // pred_check_branch
      %329 = sbr.rel (%p327) target = $region44
    $region43: #{basic_block_forward.5} parent=5 // pred_region
      %s330 = ssub.s32 %s10, 2
      // Predicated region
      $region45: #{basic_block_forward.5} parent=43 // pred_check
        %p331 = pneg %p151
      $region46: #{basic_block_forward.5} parent=43 // pred_check_branch
        %333 = sbr.rel (%p331) target = $region48
      $region47: #{basic_block_forward.5} parent=43 // pred_region
        %s334 = smul.u32 3, %s22
        %p335 = scmp.lt.s32.totalorder %s21, 1
        %s336 = scalar_select %p335, %s21, 1
        %p337 = scmp.lt.s32.totalorder %s334, 2
        %s338 = scalar_select %p337, %s334, 2
        %s339 = smul.addr %s336, 3
        %s340 = sadd.s32 %s338, %s339
        %s341 = smul.addr %s340, 4
        %s342 = scalar_lea.vmem %s4, %s341
      $region48: #{basic_block_forward.5} parent=43 // pred_fallthru
        _
    $region44: #{basic_block_forward.5} parent=5 // pred_fallthru
      _
  $region6: #{basic_block_forward.5} parent=0 // loop_footer
    %s14 = sadd.s32 1, %s10
  $region7: #{basic_block_forward.5} parent=0 // loop_footer_branch
    %9 = sbr.rel target = $region3
  $region8: #{basic_block_forward.5} parent=0 // loop_exit
    _

// kernel: basic_block_forward.3
$region0: #{basic_block_forward.3}
  #allocation0 [shape = 'u32[]', space=smem, size = 0x4, offset = 0x4, fixed_abs, tag = 'smem constant byte address 0x4 - core index']
  #allocation1 [shape = 'u32[144,128]{1,0:T(1,128)}', space=vmem, size = 0x12000, scoped, tag = 'internal scratch']
  %s0 = inlined_call_operand.vmem [shape: f32[2,4,384], index: 0, kind: input, shape index: {}]
  %s1 = inlined_call_operand.vmem [shape: bf16[9,4,4], index: 1, kind: input, shape index: {}]
  %s2 = inlined_call_operand.vmem [shape: f32[1,384], index: 2, kind: input, shape index: {}]
  %s3 = inlined_call_operand.vmem [shape: f32[2,4,384], index: 3, kind: output, shape index: {0}]
  %s4 = inlined_call_operand.vmem [shape: f32[2,4,1], index: 4, kind: output, shape index: {1}]
  %s5 = inlined_call_operand.vmem [shape: f32[2,4,1], index: 5, kind: output, shape index: {2}]
  %6 = xla_tuple %s3, %s4, %s5
  %s7 = sld [smem:[#allocation0]]
  $region61: #{basic_block_forward.3} parent=0
    _
  %s9 = ssub.s32 1, %s7
  %s10 = scalar_select 0, %s9, %s7
  loop: start=0, step=1, limit=4
  $region2: #{basic_block_forward.3} parent=0 // loop_pre_header
    _
  $region3: #{basic_block_forward.3} parent=0 // loop_header
    %s12 = sphi 0, %s16
    %p13 = scmp.ge.s32.totalorder %s12, 4
    %s22 = sphi 0, %s24
    %s25 = sphi 0, %s22
    %s26 = sphi 0, %s25
    %s42 = sphi 0, %s26
    %s46 = sphi 0, %s46
    %s48 = sphi 0, %s46
    %s49 = sphi 0, %s48
    %s63 = sphi 0, %s49
    %s67 = sphi 0, %s67
    %s69 = sphi 0, %s67
    %s70 = sphi 0, %s69
    %s84 = sphi 0, %s70
    %s90 = sphi 0, %s92
    %s93 = sphi 0, %s90
    %s94 = sphi 0, %s93
    %s110 = sphi 0, %s94
    %s116 = sphi 0, %s118
    %s119 = sphi 0, %s116
    %s120 = sphi 0, %s119
    %s136 = sphi 0, %s120
    %s142 = sphi 0, %s144
    %s145 = sphi 0, %s142
    %s146 = sphi 0, %s145
    %s162 = sphi 0, %s146
  $region4: #{basic_block_forward.3} parent=0 // loop_header_branch
    %15 = sbr.rel (%p13) target = $region8
  $region5: #{basic_block_forward.3} parent=0 // loop_body
    %s17 = ssub.s32 %s12, 1
    %s18 = ssub.s32 %s12, 2
    %s19 = sadd.s32 %s12, 1
    %s20 = ssub.s32 %s12, %s19
    %p21 = scmp.eq.s32.totalorder %s20, 0
    %s23 = sadd.s32 %s22, 1
    %s24 = scalar_select %p21, %s22, %s23
    %p27 = pneg %p21
    %p28 = scmp.eq.s32.totalorder %s12, 1
    %p29 = por %p27, %p28
    %p30 = scmp.ne.s32.totalorder %s22, %s25
    %p31 = scmp.eq.s32.totalorder %s12, 0
    %p32 = por %p30, %p31
    %p33 = scmp.ne.s32.totalorder %s22, %s25
    %p34 = scmp.eq.s32.totalorder %s17, 1
    %p35 = por %p33, %p34
    %p36 = scmp.ne.s32.totalorder %s25, %s26
    %p37 = scmp.eq.s32.totalorder %s17, 0
    %p38 = por %p36, %p37
    %p39 = scmp.ne.s32.totalorder %s25, %s26
    %p40 = scmp.eq.s32.totalorder %s18, 1
    %p41 = por %p39, %p40
    %p43 = scmp.ne.s32.totalorder %s26, %s42
    %p44 = scmp.eq.s32.totalorder %s18, 0
    %p45 = por %p43, %p44
    %s47 = sadd.s32 %s46, 1
    %p50 = scmp.eq.s32.totalorder %s12, 1
    %p51 = scmp.ne.s32.totalorder %s46, %s48
    %p52 = scmp.eq.s32.totalorder %s12, 0
    %p53 = por %p51, %p52
    %p54 = scmp.ne.s32.totalorder %s46, %s48
    %p55 = scmp.eq.s32.totalorder %s17, 1
    %p56 = por %p54, %p55
    %p57 = scmp.ne.s32.totalorder %s48, %s49
    %p58 = scmp.eq.s32.totalorder %s17, 0
    %p59 = por %p57, %p58
    %p60 = scmp.ne.s32.totalorder %s48, %s49
    %p61 = scmp.eq.s32.totalorder %s18, 1
    %p62 = por %p60, %p61
    %p64 = scmp.ne.s32.totalorder %s49, %s63
    %p65 = scmp.eq.s32.totalorder %s18, 0
    %p66 = por %p64, %p65
    %s68 = sadd.s32 %s67, 1
    %p71 = scmp.eq.s32.totalorder %s12, 1
    %p72 = scmp.ne.s32.totalorder %s67, %s69
    %p73 = scmp.eq.s32.totalorder %s12, 0
    %p74 = por %p72, %p73
    %p75 = scmp.ne.s32.totalorder %s67, %s69
    %p76 = scmp.eq.s32.totalorder %s17, 1
    %p77 = por %p75, %p76
    %p78 = scmp.ne.s32.totalorder %s69, %s70
    %p79 = scmp.eq.s32.totalorder %s17, 0
    %p80 = por %p78, %p79
    %p81 = scmp.ne.s32.totalorder %s69, %s70
    %p82 = scmp.eq.s32.totalorder %s18, 1
    %p83 = por %p81, %p82
    %p85 = scmp.ne.s32.totalorder %s70, %s84
    %p86 = scmp.eq.s32.totalorder %s18, 0
    %p87 = por %p85, %p86
    %s88 = ssub.s32 %s12, %s19
    %p89 = scmp.eq.s32.totalorder %s88, 0
    %s91 = sadd.s32 %s90, 1
    %s92 = scalar_select %p89, %s90, %s91
    %p95 = pneg %p89
    %p96 = scmp.eq.s32.totalorder %s12, 1
    %p97 = por %p95, %p96
    %p98 = scmp.ne.s32.totalorder %s90, %s93
    %p99 = scmp.eq.s32.totalorder %s12, 0
    %p100 = por %p98, %p99
    %p101 = scmp.ne.s32.totalorder %s90, %s93
    %p102 = scmp.eq.s32.totalorder %s17, 1
    %p103 = por %p101, %p102
    %p104 = scmp.ne.s32.totalorder %s93, %s94
    %p105 = scmp.eq.s32.totalorder %s17, 0
    %p106 = por %p104, %p105
    %p107 = scmp.ne.s32.totalorder %s93, %s94
    %p108 = scmp.eq.s32.totalorder %s18, 1
    %p109 = por %p107, %p108
    %p111 = scmp.ne.s32.totalorder %s94, %s110
    %p112 = scmp.eq.s32.totalorder %s18, 0
    %p113 = por %p111, %p112
    %s114 = ssub.s32 %s12, %s19
    %p115 = scmp.eq.s32.totalorder %s114, 0
    %s117 = sadd.s32 %s116, 1
    %s118 = scalar_select %p115, %s116, %s117
    %p121 = pneg %p115
    %p122 = scmp.eq.s32.totalorder %s12, 1
    %p123 = por %p121, %p122
    %p124 = scmp.ne.s32.totalorder %s116, %s119
    %p125 = scmp.eq.s32.totalorder %s12, 0
    %p126 = por %p124, %p125
    %p127 = scmp.ne.s32.totalorder %s116, %s119
    %p128 = scmp.eq.s32.totalorder %s17, 1
    %p129 = por %p127, %p128
    %p130 = scmp.ne.s32.totalorder %s119, %s120
    %p131 = scmp.eq.s32.totalorder %s17, 0
    %p132 = por %p130, %p131
    %p133 = scmp.ne.s32.totalorder %s119, %s120
    %p134 = scmp.eq.s32.totalorder %s18, 1
    %p135 = por %p133, %p134
    %p137 = scmp.ne.s32.totalorder %s120, %s136
    %p138 = scmp.eq.s32.totalorder %s18, 0
    %p139 = por %p137, %p138
    %s140 = ssub.s32 %s12, %s19
    %p141 = scmp.eq.s32.totalorder %s140, 0
    %s143 = sadd.s32 %s142, 1
    %s144 = scalar_select %p141, %s142, %s143
    %p147 = pneg %p141
    %p148 = scmp.eq.s32.totalorder %s12, 1
    %p149 = por %p147, %p148
    %p150 = scmp.ne.s32.totalorder %s142, %s145
    %p151 = scmp.eq.s32.totalorder %s12, 0
    %p152 = por %p150, %p151
    %p153 = scmp.ne.s32.totalorder %s142, %s145
    %p154 = scmp.eq.s32.totalorder %s17, 1
    %p155 = por %p153, %p154
    %p156 = scmp.ne.s32.totalorder %s145, %s146
    %p157 = scmp.eq.s32.totalorder %s17, 0
    %p158 = por %p156, %p157
    %p159 = scmp.ne.s32.totalorder %s145, %s146
    %p160 = scmp.eq.s32.totalorder %s18, 1
    %p161 = por %p159, %p160
    %p163 = scmp.ne.s32.totalorder %s146, %s162
    %p164 = scmp.eq.s32.totalorder %s18, 0
    %p165 = por %p163, %p164
    %p166 = scmp.le.s32.totalorder 1, %s12
    %p167 = scmp.lt.s32.totalorder %s12, 3
    %p168 = pnand %p166, %p167
    %p169 = pneg %p168
    // Predicated region
    $region9: #{basic_block_forward.3} parent=5 // pred_check
      _
    $region10: #{basic_block_forward.3} parent=5 // pred_check_branch
      %171 = sbr.rel (%p168) target = $region12
    $region11: #{basic_block_forward.3} parent=5 // pred_region
      %s172 = ssub.s32 %s12, 1
      // Predicated region
      $region13: #{basic_block_forward.3} parent=11 // pred_check
        %p173 = pneg %p59
      $region14: #{basic_block_forward.3} parent=11 // pred_check_branch
        %175 = sbr.rel (%p173) target = $region16
      $region15: #{basic_block_forward.3} parent=11 // pred_region
        _
      $region16: #{basic_block_forward.3} parent=11 // pred_fallthru
        _
      // Predicated region
      $region17: #{basic_block_forward.3} parent=11 // pred_check
        %p176 = pneg %p80
      $region18: #{basic_block_forward.3} parent=11 // pred_check_branch
        %178 = sbr.rel (%p176) target = $region20
      $region19: #{basic_block_forward.3} parent=11 // pred_region
        _
      $region20: #{basic_block_forward.3} parent=11 // pred_fallthru
        _
    $region12: #{basic_block_forward.3} parent=5 // pred_fallthru
      _
    %p179 = scmp.lt.s32.totalorder %s12, 2
    // Predicated region
    $region21: #{basic_block_forward.3} parent=5 // pred_check
      %p180 = pneg %p179
    $region22: #{basic_block_forward.3} parent=5 // pred_check_branch
      %182 = sbr.rel (%p180) target = $region24
    $region23: #{basic_block_forward.3} parent=5 // pred_region
      // Predicated region
      $region25: #{basic_block_forward.3} parent=23 // pred_check
        %p183 = pneg %p32
      $region26: #{basic_block_forward.3} parent=23 // pred_check_branch
        %185 = sbr.rel (%p183) target = $region28
      $region27: #{basic_block_forward.3} parent=23 // pred_region
        %p186 = scmp.lt.s32.totalorder %s12, 1
        %s187 = scalar_select %p186, %s12, 1
        %s188 = smul.addr %s187, 3
        %s189 = smul.addr %s188, 4
        %s190 = scalar_lea.vmem %s0, %s189
      $region28: #{basic_block_forward.3} parent=23 // pred_fallthru
        _
    $region24: #{basic_block_forward.3} parent=5 // pred_fallthru
      _
    %p191 = scmp.le.s32.totalorder 1, %s12
    %p192 = scmp.lt.s32.totalorder %s12, 3
    %p193 = pnand %p191, %p192
    %p194 = pneg %p193
    // Predicated region
    $region29: #{basic_block_forward.3} parent=5 // pred_check
      _
    $region30: #{basic_block_forward.3} parent=5 // pred_check_branch
      %196 = sbr.rel (%p193) target = $region32
    $region31: #{basic_block_forward.3} parent=5 // pred_region
      %s197 = ssub.s32 %s12, 1
      %p198 = scmp.lt.s32.totalorder %s17, 1
      %s199 = scalar_select %p198, %s17, 1
      %s200 = smul.addr %s199, 3
      %s201 = smul.addr %s200, 4
      %s202 = scalar_lea.vmem %s0, %s201
      %p203 = pneg %p38
      %p204 = pneg %p35
      %p205 = pneg %p59
      %p206 = pneg %p56
      %p207 = pneg %p80
      %p208 = pneg %p77
      %p209 = pneg %p106
      %p210 = pneg %p103
      %p211 = scmp.lt.s32.totalorder %s17, 1
      %s212 = scalar_select %p211, %s17, 1
      %s213 = smul.addr %s212, 3
      %s214 = smul.addr %s213, 4
      %s215 = scalar_lea.vmem %s3, %s214
      %p216 = pneg %p132
      %p217 = pneg %p129
      %p218 = scmp.lt.s32.totalorder %s17, 1
      %s219 = scalar_select %p218, %s17, 1
      %s220 = smul.addr %s219, 4
      %s221 = scalar_lea.vmem %s4, %s220
      %p222 = pneg %p158
      %p223 = pneg %p155
      %p224 = scmp.lt.s32.totalorder %s17, 1
      %s225 = scalar_select %p224, %s17, 1
      %s226 = smul.addr %s225, 4
      %s227 = scalar_lea.vmem %s5, %s226
      %p228 = scmp.lt.s32.totalorder %s17, 1
      %s229 = scalar_select %p228, %s17, 1
      %s230 = smul.addr %s229, 3
      %s231 = smul.addr %s230, 4
      %s232 = scalar_lea.vmem %s0, %s231
      %p233 = scmp.lt.s32.totalorder %s17, 1
      %s234 = scalar_select %p233, %s17, 1
      %s235 = smul.addr %s234, 3
      %s236 = smul.addr %s235, 4
      %s237 = scalar_lea.vmem %s3, %s236
      %p238 = scmp.lt.s32.totalorder %s17, 1
      %s239 = scalar_select %p238, %s17, 1
      %s240 = smul.addr %s239, 4
      %s241 = scalar_lea.vmem %s4, %s240
      %p242 = scmp.lt.s32.totalorder %s17, 1
      %s243 = scalar_select %p242, %s17, 1
      %s244 = smul.addr %s243, 4
      %s245 = scalar_lea.vmem %s5, %s244
      %v247 = vld [vmem:[%s232] sm:$0xff]
      %v248 = vld [vmem:[%s232 + $0x8] sm:$0xf]
      %v250 = vcombine.high %v247, %v247
      %v252 = vpack.c.bf16 %v247, %v247
      %v253 = vpack.c.bf16 %v250, %v250
      %v254 = vpack.c.bf16 %v248, %v248
      %256 = vrot.lane.b32.xlu0 %v254, 19
      %v257 = vpop.permute.xlu0 %256
      %260 = vrot.lane.b32.xlu0 %v252, 19
      %v261 = vpop.permute.xlu0 %260
      %262 = vrot.lane.b32.xlu0 %v253, 19
      %v263 = vpop.permute.xlu0 %262
      %vm264 = vcmask 154624
      %v265 = vsel %vm264, %v261, %v263
      %v266 = vsel %vm264, %v263, %v257
      %vm267 = vcmask 154624
      %v270 = vsel %vm267, %v257, %v261
      %v271 = vld [vmem:[%s1] sm:$0x3]
      %272 = vrot.lane.b32.xlu0 %v254, 18
      %v273 = vpop.permute.xlu0 %272
      %274 = vrot.lane.b32.xlu0 %v252, 18
      %v275 = vpop.permute.xlu0 %274
      %276 = vrot.lane.b32.xlu0 %v253, 18
      %v277 = vpop.permute.xlu0 %276
      %vm278 = vcmask 146432
      %v279 = vsel %vm278, %v275, %v277
      %v280 = vsel %vm278, %v277, %v273
      %vm281 = vcmask 146432
      %v284 = vsel %vm281, %v273, %v275
      %s285 = scalar_lea.vmem %s1, 2
      %v286 = vld [vmem:[%s285] sm:$0x3]
      %vm287 = vcmask 31744
      %v289 = vsel %vm287, %v286, 0
      %vm291 = vcmask 1041408
      %v292 = vsel %vm291, %v284, 0
      %v295 = vsel %vm291, %v279, 0
      %v298 = vsel %vm291, %v280, 0
      %300 = vmatprep.subr.bf16.mxu0 %v295
      %301 = vmatpush1.bf16.msra.mxu0 %v292
      %302 = vmatprep.subr.bf16.mxu0 0
      %303 = vmatpush1.bf16.msra.mxu0 0
      %304 = vmatprep.subr.bf16.mxu0 0
      %305 = vmatpush1.bf16.msra.mxu0 0
      %306 = vmatprep.subr.bf16.mxu0 0
      %307 = vmatpush1.bf16.msra.mxu0 0
      %308 = vmatprep.subr.bf16.mxu0 0
      %309 = vmatpush1.bf16.msra.mxu0 0
      %310 = vmatprep.subr.bf16.mxu0 0
      %311 = vmatpush1.bf16.msra.mxu0 0
      %312 = vmatprep.subr.bf16.mxu0 0
      %313 = vmatpush1.bf16.msra.mxu0 0
      %314 = vmatprep.subr.bf16.mxu0 0
      %315 = vmatpush1.bf16.msra.mxu0 0
      %316 = vmatprep.subr.bf16.mxu0 0
      %317 = vmatpush1.bf16.msra.mxu0 0
      %318 = vmatprep.subr.bf16.mxu0 0
      %319 = vmatpush1.bf16.msra.mxu0 0
      %320 = vmatprep.subr.bf16.mxu0 0
      %321 = vmatpush1.bf16.msra.mxu0 0
      %322 = vmatprep.subr.bf16.mxu0 0
      %323 = vmatpush1.bf16.msra.mxu0 0
      %324 = vmatprep.subr.bf16.mxu0 0
      %325 = vmatpush1.bf16.msra.mxu0 0
      %326 = vmatprep.subr.bf16.mxu0 0
      %327 = vmatpush1.bf16.msra.mxu0 0
      %328 = vmatprep.subr.bf16.mxu0 0
      %329 = vmatpush1.bf16.msra.mxu0 0
      %330 = vmatprep.subr.bf16.mxu0 0
      %331 = vmatpush1.bf16.msra.mxu0 0
      %332 = vmatprep.mubr.bf16.mxu0 0
      %333 = vmatmul.mubr.bf16.gmra.mrb[0].mxu0 %v289
      %v334 = vpop.f32.mrb[0].mxu0
      %v335 = vadd.f32 0.0, %v334
      %v336 = vpop.f32.mrb[0].mxu0
      %v337 = vadd.f32 0.0, %v336
      %v338 = vpop.f32.mrb[0].mxu0
      %v339 = vpop.f32.mrb[0].mxu0
      %340 = vdwg.mxu0
      %341 = vmatprep.subr.bf16.mxu0 0
      %342 = vmatpush1.bf16.msra.mxu0 %v298
      %343 = vmatprep.subr.bf16.mxu0 0
      %344 = vmatpush1.bf16.msra.mxu0 0
      %345 = vmatprep.subr.bf16.mxu0 0
      %346 = vmatpush1.bf16.msra.mxu0 0
      %347 = vmatprep.subr.bf16.mxu0 0
      %348 = vmatpush1.bf16.msra.mxu0 0
      %349 = vmatprep.subr.bf16.mxu0 0
      %350 = vmatpush1.bf16.msra.mxu0 0
      %351 = vmatprep.subr.bf16.mxu0 0
      %352 = vmatpush1.bf16.msra.mxu0 0
      %353 = vmatprep.subr.bf16.mxu0 0
      %354 = vmatpush1.bf16.msra.mxu0 0
      %355 = vmatprep.subr.bf16.mxu0 0
      %356 = vmatpush1.bf16.msra.mxu0 0
      %357 = vmatprep.subr.bf16.mxu0 0
      %358 = vmatpush1.bf16.msra.mxu0 0
      %359 = vmatprep.subr.bf16.mxu0 0
      %360 = vmatpush1.bf16.msra.mxu0 0
      %361 = vmatprep.subr.bf16.mxu0 0
      %362 = vmatpush1.bf16.msra.mxu0 0
      %363 = vmatprep.subr.bf16.mxu0 0
      %364 = vmatpush1.bf16.msra.mxu0 0
      %365 = vmatprep.subr.bf16.mxu0 0
      %366 = vmatpush1.bf16.msra.mxu0 0
      %367 = vmatprep.subr.bf16.mxu0 0
      %368 = vmatpush1.bf16.msra.mxu0 0
      %369 = vmatprep.subr.bf16.mxu0 0
      %370 = vmatpush1.bf16.msra.mxu0 0
      %371 = vmatprep.subr.bf16.mxu0 0
      %372 = vmatpush1.bf16.msra.mxu0 0
      %373 = vmatprep.mubr.bf16.mxu0 0
      %374 = vmatmul.mubr.bf16.gmra.mrb[0].mxu0 %v289
      %v375 = vpop.f32.mrb[0].mxu0
      %v376 = vadd.f32 0.0, %v375
      %v377 = vpop.f32.mrb[0].mxu0
      %v378 = vpop.f32.mrb[0].mxu0
      %v379 = vpop.f32.mrb[0].mxu0
      %380 = vdwg.mxu0
      %v382 = vsel %vm287, %v271, 0
      %v384 = vsel %vm291, %v270, 0
      %v387 = vsel %vm291, %v265, 0
      %v390 = vsel %vm291, %v266, 0
      %392 = vmatprep.subr.bf16.mxu0 %v387
      %393 = vmatpush1.bf16.msra.mxu0 %v384
      %394 = vmatprep.subr.bf16.mxu0 0
      %395 = vmatpush1.bf16.msra.mxu0 0
      %396 = vmatprep.subr.bf16.mxu0 0
      %397 = vmatpush1.bf16.msra.mxu0 0
      %398 = vmatprep.subr.bf16.mxu0 0
      %399 = vmatpush1.bf16.msra.mxu0 0
      %400 = vmatprep.subr.bf16.mxu0 0
      %401 = vmatpush1.bf16.msra.mxu0 0
      %402 = vmatprep.subr.bf16.mxu0 0
      %403 = vmatpush1.bf16.msra.mxu0 0
      %404 = vmatprep.subr.bf16.mxu0 0
      %405 = vmatpush1.bf16.msra.mxu0 0
      %406 = vmatprep.subr.bf16.mxu0 0
      %407 = vmatpush1.bf16.msra.mxu0 0
      %408 = vmatprep.subr.bf16.mxu0 0
      %409 = vmatpush1.bf16.msra.mxu0 0
      %410 = vmatprep.subr.bf16.mxu0 0
      %411 = vmatpush1.bf16.msra.mxu0 0
      %412 = vmatprep.subr.bf16.mxu0 0
      %413 = vmatpush1.bf16.msra.mxu0 0
      %414 = vmatprep.subr.bf16.mxu0 0
      %415 = vmatpush1.bf16.msra.mxu0 0
      %416 = vmatprep.subr.bf16.mxu0 0
      %417 = vmatpush1.bf16.msra.mxu0 0
      %418 = vmatprep.subr.bf16.mxu0 0
      %419 = vmatpush1.bf16.msra.mxu0 0
      %420 = vmatprep.subr.bf16.mxu0 0
      %421 = vmatpush1.bf16.msra.mxu0 0
      %422 = vmatprep.subr.bf16.mxu0 0
      %423 = vmatpush1.bf16.msra.mxu0 0
      %424 = vmatprep.mubr.bf16.mxu0 0
      %425 = vmatmul.mubr.bf16.gmra.mrb[0].mxu0 %v382
      %v426 = vpop.f32.mrb[0].mxu0
      %v427 = vadd.f32 %v335, %v426
      %v428 = vpop.f32.mrb[0].mxu0
      %v429 = vadd.f32 %v337, %v428
      %v430 = vpop.f32.mrb[0].mxu0
      %v431 = vpop.f32.mrb[0].mxu0
      %432 = vdwg.mxu0
      %433 = vmatprep.subr.bf16.mxu0 0
      %434 = vmatpush1.bf16.msra.mxu0 %v390
      %435 = vmatprep.subr.bf16.mxu0 0
      %436 = vmatpush1.bf16.msra.mxu0 0
      %437 = vmatprep.subr.bf16.mxu0 0
      %438 = vmatpush1.bf16.msra.mxu0 0
      %439 = vmatprep.subr.bf16.mxu0 0
      %440 = vmatpush1.bf16.msra.mxu0 0
      %441 = vmatprep.subr.bf16.mxu0 0
      %442 = vmatpush1.bf16.msra.mxu0 0
      %443 = vmatprep.subr.bf16.mxu0 0
      %444 = vmatpush1.bf16.msra.mxu0 0
      %445 = vmatprep.subr.bf16.mxu0 0
      %446 = vmatpush1.bf16.msra.mxu0 0
      %447 = vmatprep.subr.bf16.mxu0 0
      %448 = vmatpush1.bf16.msra.mxu0 0
      %449 = vmatprep.subr.bf16.mxu0 0
      %450 = vmatpush1.bf16.msra.mxu0 0
      %451 = vmatprep.subr.bf16.mxu0 0
      %452 = vmatpush1.bf16.msra.mxu0 0
      %453 = vmatprep.subr.bf16.mxu0 0
      %454 = vmatpush1.bf16.msra.mxu0 0
      %455 = vmatprep.subr.bf16.mxu0 0
      %456 = vmatpush1.bf16.msra.mxu0 0
      %457 = vmatprep.subr.bf16.mxu0 0
      %458 = vmatpush1.bf16.msra.mxu0 0
      %459 = vmatprep.subr.bf16.mxu0 0
      %460 = vmatpush1.bf16.msra.mxu0 0
      %461 = vmatprep.subr.bf16.mxu0 0
      %462 = vmatpush1.bf16.msra.mxu0 0
      %463 = vmatprep.subr.bf16.mxu0 0
      %464 = vmatpush1.bf16.msra.mxu0 0
      %465 = vmatprep.mubr.bf16.mxu0 0
      %466 = vmatmul.mubr.bf16.gmra.mrb[0].mxu0 %v382
      %v467 = vpop.f32.mrb[0].mxu0
      %v468 = vadd.f32 %v376, %v467
      %v469 = vpop.f32.mrb[0].mxu0
      %v470 = vpop.f32.mrb[0].mxu0
      %v471 = vpop.f32.mrb[0].mxu0
      %472 = vdwg.mxu0
      %473 = vrot.lane.b32.xlu0 %v254, 17
      %v474 = vpop.permute.xlu0 %473
      %475 = vrot.lane.b32.xlu0 %v252, 17
      %v476 = vpop.permute.xlu0 %475
      %477 = vrot.lane.b32.xlu0 %v253, 17
      %v478 = vpop.permute.xlu0 %477
      %vm479 = vcmask 138240
      %v480 = vsel %vm479, %v476, %v478
      %v481 = vsel %vm479, %v478, %v474
      %vm482 = vcmask 138240
      %v485 = vsel %vm482, %v474, %v476
      %s486 = scalar_lea.vmem %s1, 4
      %v487 = vld [vmem:[%s486] sm:$0x3]
      %v489 = vsel %vm287, %v487, 0
      %v491 = vsel %vm291, %v485, 0
      %v494 = vsel %vm291, %v480, 0
      %v497 = vsel %vm291, %v481, 0
      %499 = vmatprep.subr.bf16.mxu0 %v494
      %500 = vmatpush1.bf16.msra.mxu0 %v491
      %501 = vmatprep.subr.bf16.mxu0 0
      %502 = vmatpush1.bf16.msra.mxu0 0
      %503 = vmatprep.subr.bf16.mxu0 0
      %504 = vmatpush1.bf16.msra.mxu0 0
      %505 = vmatprep.subr.bf16.mxu0 0
      %506 = vmatpush1.bf16.msra.mxu0 0
      %507 = vmatprep.subr.bf16.mxu0 0
      %508 = vmatpush1.bf16.msra.mxu0 0
      %509 = vmatprep.subr.bf16.mxu0 0
      %510 = vmatpush1.bf16.msra.mxu0 0
      %511 = vmatprep.subr.bf16.mxu0 0
      %512 = vmatpush1.bf16.msra.mxu0 0
      %513 = vmatprep.subr.bf16.mxu0 0
      %514 = vmatpush1.bf16.msra.mxu0 0
      %515 = vmatprep.subr.bf16.mxu0 0
      %516 = vmatpush1.bf16.msra.mxu0 0
      %517 = vmatprep.subr.bf16.mxu0 0
      %518 = vmatpush1.bf16.msra.mxu0 0
      %519 = vmatprep.subr.bf16.mxu0 0
      %520 = vmatpush1.bf16.msra.mxu0 0
      %521 = vmatprep.subr.bf16.mxu0 0
      %522 = vmatpush1.bf16.msra.mxu0 0
      %523 = vmatprep.subr.bf16.mxu0 0
      %524 = vmatpush1.bf16.msra.mxu0 0
      %525 = vmatprep.subr.bf16.mxu0 0
      %526 = vmatpush1.bf16.msra.mxu0 0
      %527 = vmatprep.subr.bf16.mxu0 0
      %528 = vmatpush1.bf16.msra.mxu0 0
      %529 = vmatprep.subr.bf16.mxu0 0
      %530 = vmatpush1.bf16.msra.mxu0 0
      %531 = vmatprep.mubr.bf16.mxu0 0
      %532 = vmatmul.mubr.bf16.gmra.mrb[0].mxu0 %v489
      %v533 = vpop.f32.mrb[0].mxu0
      %v534 = vadd.f32 0.0, %v533
      %v535 = vpop.f32.mrb[0].mxu0
      %v536 = vadd.f32 0.0, %v535
      %v537 = vpop.f32.mrb[0].mxu0
      %v538 = vpop.f32.mrb[0].mxu0
      %539 = vdwg.mxu0
      %540 = vmatprep.subr.bf16.mxu0 0
      %541 = vmatpush1.bf16.msra.mxu0 %v497
      %542 = vmatprep.subr.bf16.mxu0 0
      %543 = vmatpush1.bf16.msra.mxu0 0
      %544 = vmatprep.subr.bf16.mxu0 0
      %545 = vmatpush1.bf16.msra.mxu0 0
      %546 = vmatprep.subr.bf16.mxu0 0
      %547 = vmatpush1.bf16.msra.mxu0 0
      %548 = vmatprep.subr.bf16.mxu0 0
      %549 = vmatpush1.bf16.msra.mxu0 0
      %550 = vmatprep.subr.bf16.mxu0 0
      %551 = vmatpush1.bf16.msra.mxu0 0
      %552 = vmatprep.subr.bf16.mxu0 0
      %553 = vmatpush1.bf16.msra.mxu0 0
      %554 = vmatprep.subr.bf16.mxu0 0
      %555 = vmatpush1.bf16.msra.mxu0 0
      %556 = vmatprep.subr.bf16.mxu0 0
      %557 = vmatpush1.bf16.msra.mxu0 0
      %558 = vmatprep.subr.bf16.mxu0 0
      %559 = vmatpush1.bf16.msra.mxu0 0
      %560 = vmatprep.subr.bf16.mxu0 0
      %561 = vmatpush1.bf16.msra.mxu0 0
      %562 = vmatprep.subr.bf16.mxu0 0
      %563 = vmatpush1.bf16.msra.mxu0 0
      %564 = vmatprep.subr.bf16.mxu0 0
      %565 = vmatpush1.bf16.msra.mxu0 0
      %566 = vmatprep.subr.bf16.mxu0 0
      %567 = vmatpush1.bf16.msra.mxu0 0
      %568 = vmatprep.subr.bf16.mxu0 0
      %569 = vmatpush1.bf16.msra.mxu0 0
      %570 = vmatprep.subr.bf16.mxu0 0
      %571 = vmatpush1.bf16.msra.mxu0 0
      %572 = vmatprep.mubr.bf16.mxu0 0
      %573 = vmatmul.mubr.bf16.gmra.mrb[0].mxu0 %v489
      %v574 = vpop.f32.mrb[0].mxu0
      %v575 = vadd.f32 0.0, %v574
      %v576 = vpop.f32.mrb[0].mxu0
      %v577 = vpop.f32.mrb[0].mxu0
      %v578 = vpop.f32.mrb[0].mxu0
      %579 = vdwg.mxu0
      %v580 = vadd.f32 %v427, %v534
      %v581 = vadd.f32 %v429, %v536
      %v582 = vadd.f32 %v468, %v575
      %583 = vrot.lane.b32.xlu0 %v254, 1
      %v584 = vpop.permute.xlu0 %583
      %585 = vrot.lane.b32.xlu0 %v252, 1
      %v586 = vpop.permute.xlu0 %585
      %587 = vrot.lane.b32.xlu0 %v253, 1
      %v588 = vpop.permute.xlu0 %587
      %vm589 = vcmask 7168
      %v590 = vsel %vm589, %v586, %v588
      %v591 = vsel %vm589, %v588, %v584
      %vm592 = vcmask 7168
      %v595 = vsel %vm592, %v584, %v586
      %s596 = scalar_lea.vmem %s1, 6
      %v597 = vld [vmem:[%s596] sm:$0x3]
      %v599 = vsel %vm287, %v597, 0
      %v601 = vsel %vm291, %v595, 0
      %v604 = vsel %vm291, %v590, 0
      %v607 = vsel %vm291, %v591, 0
      %609 = vmatprep.subr.bf16.mxu0 %v604
      %610 = vmatpush1.bf16.msra.mxu0 %v601
      %611 = vmatprep.subr.bf16.mxu0 0
      %612 = vmatpush1.bf16.msra.mxu0 0
      %613 = vmatprep.subr.bf16.mxu0 0
      %614 = vmatpush1.bf16.msra.mxu0 0
      %615 = vmatprep.subr.bf16.mxu0 0
      %616 = vmatpush1.bf16.msra.mxu0 0
      %617 = vmatprep.subr.bf16.mxu0 0
      %618 = vmatpush1.bf16.msra.mxu0 0
      %619 = vmatprep.subr.bf16.mxu0 0
      %620 = vmatpush1.bf16.msra.mxu0 0
      %621 = vmatprep.subr.bf16.mxu0 0
      %622 = vmatpush1.bf16.msra.mxu0 0
      %623 = vmatprep.subr.bf16.mxu0 0
      %624 = vmatpush1.bf16.msra.mxu0 0
      %625 = vmatprep.subr.bf16.mxu0 0
      %626 = vmatpush1.bf16.msra.mxu0 0
      %627 = vmatprep.subr.bf16.mxu0 0
      %628 = vmatpush1.bf16.msra.mxu0 0
      %629 = vmatprep.subr.bf16.mxu0 0
      %630 = vmatpush1.bf16.msra.mxu0 0
      %631 = vmatprep.subr.bf16.mxu0 0
      %632 = vmatpush1.bf16.msra.mxu0 0
      %633 = vmatprep.subr.bf16.mxu0 0
      %634 = vmatpush1.bf16.msra.mxu0 0
      %635 = vmatprep.subr.bf16.mxu0 0
      %636 = vmatpush1.bf16.msra.mxu0 0
      %637 = vmatprep.subr.bf16.mxu0 0
      %638 = vmatpush1.bf16.msra.mxu0 0
      %639 = vmatprep.subr.bf16.mxu0 0
      %640 = vmatpush1.bf16.msra.mxu0 0
      %641 = vmatprep.mubr.bf16.mxu0 0
      %642 = vmatmul.mubr.bf16.gmra.mrb[0].mxu0 %v599
      %v643 = vpop.f32.mrb[0].mxu0
      %v644 = vadd.f32 0.0, %v643
      %v645 = vpop.f32.mrb[0].mxu0
      %v646 = vadd.f32 0.0, %v645
      %v647 = vpop.f32.mrb[0].mxu0
      %v648 = vpop.f32.mrb[0].mxu0
      %649 = vdwg.mxu0
      %650 = vmatprep.subr.bf16.mxu0 0
      %651 = vmatpush1.bf16.msra.mxu0 %v607
      %652 = vmatprep.subr.bf16.mxu0 0
      %653 = vmatpush1.bf16.msra.mxu0 0
      %654 = vmatprep.subr.bf16.mxu0 0
      %655 = vmatpush1.bf16.msra.mxu0 0
      %656 = vmatprep.subr.bf16.mxu0 0
      %657 = vmatpush1.bf16.msra.mxu0 0
      %658 = vmatprep.subr.bf16.mxu0 0
      %659 = vmatpush1.bf16.msra.mxu0 0
      %660 = vmatprep.subr.bf16.mxu0 0
      %661 = vmatpush1.bf16.msra.mxu0 0
      %662 = vmatprep.subr.bf16.mxu0 0
      %663 = vmatpush1.bf16.msra.mxu0 0
      %664 = vmatprep.subr.bf16.mxu0 0
      %665 = vmatpush1.bf16.msra.mxu0 0
      %666 = vmatprep.subr.bf16.mxu0 0
      %667 = vmatpush1.bf16.msra.mxu0 0
      %668 = vmatprep.subr.bf16.mxu0 0
      %669 = vmatpush1.bf16.msra.mxu0 0
      %670 = vmatprep.subr.bf16.mxu0 0
      %671 = vmatpush1.bf16.msra.mxu0 0
      %672 = vmatprep.subr.bf16.mxu0 0
      %673 = vmatpush1.bf16.msra.mxu0 0
      %674 = vmatprep.subr.bf16.mxu0 0
      %675 = vmatpush1.bf16.msra.mxu0 0
      %676 = vmatprep.subr.bf16.mxu0 0
      %677 = vmatpush1.bf16.msra.mxu0 0
      %678 = vmatprep.subr.bf16.mxu0 0
      %679 = vmatpush1.bf16.msra.mxu0 0
      %680 = vmatprep.subr.bf16.mxu0 0
      %681 = vmatpush1.bf16.msra.mxu0 0
      %682 = vmatprep.mubr.bf16.mxu0 0
      %683 = vmatmul.mubr.bf16.gmra.mrb[0].mxu0 %v599
      %v684 = vpop.f32.mrb[0].mxu0
      %v685 = vadd.f32 0.0, %v684
      %v686 = vpop.f32.mrb[0].mxu0
      %v687 = vpop.f32.mrb[0].mxu0
      %v688 = vpop.f32.mrb[0].mxu0
      %689 = vdwg.mxu0
      %v690 = vadd.f32 %v580, %v644
      %v691 = vadd.f32 %v581, %v646
      %v692 = vadd.f32 %v582, %v685
      %s693 = scalar_lea.vmem %s1, 8
      %v694 = vld [vmem:[%s693] sm:$0x3]
      %v696 = vsel %vm287, %v694, 0
      %v699 = vsel %vm291, %v252, 0
      %v702 = vsel %vm291, %v253, 0
      %v705 = vsel %vm291, %v254, 0
      %707 = vmatprep.subr.bf16.mxu0 %v702
      %708 = vmatpush1.bf16.msra.mxu0 %v699
      %709 = vmatprep.subr.bf16.mxu0 0
      %710 = vmatpush1.bf16.msra.mxu0 0
      %711 = vmatprep.subr.bf16.mxu0 0
      %712 = vmatpush1.bf16.msra.mxu0 0
      %713 = vmatprep.subr.bf16.mxu0 0
      %714 = vmatpush1.bf16.msra.mxu0 0
      %715 = vmatprep.subr.bf16.mxu0 0
      %716 = vmatpush1.bf16.msra.mxu0 0
      %717 = vmatprep.subr.bf16.mxu0 0
      %718 = vmatpush1.bf16.msra.mxu0 0
      %719 = vmatprep.subr.bf16.mxu0 0
      %720 = vmatpush1.bf16.msra.mxu0 0
      %721 = vmatprep.subr.bf16.mxu0 0
      %722 = vmatpush1.bf16.msra.mxu0 0
      %723 = vmatprep.subr.bf16.mxu0 0
      %724 = vmatpush1.bf16.msra.mxu0 0
      %725 = vmatprep.subr.bf16.mxu0 0
      %726 = vmatpush1.bf16.msra.mxu0 0
      %727 = vmatprep.subr.bf16.mxu0 0
      %728 = vmatpush1.bf16.msra.mxu0 0
      %729 = vmatprep.subr.bf16.mxu0 0
      %730 = vmatpush1.bf16.msra.mxu0 0
      %731 = vmatprep.subr.bf16.mxu0 0
      %732 = vmatpush1.bf16.msra.mxu0 0
      %733 = vmatprep.subr.bf16.mxu0 0
      %734 = vmatpush1.bf16.msra.mxu0 0
      %735 = vmatprep.subr.bf16.mxu0 0
      %736 = vmatpush1.bf16.msra.mxu0 0
      %737 = vmatprep.subr.bf16.mxu0 0
      %738 = vmatpush1.bf16.msra.mxu0 0
      %739 = vmatprep.mubr.bf16.mxu0 0
      %740 = vmatmul.mubr.bf16.gmra.mrb[0].mxu0 %v696
      %v741 = vpop.f32.mrb[0].mxu0
      %v742 = vadd.f32 0.0, %v741
      %v743 = vpop.f32.mrb[0].mxu0
      %v744 = vadd.f32 0.0, %v743
      %v745 = vpop.f32.mrb[0].mxu0
      %v746 = vpop.f32.mrb[0].mxu0
      %747 = vdwg.mxu0
      %748 = vmatprep.subr.bf16.mxu0 0
      %749 = vmatpush1.bf16.msra.mxu0 %v705
      %750 = vmatprep.subr.bf16.mxu0 0
      %751 = vmatpush1.bf16.msra.mxu0 0
      %752 = vmatprep.subr.bf16.mxu0 0
      %753 = vmatpush1.bf16.msra.mxu0 0
      %754 = vmatprep.subr.bf16.mxu0 0
      %755 = vmatpush1.bf16.msra.mxu0 0
      %756 = vmatprep.subr.bf16.mxu0 0
      %757 = vmatpush1.bf16.msra.mxu0 0
      %758 = vmatprep.subr.bf16.mxu0 0
      %759 = vmatpush1.bf16.msra.mxu0 0
      %760 = vmatprep.subr.bf16.mxu0 0
      %761 = vmatpush1.bf16.msra.mxu0 0
      %762 = vmatprep.subr.bf16.mxu0 0
      %763 = vmatpush1.bf16.msra.mxu0 0
      %764 = vmatprep.subr.bf16.mxu0 0
      %765 = vmatpush1.bf16.msra.mxu0 0
      %766 = vmatprep.subr.bf16.mxu0 0
      %767 = vmatpush1.bf16.msra.mxu0 0
      %768 = vmatprep.subr.bf16.mxu0 0
      %769 = vmatpush1.bf16.msra.mxu0 0
      %770 = vmatprep.subr.bf16.mxu0 0
      %771 = vmatpush1.bf16.msra.mxu0 0
      %772 = vmatprep.subr.bf16.mxu0 0
      %773 = vmatpush1.bf16.msra.mxu0 0
      %774 = vmatprep.subr.bf16.mxu0 0
      %775 = vmatpush1.bf16.msra.mxu0 0
      %776 = vmatprep.subr.bf16.mxu0 0
      %777 = vmatpush1.bf16.msra.mxu0 0
      %778 = vmatprep.subr.bf16.mxu0 0
      %779 = vmatpush1.bf16.msra.mxu0 0
      %780 = vmatprep.mubr.bf16.mxu0 0
      %781 = vmatmul.mubr.bf16.gmra.mrb[0].mxu0 %v696
      %v782 = vpop.f32.mrb[0].mxu0
      %v783 = vadd.f32 0.0, %v782
      %v784 = vpop.f32.mrb[0].mxu0
      %v785 = vpop.f32.mrb[0].mxu0
      %v786 = vpop.f32.mrb[0].mxu0
      %787 = vdwg.mxu0
      %v788 = vadd.f32 %v690, %v742
      %v789 = vadd.f32 %v691, %v744
      %v790 = vadd.f32 %v692, %v783
      %791 = vrot.lane.b32.xlu0 %v252, 127
      %v792 = vpop.permute.xlu0 %791
      %793 = vrot.lane.b32.xlu0 %v253, 127
      %v794 = vpop.permute.xlu0 %793
      %795 = vrot.lane.b32.xlu0 %v254, 127
      %v796 = vpop.permute.xlu0 %795
      %vm797 = vcmask 1039360
      %v798 = vsel %vm797, %v792, %v794
      %v799 = vsel %vm797, %v794, %v796
      %vm800 = vcmask 1039360
      %v803 = vsel %vm800, %v796, %v792
      %s804 = scalar_lea.vmem %s1, 10
      %v805 = vld [vmem:[%s804] sm:$0x3]
      %v807 = vsel %vm287, %v805, 0
      %v810 = vsel %vm291, %v798, 0
      %v813 = vsel %vm291, %v799, 0
      %v815 = vsel %vm291, %v803, 0
      %817 = vmatprep.subr.bf16.mxu0 %v813
      %818 = vmatpush1.bf16.msra.mxu0 %v810
      %819 = vmatprep.subr.bf16.mxu0 0
      %820 = vmatpush1.bf16.msra.mxu0 0
      %821 = vmatprep.subr.bf16.mxu0 0
      %822 = vmatpush1.bf16.msra.mxu0 0
      %823 = vmatprep.subr.bf16.mxu0 0
      %824 = vmatpush1.bf16.msra.mxu0 0
      %825 = vmatprep.subr.bf16.mxu0 0
      %826 = vmatpush1.bf16.msra.mxu0 0
      %827 = vmatprep.subr.bf16.mxu0 0
      %828 = vmatpush1.bf16.msra.mxu0 0
      %829 = vmatprep.subr.bf16.mxu0 0
      %830 = vmatpush1.bf16.msra.mxu0 0
      %831 = vmatprep.subr.bf16.mxu0 0
      %832 = vmatpush1.bf16.msra.mxu0 0
      %833 = vmatprep.subr.bf16.mxu0 0
      %834 = vmatpush1.bf16.msra.mxu0 0
      %835 = vmatprep.subr.bf16.mxu0 0
      %836 = vmatpush1.bf16.msra.mxu0 0
      %837 = vmatprep.subr.bf16.mxu0 0
      %838 = vmatpush1.bf16.msra.mxu0 0
      %839 = vmatprep.subr.bf16.mxu0 0
      %840 = vmatpush1.bf16.msra.mxu0 0
      %841 = vmatprep.subr.bf16.mxu0 0
      %842 = vmatpush1.bf16.msra.mxu0 0
      %843 = vmatprep.subr.bf16.mxu0 0
      %844 = vmatpush1.bf16.msra.mxu0 0
      %845 = vmatprep.subr.bf16.mxu0 0
      %846 = vmatpush1.bf16.msra.mxu0 0
      %847 = vmatprep.subr.bf16.mxu0 0
      %848 = vmatpush1.bf16.msra.mxu0 0
      %849 = vmatprep.mubr.bf16.mxu0 0
      %850 = vmatmul.mubr.bf16.gmra.mrb[0].mxu0 %v807
      %v851 = vpop.f32.mrb[0].mxu0
      %v852 = vadd.f32 0.0, %v851
      %v853 = vpop.f32.mrb[0].mxu0
      %v854 = vadd.f32 0.0, %v853
      %v855 = vpop.f32.mrb[0].mxu0
      %v856 = vpop.f32.mrb[0].mxu0
      %857 = vdwg.mxu0
      %858 = vmatprep.subr.bf16.mxu0 0
      %859 = vmatpush1.bf16.msra.mxu0 %v815
      %860 = vmatprep.subr.bf16.mxu0 0
      %861 = vmatpush1.bf16.msra.mxu0 0
      %862 = vmatprep.subr.bf16.mxu0 0
      %863 = vmatpush1.bf16.msra.mxu0 0
      %864 = vmatprep.subr.bf16.mxu0 0
      %865 = vmatpush1.bf16.msra.mxu0 0
      %866 = vmatprep.subr.bf16.mxu0 0
      %867 = vmatpush1.bf16.msra.mxu0 0
      %868 = vmatprep.subr.bf16.mxu0 0
      %869 = vmatpush1.bf16.msra.mxu0 0
      %870 = vmatprep.subr.bf16.mxu0 0
      %871 = vmatpush1.bf16.msra.mxu0 0
      %872 = vmatprep.subr.bf16.mxu0 0
      %873 = vmatpush1.bf16.msra.mxu0 0
      %874 = vmatprep.subr.bf16.mxu0 0
      %875 = vmatpush1.bf16.msra.mxu0 0
      %876 = vmatprep.subr.bf16.mxu0 0
      %877 = vmatpush1.bf16.msra.mxu0 0
      %878 = vmatprep.subr.bf16.mxu0 0
      %879 = vmatpush1.bf16.msra.mxu0 0
      %880 = vmatprep.subr.bf16.mxu0 0
      %881 = vmatpush1.bf16.msra.mxu0 0
      %882 = vmatprep.subr.bf16.mxu0 0
      %883 = vmatpush1.bf16.msra.mxu0 0
      %884 = vmatprep.subr.bf16.mxu0 0
      %885 = vmatpush1.bf16.msra.mxu0 0
      %886 = vmatprep.subr.bf16.mxu0 0
      %887 = vmatpush1.bf16.msra.mxu0 0
      %888 = vmatprep.subr.bf16.mxu0 0
      %889 = vmatpush1.bf16.msra.mxu0 0
      %890 = vmatprep.mubr.bf16.mxu0 0
      %891 = vmatmul.mubr.bf16.gmra.mrb[0].mxu0 %v807
      %v892 = vpop.f32.mrb[0].mxu0
      %v893 = vadd.f32 0.0, %v892
      %v894 = vpop.f32.mrb[0].mxu0
      %v895 = vpop.f32.mrb[0].mxu0
      %v896 = vpop.f32.mrb[0].mxu0
      %897 = vdwg.mxu0
      %v898 = vadd.f32 %v788, %v852
      %v899 = vadd.f32 %v789, %v854
      %v900 = vadd.f32 %v790, %v893
      %901 = vrot.lane.b32.xlu0 %v252, 111
      %v902 = vpop.permute.xlu0 %901
      %903 = vrot.lane.b32.xlu0 %v253, 111
      %v904 = vpop.permute.xlu0 %903
      %905 = vrot.lane.b32.xlu0 %v254, 111
      %v906 = vpop.permute.xlu0 %905
      %vm907 = vcmask 908288
      %v908 = vsel %vm907, %v902, %v904
      %v909 = vsel %vm907, %v904, %v906
      %vm910 = vcmask 908288
      %v913 = vsel %vm910, %v906, %v902
      %s914 = scalar_lea.vmem %s1, 12
      %v915 = vld [vmem:[%s914] sm:$0x3]
      %v917 = vsel %vm287, %v915, 0
      %v920 = vsel %vm291, %v908, 0
      %v923 = vsel %vm291, %v909, 0
      %v925 = vsel %vm291, %v913, 0
      %927 = vmatprep.subr.bf16.mxu0 %v923
      %928 = vmatpush1.bf16.msra.mxu0 %v920
      %929 = vmatprep.subr.bf16.mxu0 0
      %930 = vmatpush1.bf16.msra.mxu0 0
      %931 = vmatprep.subr.bf16.mxu0 0
      %932 = vmatpush1.bf16.msra.mxu0 0
      %933 = vmatprep.subr.bf16.mxu0 0
      %934 = vmatpush1.bf16.msra.mxu0 0
      %935 = vmatprep.subr.bf16.mxu0 0
      %936 = vmatpush1.bf16.msra.mxu0 0
      %937 = vmatprep.subr.bf16.mxu0 0
      %938 = vmatpush1.bf16.msra.mxu0 0
      %939 = vmatprep.subr.bf16.mxu0 0
      %940 = vmatpush1.bf16.msra.mxu0 0
      %941 = vmatprep.subr.bf16.mxu0 0
      %942 = vmatpush1.bf16.msra.mxu0 0
      %943 = vmatprep.subr.bf16.mxu0 0
      %944 = vmatpush1.bf16.msra.mxu0 0
      %945 = vmatprep.subr.bf16.mxu0 0
      %946 = vmatpush1.bf16.msra.mxu0 0
      %947 = vmatprep.subr.bf16.mxu0 0
      %948 = vmatpush1.bf16.msra.mxu0 0
      %949 = vmatprep.subr.bf16.mxu0 0
      %950 = vmatpush1.bf16.msra.mxu0 0
      %951 = vmatprep.subr.bf16.mxu0 0
      %952 = vmatpush1.bf16.msra.mxu0 0
      %953 = vmatprep.subr.bf16.mxu0 0
      %954 = vmatpush1.bf16.msra.mxu0 0
      %955 = vmatprep.subr.bf16.mxu0 0
      %956 = vmatpush1.bf16.msra.mxu0 0
      %957 = vmatprep.subr.bf16.mxu0 0
      %958 = vmatpush1.bf16.msra.mxu0 0
      %959 = vmatprep.mubr.bf16.mxu0 0
      %960 = vmatmul.mubr.bf16.gmra.mrb[0].mxu0 %v917
      %v961 = vpop.f32.mrb[0].mxu0
      %v962 = vadd.f32 0.0, %v961
      %v963 = vpop.f32.mrb[0].mxu0
      %v964 = vadd.f32 0.0, %v963
      %v965 = vpop.f32.mrb[0].mxu0
      %v966 = vpop.f32.mrb[0].mxu0
      %967 = vdwg.mxu0
      %968 = vmatprep.subr.bf16.mxu0 0
      %969 = vmatpush1.bf16.msra.mxu0 %v925
      %970 = vmatprep.subr.bf16.mxu0 0
      %971 = vmatpush1.bf16.msra.mxu0 0
      %972 = vmatprep.subr.bf16.mxu0 0
      %973 = vmatpush1.bf16.msra.mxu0 0
      %974 = vmatprep.subr.bf16.mxu0 0
      %975 = vmatpush1.bf16.msra.mxu0 0
      %976 = vmatprep.subr.bf16.mxu0 0
      %977 = vmatpush1.bf16.msra.mxu0 0
      %978 = vmatprep.subr.bf16.mxu0 0
      %979 = vmatpush1.bf16.msra.mxu0 0
      %980 = vmatprep.subr.bf16.mxu0 0
      %981 = vmatpush1.bf16.msra.mxu0 0
      %982 = vmatprep.subr.bf16.mxu0 0
      %983 = vmatpush1.bf16.msra.mxu0 0
      %984 = vmatprep.subr.bf16.mxu0 0
      %985 = vmatpush1.bf16.msra.mxu0 0
      %986 = vmatprep.subr.bf16.mxu0 0
      %987 = vmatpush1.bf16.msra.mxu0 0
      %988 = vmatprep.subr.bf16.mxu0 0
      %989 = vmatpush1.bf16.msra.mxu0 0
      %990 = vmatprep.subr.bf16.mxu0 0
      %991 = vmatpush1.bf16.msra.mxu0 0
      %992 = vmatprep.subr.bf16.mxu0 0
      %993 = vmatpush1.bf16.msra.mxu0 0
      %994 = vmatprep.subr.bf16.mxu0 0
      %995 = vmatpush1.bf16.msra.mxu0 0
      %996 = vmatprep.subr.bf16.mxu0 0
      %997 = vmatpush1.bf16.msra.mxu0 0
      %998 = vmatprep.subr.bf16.mxu0 0
      %999 = vmatpush1.bf16.msra.mxu0 0
      %1000 = vmatprep.mubr.bf16.mxu0 0
      %1001 = vmatmul.mubr.bf16.gmra.mrb[0].mxu0 %v917
      %v1002 = vpop.f32.mrb[0].mxu0
      %v1003 = vadd.f32 0.0, %v1002
      %v1004 = vpop.f32.mrb[0].mxu0
      %v1005 = vpop.f32.mrb[0].mxu0
      %v1006 = vpop.f32.mrb[0].mxu0
      %1007 = vdwg.mxu0
      %v1008 = vadd.f32 %v898, %v962
      %v1009 = vadd.f32 %v899, %v964
      %v1010 = vadd.f32 %v900, %v1003
      %1011 = vrot.lane.b32.xlu0 %v252, 110
      %v1012 = vpop.permute.xlu0 %1011
      %1013 = vrot.lane.b32.xlu0 %v253, 110
      %v1014 = vpop.permute.xlu0 %1013
      %1015 = vrot.lane.b32.xlu0 %v254, 110
      %v1016 = vpop.permute.xlu0 %1015
      %vm1017 = vcmask 900096
      %v1018 = vsel %vm1017, %v1012, %v1014
      %v1019 = vsel %vm1017, %v1014, %v1016
      %vm1020 = vcmask 900096
      %v1023 = vsel %vm1020, %v1016, %v1012
      %s1024 = scalar_lea.vmem %s1, 14
      %v1025 = vld [vmem:[%s1024] sm:$0x3]
      %v1027 = vsel %vm287, %v1025, 0
      %v1030 = vsel %vm291, %v1018, 0
      %v1033 = vsel %vm291, %v1019, 0
      %v1035 = vsel %vm291, %v1023, 0
      %1037 = vmatprep.subr.bf16.mxu0 %v1033
      %1038 = vmatpush1.bf16.msra.mxu0 %v1030
      %1039 = vmatprep.subr.bf16.mxu0 0
      %1040 = vmatpush1.bf16.msra.mxu0 0
      %1041 = vmatprep.subr.bf16.mxu0 0
      %1042 = vmatpush1.bf16.msra.mxu0 0
      %1043 = vmatprep.subr.bf16.mxu0 0
      %1044 = vmatpush1.bf16.msra.mxu0 0
      %1045 = vmatprep.subr.bf16.mxu0 0
      %1046 = vmatpush1.bf16.msra.mxu0 0
      %1047 = vmatprep.subr.bf16.mxu0 0
      %1048 = vmatpush1.bf16.msra.mxu0 0
      %1049 = vmatprep.subr.bf16.mxu0 0
      %1050 = vmatpush1.bf16.msra.mxu0 0
      %1051 = vmatprep.subr.bf16.mxu0 0
      %1052 = vmatpush1.bf16.msra.mxu0 0
      %1053 = vmatprep.subr.bf16.mxu0 0
      %1054 = vmatpush1.bf16.msra.mxu0 0
      %1055 = vmatprep.subr.bf16.mxu0 0
      %1056 = vmatpush1.bf16.msra.mxu0 0
      %1057 = vmatprep.subr.bf16.mxu0 0
      %1058 = vmatpush1.bf16.msra.mxu0 0
      %1059 = vmatprep.subr.bf16.mxu0 0
      %1060 = vmatpush1.bf16.msra.mxu0 0
      %1061 = vmatprep.subr.bf16.mxu0 0
      %1062 = vmatpush1.bf16.msra.mxu0 0
      %1063 = vmatprep.subr.bf16.mxu0 0
      %1064 = vmatpush1.bf16.msra.mxu0 0
      %1065 = vmatprep.subr.bf16.mxu0 0
      %1066 = vmatpush1.bf16.msra.mxu0 0
      %1067 = vmatprep.subr.bf16.mxu0 0
      %1068 = vmatpush1.bf16.msra.mxu0 0
      %1069 = vmatprep.mubr.bf16.mxu0 0
      %1070 = vmatmul.mubr.bf16.gmra.mrb[0].mxu0 %v1027
      %v1071 = vpop.f32.mrb[0].mxu0
      %v1072 = vadd.f32 0.0, %v1071
      %v1073 = vpop.f32.mrb[0].mxu0
      %v1074 = vadd.f32 0.0, %v1073
      %v1075 = vpop.f32.mrb[0].mxu0
      %v1076 = vpop.f32.mrb[0].mxu0
      %1077 = vdwg.mxu0
      %1078 = vmatprep.subr.bf16.mxu0 0
      %1079 = vmatpush1.bf16.msra.mxu0 %v1035
      %1080 = vmatprep.subr.bf16.mxu0 0
      %1081 = vmatpush1.bf16.msra.mxu0 0
      %1082 = vmatprep.subr.bf16.mxu0 0
      %1083 = vmatpush1.bf16.msra.mxu0 0
      %1084 = vmatprep.subr.bf16.mxu0 0
      %1085 = vmatpush1.bf16.msra.mxu0 0
      %1086 = vmatprep.subr.bf16.mxu0 0
      %1087 = vmatpush1.bf16.msra.mxu0 0
      %1088 = vmatprep.subr.bf16.mxu0 0
      %1089 = vmatpush1.bf16.msra.mxu0 0
      %1090 = vmatprep.subr.bf16.mxu0 0
      %1091 = vmatpush1.bf16.msra.mxu0 0
      %1092 = vmatprep.subr.bf16.mxu0 0
      %1093 = vmatpush1.bf16.msra.mxu0 0
      %1094 = vmatprep.subr.bf16.mxu0 0
      %1095 = vmatpush1.bf16.msra.mxu0 0
      %1096 = vmatprep.subr.bf16.mxu0 0
      %1097 = vmatpush1.bf16.msra.mxu0 0
      %1098 = vmatprep.subr.bf16.mxu0 0
      %1099 = vmatpush1.bf16.msra.mxu0 0
      %1100 = vmatprep.subr.bf16.mxu0 0
      %1101 = vmatpush1.bf16.msra.mxu0 0
      %1102 = vmatprep.subr.bf16.mxu0 0
      %1103 = vmatpush1.bf16.msra.mxu0 0
      %1104 = vmatprep.subr.bf16.mxu0 0
      %1105 = vmatpush1.bf16.msra.mxu0 0
      %1106 = vmatprep.subr.bf16.mxu0 0
      %1107 = vmatpush1.bf16.msra.mxu0 0
      %1108 = vmatprep.subr.bf16.mxu0 0
      %1109 = vmatpush1.bf16.msra.mxu0 0
      %1110 = vmatprep.mubr.bf16.mxu0 0
      %1111 = vmatmul.mubr.bf16.gmra.mrb[0].mxu0 %v1027
      %v1112 = vpop.f32.mrb[0].mxu0
      %v1113 = vadd.f32 0.0, %v1112
      %v1114 = vpop.f32.mrb[0].mxu0
      %v1115 = vpop.f32.mrb[0].mxu0
      %v1116 = vpop.f32.mrb[0].mxu0
      %1117 = vdwg.mxu0
      %v1118 = vadd.f32 %v1008, %v1072
      %v1119 = vadd.f32 %v1009, %v1074
      %v1120 = vadd.f32 %v1010, %v1113
      %1121 = vrot.lane.b32.xlu0 %v252, 109
      %v1122 = vpop.permute.xlu0 %1121
      %1123 = vrot.lane.b32.xlu0 %v253, 109
      %v1124 = vpop.permute.xlu0 %1123
      %1125 = vrot.lane.b32.xlu0 %v254, 109
      %v1126 = vpop.permute.xlu0 %1125
      %vm1127 = vcmask 891904
      %v1128 = vsel %vm1127, %v1122, %v1124
      %v1129 = vsel %vm1127, %v1124, %v1126
      %vm1130 = vcmask 891904
      %v1133 = vsel %vm1130, %v1126, %v1122
      %s1134 = scalar_lea.vmem %s1, 16
      %v1135 = vld [vmem:[%s1134] sm:$0x3]
      %v1137 = vsel %vm287, %v1135, 0
      %v1140 = vsel %vm291, %v1128, 0
      %v1143 = vsel %vm291, %v1129, 0
      %v1145 = vsel %vm291, %v1133, 0
      %1147 = vmatprep.subr.bf16.mxu0 %v1143
      %1148 = vmatpush1.bf16.msra.mxu0 %v1140
      %1149 = vmatprep.subr.bf16.mxu0 0
      %1150 = vmatpush1.bf16.msra.mxu0 0
      %1151 = vmatprep.subr.bf16.mxu0 0
      %1152 = vmatpush1.bf16.msra.mxu0 0
      %1153 = vmatprep.subr.bf16.mxu0 0
      %1154 = vmatpush1.bf16.msra.mxu0 0
      %1155 = vmatprep.subr.bf16.mxu0 0
      %1156 = vmatpush1.bf16.msra.mxu0 0
      %1157 = vmatprep.subr.bf16.mxu0 0
      %1158 = vmatpush1.bf16.msra.mxu0 0
      %1159 = vmatprep.subr.bf16.mxu0 0
      %1160 = vmatpush1.bf16.msra.mxu0 0
      %1161 = vmatprep.subr.bf16.mxu0 0
      %1162 = vmatpush1.bf16.msra.mxu0 0
      %1163 = vmatprep.subr.bf16.mxu0 0
      %1164 = vmatpush1.bf16.msra.mxu0 0
      %1165 = vmatprep.subr.bf16.mxu0 0
      %1166 = vmatpush1.bf16.msra.mxu0 0
      %1167 = vmatprep.subr.bf16.mxu0 0
      %1168 = vmatpush1.bf16.msra.mxu0 0
      %1169 = vmatprep.subr.bf16.mxu0 0
      %1170 = vmatpush1.bf16.msra.mxu0 0
      %1171 = vmatprep.subr.bf16.mxu0 0
      %1172 = vmatpush1.bf16.msra.mxu0 0
      %1173 = vmatprep.subr.bf16.mxu0 0
      %1174 = vmatpush1.bf16.msra.mxu0 0
      %1175 = vmatprep.subr.bf16.mxu0 0
      %1176 = vmatpush1.bf16.msra.mxu0 0
      %1177 = vmatprep.subr.bf16.mxu0 0
      %1178 = vmatpush1.bf16.msra.mxu0 0
      %1179 = vmatprep.mubr.bf16.mxu0 0
      %1180 = vmatmul.mubr.bf16.gmra.mrb[0].mxu0 %v1137
      %v1181 = vpop.f32.mrb[0].mxu0
      %v1182 = vadd.f32 0.0, %v1181
      %v1183 = vpop.f32.mrb[0].mxu0
      %v1184 = vadd.f32 0.0, %v1183
      %v1185 = vpop.f32.mrb[0].mxu0
      %v1186 = vpop.f32.mrb[0].mxu0
      %1187 = vdwg.mxu0
      %1188 = vmatprep.subr.bf16.mxu0 0
      %1189 = vmatpush1.bf16.msra.mxu0 %v1145
      %1190 = vmatprep.subr.bf16.mxu0 0
      %1191 = vmatpush1.bf16.msra.mxu0 0
      %1192 = vmatprep.subr.bf16.mxu0 0
      %1193 = vmatpush1.bf16.msra.mxu0 0
      %1194 = vmatprep.subr.bf16.mxu0 0
      %1195 = vmatpush1.bf16.msra.mxu0 0
      %1196 = vmatprep.subr.bf16.mxu0 0
      %1197 = vmatpush1.bf16.msra.mxu0 0
      %1198 = vmatprep.subr.bf16.mxu0 0
      %1199 = vmatpush1.bf16.msra.mxu0 0
      %1200 = vmatprep.subr.bf16.mxu0 0
      %1201 = vmatpush1.bf16.msra.mxu0 0
      %1202 = vmatprep.subr.bf16.mxu0 0
      %1203 = vmatpush1.bf16.msra.mxu0 0
      %1204 = vmatprep.subr.bf16.mxu0 0
      %1205 = vmatpush1.bf16.msra.mxu0 0
      %1206 = vmatprep.subr.bf16.mxu0 0
      %1207 = vmatpush1.bf16.msra.mxu0 0
      %1208 = vmatprep.subr.bf16.mxu0 0
      %1209 = vmatpush1.bf16.msra.mxu0 0
      %1210 = vmatprep.subr.bf16.mxu0 0
      %1211 = vmatpush1.bf16.msra.mxu0 0
      %1212 = vmatprep.subr.bf16.mxu0 0
      %1213 = vmatpush1.bf16.msra.mxu0 0
      %1214 = vmatprep.subr.bf16.mxu0 0
      %1215 = vmatpush1.bf16.msra.mxu0 0
      %1216 = vmatprep.subr.bf16.mxu0 0
      %1217 = vmatpush1.bf16.msra.mxu0 0
      %1218 = vmatprep.subr.bf16.mxu0 0
      %1219 = vmatpush1.bf16.msra.mxu0 0
      %1220 = vmatprep.mubr.bf16.mxu0 0
      %1221 = vmatmul.mubr.bf16.gmra.mrb[0].mxu0 %v1137
      %v1222 = vpop.f32.mrb[0].mxu0
      %v1223 = vadd.f32 0.0, %v1222
      %v1224 = vpop.f32.mrb[0].mxu0
      %v1225 = vpop.f32.mrb[0].mxu0
      %v1226 = vpop.f32.mrb[0].mxu0
      %1227 = vdwg.mxu0
      %v1228 = vadd.f32 %v1118, %v1182
      %v1229 = vadd.f32 %v1119, %v1184
      %v1230 = vadd.f32 %v1120, %v1223
      %v1231 = vld [vmem:[%s2] sm:$0x7]
      %v1233 = vlaneseq
      %v1234 = vshrl.u32 %v1233, 7
      %v1235 = vsub.s32 0, %v1234
      %v1236 = vrot.slane %v1231, %v1235
      %v1237 = vlaneseq
      %v1238 = vshrl.u32 %v1237, 7
      %v1239 = vsub.s32 1, %v1238
      %v1240 = vrot.slane %v1231, %v1239
      %v1241 = vlaneseq
      %v1242 = vshrl.u32 %v1241, 7
      %v1243 = vsub.s32 2, %v1242
      %v1244 = vrot.slane %v1231, %v1243
      %v1248 = vmul.f32 %v1228, %v1236
      %v1249 = vmul.f32 %v1229, %v1240
      %v1250 = vmul.f32 %v1230, %v1244
      %v1253 = vcombine.low %v1248, %v1249
      %1255 = vst [vmem:[%s237] sm:$0xff] %v1253
      %1256 = vst [vmem:[%s237 + $0x8] sm:$0xf] %v1250
      %vm1257 = vcmask 1043456
      %v1258 = vsel %vm1257, %v1248, 0.0
      %v1259 = vsel %vm1257, %v1249, 0.0
      %v1260 = vadd.f32 %v1258, %v1259
      %v1261 = vsel %vm1257, %v1250, 0.0
      %v1262 = vadd.f32 %v1260, %v1261
      %1263 = vadd.xlane.f32.xlu0 %v1262
      %v1264 = vpop.xlane.xlu0 %1263
      %vm1265 = vcmask 3072
      %1266 = vst.msk [vmem:[%s241] sm:$0xf] %vm1265, %v1264
      %v1267 = vmul.f32 %v1248, %v1248
      %v1268 = vmul.f32 %v1249, %v1249
      %v1269 = vmul.f32 %v1250, %v1250
      %v1270 = vsel %vm1257, %v1267, 0.0
      %v1271 = vsel %vm1257, %v1268, 0.0
      %v1272 = vadd.f32 %v1270, %v1271
      %v1273 = vsel %vm1257, %v1269, 0.0
      %v1274 = vadd.f32 %v1272, %v1273
      %1275 = vadd.xlane.f32.xlu0 %v1274
      %v1276 = vpop.xlane.xlu0 %1275
      %1277 = vst.msk [vmem:[%s245] sm:$0xf] %vm1265, %v1276
      %p1278 = scmp.lt.s32.totalorder %s17, 1
      %s1279 = scalar_select %p1278, %s17, 1
      %s1280 = smul.addr %s1279, 3
      %s1281 = smul.addr %s1280, 4
      %s1282 = scalar_lea.vmem %s3, %s1281
      %p1283 = scmp.lt.s32.totalorder %s17, 1
      %s1284 = scalar_select %p1283, %s17, 1
      %s1285 = smul.addr %s1284, 4
      %s1286 = scalar_lea.vmem %s4, %s1285
      %p1287 = scmp.lt.s32.totalorder %s17, 1
      %s1288 = scalar_select %p1287, %s17, 1
      %s1289 = smul.addr %s1288, 4
      %s1290 = scalar_lea.vmem %s5, %s1289
      // Predicated region
      $region33: #{basic_block_forward.3} parent=31 // pred_check
        %p1291 = pneg %p103
      $region34: #{basic_block_forward.3} parent=31 // pred_check_branch
        %1293 = sbr.rel (%p1291) target = $region36
      $region35: #{basic_block_forward.3} parent=31 // pred_region
        _
      $region36: #{basic_block_forward.3} parent=31 // pred_fallthru
        _
      // Predicated region
      $region37: #{basic_block_forward.3} parent=31 // pred_check
        %p1294 = pneg %p129
      $region38: #{basic_block_forward.3} parent=31 // pred_check_branch
        %1296 = sbr.rel (%p1294) target = $region40
      $region39: #{basic_block_forward.3} parent=31 // pred_region
        _
      $region40: #{basic_block_forward.3} parent=31 // pred_fallthru
        _
      // Predicated region
      $region41: #{basic_block_forward.3} parent=31 // pred_check
        %p1297 = pneg %p155
      $region42: #{basic_block_forward.3} parent=31 // pred_check_branch
        %1299 = sbr.rel (%p1297) target = $region44
      $region43: #{basic_block_forward.3} parent=31 // pred_region
        _
      $region44: #{basic_block_forward.3} parent=31 // pred_fallthru
        _
    $region32: #{basic_block_forward.3} parent=5 // pred_fallthru
      _
    %p1300 = scmp.le.s32.totalorder 2, %s12
    // Predicated region
    $region45: #{basic_block_forward.3} parent=5 // pred_check
      %p1301 = pneg %p1300
    $region46: #{basic_block_forward.3} parent=5 // pred_check_branch
      %1303 = sbr.rel (%p1301) target = $region48
    $region47: #{basic_block_forward.3} parent=5 // pred_region
      %s1304 = ssub.s32 %s12, 2
      // Predicated region
      $region49: #{basic_block_forward.3} parent=47 // pred_check
        %p1305 = pneg %p109
      $region50: #{basic_block_forward.3} parent=47 // pred_check_branch
        %1307 = sbr.rel (%p1305) target = $region52
      $region51: #{basic_block_forward.3} parent=47 // pred_region
        %p1308 = scmp.lt.s32.totalorder %s18, 1
        %s1309 = scalar_select %p1308, %s18, 1
        %s1310 = smul.addr %s1309, 3
        %s1311 = smul.addr %s1310, 4
        %s1312 = scalar_lea.vmem %s3, %s1311
      $region52: #{basic_block_forward.3} parent=47 // pred_fallthru
        _
      // Predicated region
      $region53: #{basic_block_forward.3} parent=47 // pred_check
        %p1313 = pneg %p135
      $region54: #{basic_block_forward.3} parent=47 // pred_check_branch
        %1315 = sbr.rel (%p1313) target = $region56
      $region55: #{basic_block_forward.3} parent=47 // pred_region
        %p1316 = scmp.lt.s32.totalorder %s18, 1
        %s1317 = scalar_select %p1316, %s18, 1
        %s1318 = smul.addr %s1317, 4
        %s1319 = scalar_lea.vmem %s4, %s1318
      $region56: #{basic_block_forward.3} parent=47 // pred_fallthru
        _
      // Predicated region
      $region57: #{basic_block_forward.3} parent=47 // pred_check
        %p1320 = pneg %p161
      $region58: #{basic_block_forward.3} parent=47 // pred_check_branch
        %1322 = sbr.rel (%p1320) target = $region60
      $region59: #{basic_block_forward.3} parent=47 // pred_region
        %p1323 = scmp.lt.s32.totalorder %s18, 1
        %s1324 = scalar_select %p1323, %s18, 1
        %s1325 = smul.addr %s1324, 4
        %s1326 = scalar_lea.vmem %s5, %s1325
      $region60: #{basic_block_forward.3} parent=47 // pred_fallthru
        _
    $region48: #{basic_block_forward.3} parent=5 // pred_fallthru
      _
  $region6: #{basic_block_forward.3} parent=0 // loop_footer
    %s16 = sadd.s32 1, %s12
  $region7: #{basic_block_forward.3} parent=0 // loop_footer_branch
    %11 = sbr.rel target = $region3
  $region8: #{basic_block_forward.3} parent=0 // loop_exit
    _

// kernel: basic_block_forward.4
$region0: #{basic_block_forward.4}
  #allocation0 [shape = 'u32[]', space=smem, size = 0x4, offset = 0x4, fixed_abs, tag = 'smem constant byte address 0x4 - core index']
  #allocation1 [shape = 'u32[144,128]{1,0:T(1,128)}', space=vmem, size = 0x12000, scoped, tag = 'internal scratch']
  %s0 = inlined_call_operand.vmem [shape: f32[2,4,384], index: 0, kind: input, shape index: {}]
  %s1 = inlined_call_operand.vmem [shape: bf16[9,4,4], index: 1, kind: input, shape index: {}]
  %s2 = inlined_call_operand.vmem [shape: f32[1,384], index: 2, kind: input, shape index: {}]
  %s3 = inlined_call_operand.vmem [shape: f32[1,384], index: 3, kind: input, shape index: {}]
  %s4 = inlined_call_operand.vmem [shape: f32[4,1], index: 4, kind: input, shape index: {}]
  %s5 = inlined_call_operand.vmem [shape: f32[4,1], index: 5, kind: input, shape index: {}]
  %s6 = inlined_call_operand.vmem [shape: f32[2,4,384], index: 6, kind: output, shape index: {0}]
  %s7 = inlined_call_operand.vmem [shape: f32[2,4,1], index: 7, kind: output, shape index: {1}]
  %s8 = inlined_call_operand.vmem [shape: f32[2,4,1], index: 8, kind: output, shape index: {2}]
  %9 = xla_tuple %s6, %s7, %s8
  %s10 = sld [smem:[#allocation0]]
  $region73: #{basic_block_forward.4} parent=0
    _
  %s12 = ssub.s32 1, %s10
  %s13 = scalar_select 0, %s12, %s10
  loop: start=0, step=1, limit=4
  $region2: #{basic_block_forward.4} parent=0 // loop_pre_header
    _
  $region3: #{basic_block_forward.4} parent=0 // loop_header
    %s15 = sphi 0, %s19
    %p16 = scmp.ge.s32.totalorder %s15, 4
    %s25 = sphi 0, %s27
    %s28 = sphi 0, %s25
    %s29 = sphi 0, %s28
    %s45 = sphi 0, %s29
    %s49 = sphi 0, %s49
    %s51 = sphi 0, %s49
    %s52 = sphi 0, %s51
    %s66 = sphi 0, %s52
    %s70 = sphi 0, %s70
    %s72 = sphi 0, %s70
    %s73 = sphi 0, %s72
    %s87 = sphi 0, %s73
    %s91 = sphi 0, %s91
    %s93 = sphi 0, %s91
    %s94 = sphi 0, %s93
    %s108 = sphi 0, %s94
    %s112 = sphi 0, %s112
    %s114 = sphi 0, %s112
    %s115 = sphi 0, %s114
    %s129 = sphi 0, %s115
    %s133 = sphi 0, %s133
    %s135 = sphi 0, %s133
    %s136 = sphi 0, %s135
    %s150 = sphi 0, %s136
    %s156 = sphi 0, %s158
    %s159 = sphi 0, %s156
    %s160 = sphi 0, %s159
    %s176 = sphi 0, %s160
    %s182 = sphi 0, %s184
    %s185 = sphi 0, %s182
    %s186 = sphi 0, %s185
    %s202 = sphi 0, %s186
    %s208 = sphi 0, %s210
    %s211 = sphi 0, %s208
    %s212 = sphi 0, %s211
    %s228 = sphi 0, %s212
  $region4: #{basic_block_forward.4} parent=0 // loop_header_branch
    %18 = sbr.rel (%p16) target = $region8
  $region5: #{basic_block_forward.4} parent=0 // loop_body
    %s20 = ssub.s32 %s15, 1
    %s21 = ssub.s32 %s15, 2
    %s22 = sadd.s32 %s15, 1
    %s23 = ssub.s32 %s15, %s22
    %p24 = scmp.eq.s32.totalorder %s23, 0
    %s26 = sadd.s32 %s25, 1
    %s27 = scalar_select %p24, %s25, %s26
    %p30 = pneg %p24
    %p31 = scmp.eq.s32.totalorder %s15, 1
    %p32 = por %p30, %p31
    %p33 = scmp.ne.s32.totalorder %s25, %s28
    %p34 = scmp.eq.s32.totalorder %s15, 0
    %p35 = por %p33, %p34
    %p36 = scmp.ne.s32.totalorder %s25, %s28
    %p37 = scmp.eq.s32.totalorder %s20, 1
    %p38 = por %p36, %p37
    %p39 = scmp.ne.s32.totalorder %s28, %s29
    %p40 = scmp.eq.s32.totalorder %s20, 0
    %p41 = por %p39, %p40
    %p42 = scmp.ne.s32.totalorder %s28, %s29
    %p43 = scmp.eq.s32.totalorder %s21, 1
    %p44 = por %p42, %p43
    %p46 = scmp.ne.s32.totalorder %s29, %s45
    %p47 = scmp.eq.s32.totalorder %s21, 0
    %p48 = por %p46, %p47
    %s50 = sadd.s32 %s49, 1
    %p53 = scmp.eq.s32.totalorder %s15, 1
    %p54 = scmp.ne.s32.totalorder %s49, %s51
    %p55 = scmp.eq.s32.totalorder %s15, 0
    %p56 = por %p54, %p55
    %p57 = scmp.ne.s32.totalorder %s49, %s51
    %p58 = scmp.eq.s32.totalorder %s20, 1
    %p59 = por %p57, %p58
    %p60 = scmp.ne.s32.totalorder %s51, %s52
    %p61 = scmp.eq.s32.totalorder %s20, 0
    %p62 = por %p60, %p61
    %p63 = scmp.ne.s32.totalorder %s51, %s52
    %p64 = scmp.eq.s32.totalorder %s21, 1
    %p65 = por %p63, %p64
    %p67 = scmp.ne.s32.totalorder %s52, %s66
    %p68 = scmp.eq.s32.totalorder %s21, 0
    %p69 = por %p67, %p68
    %s71 = sadd.s32 %s70, 1
    %p74 = scmp.eq.s32.totalorder %s15, 1
    %p75 = scmp.ne.s32.totalorder %s70, %s72
    %p76 = scmp.eq.s32.totalorder %s15, 0
    %p77 = por %p75, %p76
    %p78 = scmp.ne.s32.totalorder %s70, %s72
    %p79 = scmp.eq.s32.totalorder %s20, 1
    %p80 = por %p78, %p79
    %p81 = scmp.ne.s32.totalorder %s72, %s73
    %p82 = scmp.eq.s32.totalorder %s20, 0
    %p83 = por %p81, %p82
    %p84 = scmp.ne.s32.totalorder %s72, %s73
    %p85 = scmp.eq.s32.totalorder %s21, 1
    %p86 = por %p84, %p85
    %p88 = scmp.ne.s32.totalorder %s73, %s87
    %p89 = scmp.eq.s32.totalorder %s21, 0
    %p90 = por %p88, %p89
    %s92 = sadd.s32 %s91, 1
    %p95 = scmp.eq.s32.totalorder %s15, 1
    %p96 = scmp.ne.s32.totalorder %s91, %s93
    %p97 = scmp.eq.s32.totalorder %s15, 0
    %p98 = por %p96, %p97
    %p99 = scmp.ne.s32.totalorder %s91, %s93
    %p100 = scmp.eq.s32.totalorder %s20, 1
    %p101 = por %p99, %p100
    %p102 = scmp.ne.s32.totalorder %s93, %s94
    %p103 = scmp.eq.s32.totalorder %s20, 0
    %p104 = por %p102, %p103
    %p105 = scmp.ne.s32.totalorder %s93, %s94
    %p106 = scmp.eq.s32.totalorder %s21, 1
    %p107 = por %p105, %p106
    %p109 = scmp.ne.s32.totalorder %s94, %s108
    %p110 = scmp.eq.s32.totalorder %s21, 0
    %p111 = por %p109, %p110
    %s113 = sadd.s32 %s112, 1
    %p116 = scmp.eq.s32.totalorder %s15, 1
    %p117 = scmp.ne.s32.totalorder %s112, %s114
    %p118 = scmp.eq.s32.totalorder %s15, 0
    %p119 = por %p117, %p118
    %p120 = scmp.ne.s32.totalorder %s112, %s114
    %p121 = scmp.eq.s32.totalorder %s20, 1
    %p122 = por %p120, %p121
    %p123 = scmp.ne.s32.totalorder %s114, %s115
    %p124 = scmp.eq.s32.totalorder %s20, 0
    %p125 = por %p123, %p124
    %p126 = scmp.ne.s32.totalorder %s114, %s115
    %p127 = scmp.eq.s32.totalorder %s21, 1
    %p128 = por %p126, %p127
    %p130 = scmp.ne.s32.totalorder %s115, %s129
    %p131 = scmp.eq.s32.totalorder %s21, 0
    %p132 = por %p130, %p131
    %s134 = sadd.s32 %s133, 1
    %p137 = scmp.eq.s32.totalorder %s15, 1
    %p138 = scmp.ne.s32.totalorder %s133, %s135
    %p139 = scmp.eq.s32.totalorder %s15, 0
    %p140 = por %p138, %p139
    %p141 = scmp.ne.s32.totalorder %s133, %s135
    %p142 = scmp.eq.s32.totalorder %s20, 1
    %p143 = por %p141, %p142
    %p144 = scmp.ne.s32.totalorder %s135, %s136
    %p145 = scmp.eq.s32.totalorder %s20, 0
    %p146 = por %p144, %p145
    %p147 = scmp.ne.s32.totalorder %s135, %s136
    %p148 = scmp.eq.s32.totalorder %s21, 1
    %p149 = por %p147, %p148
    %p151 = scmp.ne.s32.totalorder %s136, %s150
    %p152 = scmp.eq.s32.totalorder %s21, 0
    %p153 = por %p151, %p152
    %s154 = ssub.s32 %s15, %s22
    %p155 = scmp.eq.s32.totalorder %s154, 0
    %s157 = sadd.s32 %s156, 1
    %s158 = scalar_select %p155, %s156, %s157
    %p161 = pneg %p155
    %p162 = scmp.eq.s32.totalorder %s15, 1
    %p163 = por %p161, %p162
    %p164 = scmp.ne.s32.totalorder %s156, %s159
    %p165 = scmp.eq.s32.totalorder %s15, 0
    %p166 = por %p164, %p165
    %p167 = scmp.ne.s32.totalorder %s156, %s159
    %p168 = scmp.eq.s32.totalorder %s20, 1
    %p169 = por %p167, %p168
    %p170 = scmp.ne.s32.totalorder %s159, %s160
    %p171 = scmp.eq.s32.totalorder %s20, 0
    %p172 = por %p170, %p171
    %p173 = scmp.ne.s32.totalorder %s159, %s160
    %p174 = scmp.eq.s32.totalorder %s21, 1
    %p175 = por %p173, %p174
    %p177 = scmp.ne.s32.totalorder %s160, %s176
    %p178 = scmp.eq.s32.totalorder %s21, 0
    %p179 = por %p177, %p178
    %s180 = ssub.s32 %s15, %s22
    %p181 = scmp.eq.s32.totalorder %s180, 0
    %s183 = sadd.s32 %s182, 1
    %s184 = scalar_select %p181, %s182, %s183
    %p187 = pneg %p181
    %p188 = scmp.eq.s32.totalorder %s15, 1
    %p189 = por %p187, %p188
    %p190 = scmp.ne.s32.totalorder %s182, %s185
    %p191 = scmp.eq.s32.totalorder %s15, 0
    %p192 = por %p190, %p191
    %p193 = scmp.ne.s32.totalorder %s182, %s185
    %p194 = scmp.eq.s32.totalorder %s20, 1
    %p195 = por %p193, %p194
    %p196 = scmp.ne.s32.totalorder %s185, %s186
    %p197 = scmp.eq.s32.totalorder %s20, 0
    %p198 = por %p196, %p197
    %p199 = scmp.ne.s32.totalorder %s185, %s186
    %p200 = scmp.eq.s32.totalorder %s21, 1
    %p201 = por %p199, %p200
    %p203 = scmp.ne.s32.totalorder %s186, %s202
    %p204 = scmp.eq.s32.totalorder %s21, 0
    %p205 = por %p203, %p204
    %s206 = ssub.s32 %s15, %s22
    %p207 = scmp.eq.s32.totalorder %s206, 0
    %s209 = sadd.s32 %s208, 1
    %s210 = scalar_select %p207, %s208, %s209
    %p213 = pneg %p207
    %p214 = scmp.eq.s32.totalorder %s15, 1
    %p215 = por %p213, %p214
    %p216 = scmp.ne.s32.totalorder %s208, %s211
    %p217 = scmp.eq.s32.totalorder %s15, 0
    %p218 = por %p216, %p217
    %p219 = scmp.ne.s32.totalorder %s208, %s211
    %p220 = scmp.eq.s32.totalorder %s20, 1
    %p221 = por %p219, %p220
    %p222 = scmp.ne.s32.totalorder %s211, %s212
    %p223 = scmp.eq.s32.totalorder %s20, 0
    %p224 = por %p222, %p223
    %p225 = scmp.ne.s32.totalorder %s211, %s212
    %p226 = scmp.eq.s32.totalorder %s21, 1
    %p227 = por %p225, %p226
    %p229 = scmp.ne.s32.totalorder %s212, %s228
    %p230 = scmp.eq.s32.totalorder %s21, 0
    %p231 = por %p229, %p230
    %p232 = scmp.le.s32.totalorder 1, %s15
    %p233 = scmp.lt.s32.totalorder %s15, 3
    %p234 = pnand %p232, %p233
    %p235 = pneg %p234
    // Predicated region
    $region9: #{basic_block_forward.4} parent=5 // pred_check
      _
    $region10: #{basic_block_forward.4} parent=5 // pred_check_branch
      %237 = sbr.rel (%p234) target = $region12
    $region11: #{basic_block_forward.4} parent=5 // pred_region
      %s238 = ssub.s32 %s15, 1
      // Predicated region
      $region13: #{basic_block_forward.4} parent=11 // pred_check
        %p239 = pneg %p62
      $region14: #{basic_block_forward.4} parent=11 // pred_check_branch
        %241 = sbr.rel (%p239) target = $region16
      $region15: #{basic_block_forward.4} parent=11 // pred_region
        _
      $region16: #{basic_block_forward.4} parent=11 // pred_fallthru
        _
      // Predicated region
      $region17: #{basic_block_forward.4} parent=11 // pred_check
        %p242 = pneg %p83
      $region18: #{basic_block_forward.4} parent=11 // pred_check_branch
        %244 = sbr.rel (%p242) target = $region20
      $region19: #{basic_block_forward.4} parent=11 // pred_region
        _
      $region20: #{basic_block_forward.4} parent=11 // pred_fallthru
        _
      // Predicated region
      $region21: #{basic_block_forward.4} parent=11 // pred_check
        %p245 = pneg %p104
      $region22: #{basic_block_forward.4} parent=11 // pred_check_branch
        %247 = sbr.rel (%p245) target = $region24
      $region23: #{basic_block_forward.4} parent=11 // pred_region
        _
      $region24: #{basic_block_forward.4} parent=11 // pred_fallthru
        _
      // Predicated region
      $region25: #{basic_block_forward.4} parent=11 // pred_check
        %p248 = pneg %p125
      $region26: #{basic_block_forward.4} parent=11 // pred_check_branch
        %250 = sbr.rel (%p248) target = $region28
      $region27: #{basic_block_forward.4} parent=11 // pred_region
        _
      $region28: #{basic_block_forward.4} parent=11 // pred_fallthru
        _
      // Predicated region
      $region29: #{basic_block_forward.4} parent=11 // pred_check
        %p251 = pneg %p146
      $region30: #{basic_block_forward.4} parent=11 // pred_check_branch
        %253 = sbr.rel (%p251) target = $region32
      $region31: #{basic_block_forward.4} parent=11 // pred_region
        _
      $region32: #{basic_block_forward.4} parent=11 // pred_fallthru
        _
    $region12: #{basic_block_forward.4} parent=5 // pred_fallthru
      _
    %p254 = scmp.lt.s32.totalorder %s15, 2
    // Predicated region
    $region33: #{basic_block_forward.4} parent=5 // pred_check
      %p255 = pneg %p254
    $region34: #{basic_block_forward.4} parent=5 // pred_check_branch
      %257 = sbr.rel (%p255) target = $region36
    $region35: #{basic_block_forward.4} parent=5 // pred_region
      // Predicated region
      $region37: #{basic_block_forward.4} parent=35 // pred_check
        %p258 = pneg %p35
      $region38: #{basic_block_forward.4} parent=35 // pred_check_branch
        %260 = sbr.rel (%p258) target = $region40
      $region39: #{basic_block_forward.4} parent=35 // pred_region
        %p261 = scmp.lt.s32.totalorder %s15, 1
        %s262 = scalar_select %p261, %s15, 1
        %s263 = smul.addr %s262, 3
        %s264 = smul.addr %s263, 4
        %s265 = scalar_lea.vmem %s0, %s264
      $region40: #{basic_block_forward.4} parent=35 // pred_fallthru
        _
    $region36: #{basic_block_forward.4} parent=5 // pred_fallthru
      _
    %p266 = scmp.le.s32.totalorder 1, %s15
    %p267 = scmp.lt.s32.totalorder %s15, 3
    %p268 = pnand %p266, %p267
    %p269 = pneg %p268
    // Predicated region
    $region41: #{basic_block_forward.4} parent=5 // pred_check
      _
    $region42: #{basic_block_forward.4} parent=5 // pred_check_branch
      %271 = sbr.rel (%p268) target = $region44
    $region43: #{basic_block_forward.4} parent=5 // pred_region
      %s272 = ssub.s32 %s15, 1
      %p273 = scmp.lt.s32.totalorder %s20, 1
      %s274 = scalar_select %p273, %s20, 1
      %s275 = smul.addr %s274, 3
      %s276 = smul.addr %s275, 4
      %s277 = scalar_lea.vmem %s0, %s276
      %p278 = pneg %p41
      %p279 = pneg %p38
      %p280 = pneg %p62
      %p281 = pneg %p59
      %p282 = pneg %p83
      %p283 = pneg %p80
      %p284 = pneg %p104
      %p285 = pneg %p101
      %p286 = pneg %p125
      %p287 = pneg %p122
      %p288 = pneg %p146
      %p289 = pneg %p143
      %p290 = pneg %p172
      %p291 = pneg %p169
      %p292 = scmp.lt.s32.totalorder %s20, 1
      %s293 = scalar_select %p292, %s20, 1
      %s294 = smul.addr %s293, 3
      %s295 = smul.addr %s294, 4
      %s296 = scalar_lea.vmem %s6, %s295
      %p297 = pneg %p198
      %p298 = pneg %p195
      %p299 = scmp.lt.s32.totalorder %s20, 1
      %s300 = scalar_select %p299, %s20, 1
      %s301 = smul.addr %s300, 4
      %s302 = scalar_lea.vmem %s7, %s301
      %p303 = pneg %p224
      %p304 = pneg %p221
      %p305 = scmp.lt.s32.totalorder %s20, 1
      %s306 = scalar_select %p305, %s20, 1
      %s307 = smul.addr %s306, 4
      %s308 = scalar_lea.vmem %s8, %s307
      %p309 = scmp.lt.s32.totalorder %s20, 1
      %s310 = scalar_select %p309, %s20, 1
      %s311 = smul.addr %s310, 3
      %s312 = smul.addr %s311, 4
      %s313 = scalar_lea.vmem %s0, %s312
      %p314 = scmp.lt.s32.totalorder %s20, 1
      %s315 = scalar_select %p314, %s20, 1
      %s316 = smul.addr %s315, 3
      %s317 = smul.addr %s316, 4
      %s318 = scalar_lea.vmem %s6, %s317
      %p319 = scmp.lt.s32.totalorder %s20, 1
      %s320 = scalar_select %p319, %s20, 1
      %s321 = smul.addr %s320, 4
      %s322 = scalar_lea.vmem %s7, %s321
      %p323 = scmp.lt.s32.totalorder %s20, 1
      %s324 = scalar_select %p323, %s20, 1
      %s325 = smul.addr %s324, 4
      %s326 = scalar_lea.vmem %s8, %s325
      %v328 = vld [vmem:[%s313] sm:$0xff]
      %v329 = vld [vmem:[%s313 + $0x8] sm:$0xf]
      %v330 = vld [vmem:[%s4] sm:$0xf]
      %332 = vset.pattern.permute.xlu0 0
      %333 = vperm.xlu0 %332, %v330
      %v334 = vpop.permute.xlu0 %333
      %v336 = vunpack.c.l.s4 839922192
      %v337 = vunpack.c.0.s8 %v336
      %v338 = vlaneseq
      %v339 = vshrl.u32 %v338, 7
      %v340 = vsub.s32 %v337, %v339
      %v341 = vrot.slane %v334, %v340
      %v343 = vmul.f32 %v328, %v341
      %v344 = vmul.f32 %v329, %v341
      %v345 = vld [vmem:[%s5] sm:$0xf]
      %347 = vset.pattern.permute.xlu0 0
      %348 = vperm.xlu0 %347, %v345
      %v349 = vpop.permute.xlu0 %348
      %v351 = vunpack.c.l.s4 839922192
      %v352 = vunpack.c.0.s8 %v351
      %v353 = vlaneseq
      %v354 = vshrl.u32 %v353, 7
      %v355 = vsub.s32 %v352, %v354
      %v356 = vrot.slane %v349, %v355
      %v358 = vadd.f32 %v343, %v356
      %v359 = vadd.f32 %v344, %v356
      %v360 = vmax.f32 %v358, 0.0
      %v361 = vmax.f32 %v359, 0.0
      %v362 = vld [vmem:[%s3] sm:$0x7]
      %v364 = vlaneseq
      %v365 = vshrl.u32 %v364, 7
      %v366 = vsub.s32 0, %v365
      %v367 = vrot.slane %v362, %v366
      %v368 = vlaneseq
      %v369 = vshrl.u32 %v368, 7
      %v370 = vsub.s32 1, %v369
      %v371 = vrot.slane %v362, %v370
      %v372 = vlaneseq
      %v373 = vshrl.u32 %v372, 7
      %v374 = vsub.s32 2, %v373
      %v375 = vrot.slane %v362, %v374
      %v377 = vcombine.low %v367, %v371
      %v379 = vmul.f32 %v360, %v377
      %v380 = vmul.f32 %v361, %v375
      %v382 = vcombine.high %v379, %v379
      %v384 = vpack.c.bf16 %v379, %v379
      %v385 = vpack.c.bf16 %v382, %v382
      %v386 = vpack.c.bf16 %v380, %v380
      %388 = vrot.lane.b32.xlu0 %v386, 19
      %v389 = vpop.permute.xlu0 %388
      %392 = vrot.lane.b32.xlu0 %v384, 19
      %v393 = vpop.permute.xlu0 %392
      %394 = vrot.lane.b32.xlu0 %v385, 19
      %v395 = vpop.permute.xlu0 %394
      %vm396 = vcmask 154624
      %v397 = vsel %vm396, %v393, %v395
      %v398 = vsel %vm396, %v395, %v389
      %vm399 = vcmask 154624
      %v402 = vsel %vm399, %v389, %v393
      %v403 = vld [vmem:[%s1] sm:$0x3]
      %404 = vrot.lane.b32.xlu0 %v386, 18
      %v405 = vpop.permute.xlu0 %404
      %406 = vrot.lane.b32.xlu0 %v384, 18
      %v407 = vpop.permute.xlu0 %406
      %408 = vrot.lane.b32.xlu0 %v385, 18
      %v409 = vpop.permute.xlu0 %408
      %vm410 = vcmask 146432
      %v411 = vsel %vm410, %v407, %v409
      %v412 = vsel %vm410, %v409, %v405
      %vm413 = vcmask 146432
      %v416 = vsel %vm413, %v405, %v407
      %s417 = scalar_lea.vmem %s1, 2
      %v418 = vld [vmem:[%s417] sm:$0x3]
      %vm419 = vcmask 31744
      %v421 = vsel %vm419, %v418, 0
      %vm423 = vcmask 1041408
      %v424 = vsel %vm423, %v416, 0
      %v427 = vsel %vm423, %v411, 0
      %v430 = vsel %vm423, %v412, 0
      %432 = vmatprep.subr.bf16.mxu0 %v427
      %433 = vmatpush1.bf16.msra.mxu0 %v424
      %434 = vmatprep.subr.bf16.mxu0 0
      %435 = vmatpush1.bf16.msra.mxu0 0
      %436 = vmatprep.subr.bf16.mxu0 0
      %437 = vmatpush1.bf16.msra.mxu0 0
      %438 = vmatprep.subr.bf16.mxu0 0
      %439 = vmatpush1.bf16.msra.mxu0 0
      %440 = vmatprep.subr.bf16.mxu0 0
      %441 = vmatpush1.bf16.msra.mxu0 0
      %442 = vmatprep.subr.bf16.mxu0 0
      %443 = vmatpush1.bf16.msra.mxu0 0
      %444 = vmatprep.subr.bf16.mxu0 0
      %445 = vmatpush1.bf16.msra.mxu0 0
      %446 = vmatprep.subr.bf16.mxu0 0
      %447 = vmatpush1.bf16.msra.mxu0 0
      %448 = vmatprep.subr.bf16.mxu0 0
      %449 = vmatpush1.bf16.msra.mxu0 0
      %450 = vmatprep.subr.bf16.mxu0 0
      %451 = vmatpush1.bf16.msra.mxu0 0
      %452 = vmatprep.subr.bf16.mxu0 0
      %453 = vmatpush1.bf16.msra.mxu0 0
      %454 = vmatprep.subr.bf16.mxu0 0
      %455 = vmatpush1.bf16.msra.mxu0 0
      %456 = vmatprep.subr.bf16.mxu0 0
      %457 = vmatpush1.bf16.msra.mxu0 0
      %458 = vmatprep.subr.bf16.mxu0 0
      %459 = vmatpush1.bf16.msra.mxu0 0
      %460 = vmatprep.subr.bf16.mxu0 0
      %461 = vmatpush1.bf16.msra.mxu0 0
      %462 = vmatprep.subr.bf16.mxu0 0
      %463 = vmatpush1.bf16.msra.mxu0 0
      %464 = vmatprep.mubr.bf16.mxu0 0
      %465 = vmatmul.mubr.bf16.gmra.mrb[0].mxu0 %v421
      %v466 = vpop.f32.mrb[0].mxu0
      %v467 = vadd.f32 0.0, %v466
      %v468 = vpop.f32.mrb[0].mxu0
      %v469 = vadd.f32 0.0, %v468
      %v470 = vpop.f32.mrb[0].mxu0
      %v471 = vpop.f32.mrb[0].mxu0
      %472 = vdwg.mxu0
      %473 = vmatprep.subr.bf16.mxu0 0
      %474 = vmatpush1.bf16.msra.mxu0 %v430
      %475 = vmatprep.subr.bf16.mxu0 0
      %476 = vmatpush1.bf16.msra.mxu0 0
      %477 = vmatprep.subr.bf16.mxu0 0
      %478 = vmatpush1.bf16.msra.mxu0 0
      %479 = vmatprep.subr.bf16.mxu0 0
      %480 = vmatpush1.bf16.msra.mxu0 0
      %481 = vmatprep.subr.bf16.mxu0 0
      %482 = vmatpush1.bf16.msra.mxu0 0
      %483 = vmatprep.subr.bf16.mxu0 0
      %484 = vmatpush1.bf16.msra.mxu0 0
      %485 = vmatprep.subr.bf16.mxu0 0
      %486 = vmatpush1.bf16.msra.mxu0 0
      %487 = vmatprep.subr.bf16.mxu0 0
      %488 = vmatpush1.bf16.msra.mxu0 0
      %489 = vmatprep.subr.bf16.mxu0 0
      %490 = vmatpush1.bf16.msra.mxu0 0
      %491 = vmatprep.subr.bf16.mxu0 0
      %492 = vmatpush1.bf16.msra.mxu0 0
      %493 = vmatprep.subr.bf16.mxu0 0
      %494 = vmatpush1.bf16.msra.mxu0 0
      %495 = vmatprep.subr.bf16.mxu0 0
      %496 = vmatpush1.bf16.msra.mxu0 0
      %497 = vmatprep.subr.bf16.mxu0 0
      %498 = vmatpush1.bf16.msra.mxu0 0
      %499 = vmatprep.subr.bf16.mxu0 0
      %500 = vmatpush1.bf16.msra.mxu0 0
      %501 = vmatprep.subr.bf16.mxu0 0
      %502 = vmatpush1.bf16.msra.mxu0 0
      %503 = vmatprep.subr.bf16.mxu0 0
      %504 = vmatpush1.bf16.msra.mxu0 0
      %505 = vmatprep.mubr.bf16.mxu0 0
      %506 = vmatmul.mubr.bf16.gmra.mrb[0].mxu0 %v421
      %v507 = vpop.f32.mrb[0].mxu0
      %v508 = vadd.f32 0.0, %v507
      %v509 = vpop.f32.mrb[0].mxu0
      %v510 = vpop.f32.mrb[0].mxu0
      %v511 = vpop.f32.mrb[0].mxu0
      %512 = vdwg.mxu0
      %v514 = vsel %vm419, %v403, 0
      %v516 = vsel %vm423, %v402, 0
      %v519 = vsel %vm423, %v397, 0
      %v522 = vsel %vm423, %v398, 0
      %524 = vmatprep.subr.bf16.mxu0 %v519
      %525 = vmatpush1.bf16.msra.mxu0 %v516
      %526 = vmatprep.subr.bf16.mxu0 0
      %527 = vmatpush1.bf16.msra.mxu0 0
      %528 = vmatprep.subr.bf16.mxu0 0
      %529 = vmatpush1.bf16.msra.mxu0 0
      %530 = vmatprep.subr.bf16.mxu0 0
      %531 = vmatpush1.bf16.msra.mxu0 0
      %532 = vmatprep.subr.bf16.mxu0 0
      %533 = vmatpush1.bf16.msra.mxu0 0
      %534 = vmatprep.subr.bf16.mxu0 0
      %535 = vmatpush1.bf16.msra.mxu0 0
      %536 = vmatprep.subr.bf16.mxu0 0
      %537 = vmatpush1.bf16.msra.mxu0 0
      %538 = vmatprep.subr.bf16.mxu0 0
      %539 = vmatpush1.bf16.msra.mxu0 0
      %540 = vmatprep.subr.bf16.mxu0 0
      %541 = vmatpush1.bf16.msra.mxu0 0
      %542 = vmatprep.subr.bf16.mxu0 0
      %543 = vmatpush1.bf16.msra.mxu0 0
      %544 = vmatprep.subr.bf16.mxu0 0
      %545 = vmatpush1.bf16.msra.mxu0 0
      %546 = vmatprep.subr.bf16.mxu0 0
      %547 = vmatpush1.bf16.msra.mxu0 0
      %548 = vmatprep.subr.bf16.mxu0 0
      %549 = vmatpush1.bf16.msra.mxu0 0
      %550 = vmatprep.subr.bf16.mxu0 0
      %551 = vmatpush1.bf16.msra.mxu0 0
      %552 = vmatprep.subr.bf16.mxu0 0
      %553 = vmatpush1.bf16.msra.mxu0 0
      %554 = vmatprep.subr.bf16.mxu0 0
      %555 = vmatpush1.bf16.msra.mxu0 0
      %556 = vmatprep.mubr.bf16.mxu0 0
      %557 = vmatmul.mubr.bf16.gmra.mrb[0].mxu0 %v514
      %v558 = vpop.f32.mrb[0].mxu0
      %v559 = vadd.f32 %v467, %v558
      %v560 = vpop.f32.mrb[0].mxu0
      %v561 = vadd.f32 %v469, %v560
      %v562 = vpop.f32.mrb[0].mxu0
      %v563 = vpop.f32.mrb[0].mxu0
      %564 = vdwg.mxu0
      %565 = vmatprep.subr.bf16.mxu0 0
      %566 = vmatpush1.bf16.msra.mxu0 %v522
      %567 = vmatprep.subr.bf16.mxu0 0
      %568 = vmatpush1.bf16.msra.mxu0 0
      %569 = vmatprep.subr.bf16.mxu0 0
      %570 = vmatpush1.bf16.msra.mxu0 0
      %571 = vmatprep.subr.bf16.mxu0 0
      %572 = vmatpush1.bf16.msra.mxu0 0
      %573 = vmatprep.subr.bf16.mxu0 0
      %574 = vmatpush1.bf16.msra.mxu0 0
      %575 = vmatprep.subr.bf16.mxu0 0
      %576 = vmatpush1.bf16.msra.mxu0 0
      %577 = vmatprep.subr.bf16.mxu0 0
      %578 = vmatpush1.bf16.msra.mxu0 0
      %579 = vmatprep.subr.bf16.mxu0 0
      %580 = vmatpush1.bf16.msra.mxu0 0
      %581 = vmatprep.subr.bf16.mxu0 0
      %582 = vmatpush1.bf16.msra.mxu0 0
      %583 = vmatprep.subr.bf16.mxu0 0
      %584 = vmatpush1.bf16.msra.mxu0 0
      %585 = vmatprep.subr.bf16.mxu0 0
      %586 = vmatpush1.bf16.msra.mxu0 0
      %587 = vmatprep.subr.bf16.mxu0 0
      %588 = vmatpush1.bf16.msra.mxu0 0
      %589 = vmatprep.subr.bf16.mxu0 0
      %590 = vmatpush1.bf16.msra.mxu0 0
      %591 = vmatprep.subr.bf16.mxu0 0
      %592 = vmatpush1.bf16.msra.mxu0 0
      %593 = vmatprep.subr.bf16.mxu0 0
      %594 = vmatpush1.bf16.msra.mxu0 0
      %595 = vmatprep.subr.bf16.mxu0 0
      %596 = vmatpush1.bf16.msra.mxu0 0
      %597 = vmatprep.mubr.bf16.mxu0 0
      %598 = vmatmul.mubr.bf16.gmra.mrb[0].mxu0 %v514
      %v599 = vpop.f32.mrb[0].mxu0
      %v600 = vadd.f32 %v508, %v599
      %v601 = vpop.f32.mrb[0].mxu0
      %v602 = vpop.f32.mrb[0].mxu0
      %v603 = vpop.f32.mrb[0].mxu0
      %604 = vdwg.mxu0
      %605 = vrot.lane.b32.xlu0 %v386, 17
      %v606 = vpop.permute.xlu0 %605
      %607 = vrot.lane.b32.xlu0 %v384, 17
      %v608 = vpop.permute.xlu0 %607
      %609 = vrot.lane.b32.xlu0 %v385, 17
      %v610 = vpop.permute.xlu0 %609
      %vm611 = vcmask 138240
      %v612 = vsel %vm611, %v608, %v610
      %v613 = vsel %vm611, %v610, %v606
      %vm614 = vcmask 138240
      %v617 = vsel %vm614, %v606, %v608
      %s618 = scalar_lea.vmem %s1, 4
      %v619 = vld [vmem:[%s618] sm:$0x3]
      %v621 = vsel %vm419, %v619, 0
      %v623 = vsel %vm423, %v617, 0
      %v626 = vsel %vm423, %v612, 0
      %v629 = vsel %vm423, %v613, 0
      %631 = vmatprep.subr.bf16.mxu0 %v626
      %632 = vmatpush1.bf16.msra.mxu0 %v623
      %633 = vmatprep.subr.bf16.mxu0 0
      %634 = vmatpush1.bf16.msra.mxu0 0
      %635 = vmatprep.subr.bf16.mxu0 0
      %636 = vmatpush1.bf16.msra.mxu0 0
      %637 = vmatprep.subr.bf16.mxu0 0
      %638 = vmatpush1.bf16.msra.mxu0 0
      %639 = vmatprep.subr.bf16.mxu0 0
      %640 = vmatpush1.bf16.msra.mxu0 0
      %641 = vmatprep.subr.bf16.mxu0 0
      %642 = vmatpush1.bf16.msra.mxu0 0
      %643 = vmatprep.subr.bf16.mxu0 0
      %644 = vmatpush1.bf16.msra.mxu0 0
      %645 = vmatprep.subr.bf16.mxu0 0
      %646 = vmatpush1.bf16.msra.mxu0 0
      %647 = vmatprep.subr.bf16.mxu0 0
      %648 = vmatpush1.bf16.msra.mxu0 0
      %649 = vmatprep.subr.bf16.mxu0 0
      %650 = vmatpush1.bf16.msra.mxu0 0
      %651 = vmatprep.subr.bf16.mxu0 0
      %652 = vmatpush1.bf16.msra.mxu0 0
      %653 = vmatprep.subr.bf16.mxu0 0
      %654 = vmatpush1.bf16.msra.mxu0 0
      %655 = vmatprep.subr.bf16.mxu0 0
      %656 = vmatpush1.bf16.msra.mxu0 0
      %657 = vmatprep.subr.bf16.mxu0 0
      %658 = vmatpush1.bf16.msra.mxu0 0
      %659 = vmatprep.subr.bf16.mxu0 0
      %660 = vmatpush1.bf16.msra.mxu0 0
      %661 = vmatprep.subr.bf16.mxu0 0
      %662 = vmatpush1.bf16.msra.mxu0 0
      %663 = vmatprep.mubr.bf16.mxu0 0
      %664 = vmatmul.mubr.bf16.gmra.mrb[0].mxu0 %v621
      %v665 = vpop.f32.mrb[0].mxu0
      %v666 = vadd.f32 0.0, %v665
      %v667 = vpop.f32.mrb[0].mxu0
      %v668 = vadd.f32 0.0, %v667
      %v669 = vpop.f32.mrb[0].mxu0
      %v670 = vpop.f32.mrb[0].mxu0
      %671 = vdwg.mxu0
      %672 = vmatprep.subr.bf16.mxu0 0
      %673 = vmatpush1.bf16.msra.mxu0 %v629
      %674 = vmatprep.subr.bf16.mxu0 0
      %675 = vmatpush1.bf16.msra.mxu0 0
      %676 = vmatprep.subr.bf16.mxu0 0
      %677 = vmatpush1.bf16.msra.mxu0 0
      %678 = vmatprep.subr.bf16.mxu0 0
      %679 = vmatpush1.bf16.msra.mxu0 0
      %680 = vmatprep.subr.bf16.mxu0 0
      %681 = vmatpush1.bf16.msra.mxu0 0
      %682 = vmatprep.subr.bf16.mxu0 0
      %683 = vmatpush1.bf16.msra.mxu0 0
      %684 = vmatprep.subr.bf16.mxu0 0
      %685 = vmatpush1.bf16.msra.mxu0 0
      %686 = vmatprep.subr.bf16.mxu0 0
      %687 = vmatpush1.bf16.msra.mxu0 0
      %688 = vmatprep.subr.bf16.mxu0 0
      %689 = vmatpush1.bf16.msra.mxu0 0
      %690 = vmatprep.subr.bf16.mxu0 0
      %691 = vmatpush1.bf16.msra.mxu0 0
      %692 = vmatprep.subr.bf16.mxu0 0
      %693 = vmatpush1.bf16.msra.mxu0 0
      %694 = vmatprep.subr.bf16.mxu0 0
      %695 = vmatpush1.bf16.msra.mxu0 0
      %696 = vmatprep.subr.bf16.mxu0 0
      %697 = vmatpush1.bf16.msra.mxu0 0
      %698 = vmatprep.subr.bf16.mxu0 0
      %699 = vmatpush1.bf16.msra.mxu0 0
      %700 = vmatprep.subr.bf16.mxu0 0
      %701 = vmatpush1.bf16.msra.mxu0 0
      %702 = vmatprep.subr.bf16.mxu0 0
      %703 = vmatpush1.bf16.msra.mxu0 0
      %704 = vmatprep.mubr.bf16.mxu0 0
      %705 = vmatmul.mubr.bf16.gmra.mrb[0].mxu0 %v621
      %v706 = vpop.f32.mrb[0].mxu0
      %v707 = vadd.f32 0.0, %v706
      %v708 = vpop.f32.mrb[0].mxu0
      %v709 = vpop.f32.mrb[0].mxu0
      %v710 = vpop.f32.mrb[0].mxu0
      %711 = vdwg.mxu0
      %v712 = vadd.f32 %v559, %v666
      %v713 = vadd.f32 %v561, %v668
      %v714 = vadd.f32 %v600, %v707
      %715 = vrot.lane.b32.xlu0 %v386, 1
      %v716 = vpop.permute.xlu0 %715
      %717 = vrot.lane.b32.xlu0 %v384, 1
      %v718 = vpop.permute.xlu0 %717
      %719 = vrot.lane.b32.xlu0 %v385, 1
      %v720 = vpop.permute.xlu0 %719
      %vm721 = vcmask 7168
      %v722 = vsel %vm721, %v718, %v720
      %v723 = vsel %vm721, %v720, %v716
      %vm724 = vcmask 7168
      %v727 = vsel %vm724, %v716, %v718
      %s728 = scalar_lea.vmem %s1, 6
      %v729 = vld [vmem:[%s728] sm:$0x3]
      %v731 = vsel %vm419, %v729, 0
      %v733 = vsel %vm423, %v727, 0
      %v736 = vsel %vm423, %v722, 0
      %v739 = vsel %vm423, %v723, 0
      %741 = vmatprep.subr.bf16.mxu0 %v736
      %742 = vmatpush1.bf16.msra.mxu0 %v733
      %743 = vmatprep.subr.bf16.mxu0 0
      %744 = vmatpush1.bf16.msra.mxu0 0
      %745 = vmatprep.subr.bf16.mxu0 0
      %746 = vmatpush1.bf16.msra.mxu0 0
      %747 = vmatprep.subr.bf16.mxu0 0
      %748 = vmatpush1.bf16.msra.mxu0 0
      %749 = vmatprep.subr.bf16.mxu0 0
      %750 = vmatpush1.bf16.msra.mxu0 0
      %751 = vmatprep.subr.bf16.mxu0 0
      %752 = vmatpush1.bf16.msra.mxu0 0
      %753 = vmatprep.subr.bf16.mxu0 0
      %754 = vmatpush1.bf16.msra.mxu0 0
      %755 = vmatprep.subr.bf16.mxu0 0
      %756 = vmatpush1.bf16.msra.mxu0 0
      %757 = vmatprep.subr.bf16.mxu0 0
      %758 = vmatpush1.bf16.msra.mxu0 0
      %759 = vmatprep.subr.bf16.mxu0 0
      %760 = vmatpush1.bf16.msra.mxu0 0
      %761 = vmatprep.subr.bf16.mxu0 0
      %762 = vmatpush1.bf16.msra.mxu0 0
      %763 = vmatprep.subr.bf16.mxu0 0
      %764 = vmatpush1.bf16.msra.mxu0 0
      %765 = vmatprep.subr.bf16.mxu0 0
      %766 = vmatpush1.bf16.msra.mxu0 0
      %767 = vmatprep.subr.bf16.mxu0 0
      %768 = vmatpush1.bf16.msra.mxu0 0
      %769 = vmatprep.subr.bf16.mxu0 0
      %770 = vmatpush1.bf16.msra.mxu0 0
      %771 = vmatprep.subr.bf16.mxu0 0
      %772 = vmatpush1.bf16.msra.mxu0 0
      %773 = vmatprep.mubr.bf16.mxu0 0
      %774 = vmatmul.mubr.bf16.gmra.mrb[0].mxu0 %v731
      %v775 = vpop.f32.mrb[0].mxu0
      %v776 = vadd.f32 0.0, %v775
      %v777 = vpop.f32.mrb[0].mxu0
      %v778 = vadd.f32 0.0, %v777
      %v779 = vpop.f32.mrb[0].mxu0
      %v780 = vpop.f32.mrb[0].mxu0
      %781 = vdwg.mxu0
      %782 = vmatprep.subr.bf16.mxu0 0
      %783 = vmatpush1.bf16.msra.mxu0 %v739
      %784 = vmatprep.subr.bf16.mxu0 0
      %785 = vmatpush1.bf16.msra.mxu0 0
      %786 = vmatprep.subr.bf16.mxu0 0
      %787 = vmatpush1.bf16.msra.mxu0 0
      %788 = vmatprep.subr.bf16.mxu0 0
      %789 = vmatpush1.bf16.msra.mxu0 0
      %790 = vmatprep.subr.bf16.mxu0 0
      %791 = vmatpush1.bf16.msra.mxu0 0
      %792 = vmatprep.subr.bf16.mxu0 0
      %793 = vmatpush1.bf16.msra.mxu0 0
      %794 = vmatprep.subr.bf16.mxu0 0
      %795 = vmatpush1.bf16.msra.mxu0 0
      %796 = vmatprep.subr.bf16.mxu0 0
      %797 = vmatpush1.bf16.msra.mxu0 0
      %798 = vmatprep.subr.bf16.mxu0 0
      %799 = vmatpush1.bf16.msra.mxu0 0
      %800 = vmatprep.subr.bf16.mxu0 0
      %801 = vmatpush1.bf16.msra.mxu0 0
      %802 = vmatprep.subr.bf16.mxu0 0
      %803 = vmatpush1.bf16.msra.mxu0 0
      %804 = vmatprep.subr.bf16.mxu0 0
      %805 = vmatpush1.bf16.msra.mxu0 0
      %806 = vmatprep.subr.bf16.mxu0 0
      %807 = vmatpush1.bf16.msra.mxu0 0
      %808 = vmatprep.subr.bf16.mxu0 0
      %809 = vmatpush1.bf16.msra.mxu0 0
      %810 = vmatprep.subr.bf16.mxu0 0
      %811 = vmatpush1.bf16.msra.mxu0 0
      %812 = vmatprep.subr.bf16.mxu0 0
      %813 = vmatpush1.bf16.msra.mxu0 0
      %814 = vmatprep.mubr.bf16.mxu0 0
      %815 = vmatmul.mubr.bf16.gmra.mrb[0].mxu0 %v731
      %v816 = vpop.f32.mrb[0].mxu0
      %v817 = vadd.f32 0.0, %v816
      %v818 = vpop.f32.mrb[0].mxu0
      %v819 = vpop.f32.mrb[0].mxu0
      %v820 = vpop.f32.mrb[0].mxu0
      %821 = vdwg.mxu0
      %v822 = vadd.f32 %v712, %v776
      %v823 = vadd.f32 %v713, %v778
      %v824 = vadd.f32 %v714, %v817
      %s825 = scalar_lea.vmem %s1, 8
      %v826 = vld [vmem:[%s825] sm:$0x3]
      %v828 = vsel %vm419, %v826, 0
      %v831 = vsel %vm423, %v384, 0
      %v834 = vsel %vm423, %v385, 0
      %v837 = vsel %vm423, %v386, 0
      %839 = vmatprep.subr.bf16.mxu0 %v834
      %840 = vmatpush1.bf16.msra.mxu0 %v831
      %841 = vmatprep.subr.bf16.mxu0 0
      %842 = vmatpush1.bf16.msra.mxu0 0
      %843 = vmatprep.subr.bf16.mxu0 0
      %844 = vmatpush1.bf16.msra.mxu0 0
      %845 = vmatprep.subr.bf16.mxu0 0
      %846 = vmatpush1.bf16.msra.mxu0 0
      %847 = vmatprep.subr.bf16.mxu0 0
      %848 = vmatpush1.bf16.msra.mxu0 0
      %849 = vmatprep.subr.bf16.mxu0 0
      %850 = vmatpush1.bf16.msra.mxu0 0
      %851 = vmatprep.subr.bf16.mxu0 0
      %852 = vmatpush1.bf16.msra.mxu0 0
      %853 = vmatprep.subr.bf16.mxu0 0
      %854 = vmatpush1.bf16.msra.mxu0 0
      %855 = vmatprep.subr.bf16.mxu0 0
      %856 = vmatpush1.bf16.msra.mxu0 0
      %857 = vmatprep.subr.bf16.mxu0 0
      %858 = vmatpush1.bf16.msra.mxu0 0
      %859 = vmatprep.subr.bf16.mxu0 0
      %860 = vmatpush1.bf16.msra.mxu0 0
      %861 = vmatprep.subr.bf16.mxu0 0
      %862 = vmatpush1.bf16.msra.mxu0 0
      %863 = vmatprep.subr.bf16.mxu0 0
      %864 = vmatpush1.bf16.msra.mxu0 0
      %865 = vmatprep.subr.bf16.mxu0 0
      %866 = vmatpush1.bf16.msra.mxu0 0
      %867 = vmatprep.subr.bf16.mxu0 0
      %868 = vmatpush1.bf16.msra.mxu0 0
      %869 = vmatprep.subr.bf16.mxu0 0
      %870 = vmatpush1.bf16.msra.mxu0 0
      %871 = vmatprep.mubr.bf16.mxu0 0
      %872 = vmatmul.mubr.bf16.gmra.mrb[0].mxu0 %v828
      %v873 = vpop.f32.mrb[0].mxu0
      %v874 = vadd.f32 0.0, %v873
      %v875 = vpop.f32.mrb[0].mxu0
      %v876 = vadd.f32 0.0, %v875
      %v877 = vpop.f32.mrb[0].mxu0
      %v878 = vpop.f32.mrb[0].mxu0
      %879 = vdwg.mxu0
      %880 = vmatprep.subr.bf16.mxu0 0
      %881 = vmatpush1.bf16.msra.mxu0 %v837
      %882 = vmatprep.subr.bf16.mxu0 0
      %883 = vmatpush1.bf16.msra.mxu0 0
      %884 = vmatprep.subr.bf16.mxu0 0
      %885 = vmatpush1.bf16.msra.mxu0 0
      %886 = vmatprep.subr.bf16.mxu0 0
      %887 = vmatpush1.bf16.msra.mxu0 0
      %888 = vmatprep.subr.bf16.mxu0 0
      %889 = vmatpush1.bf16.msra.mxu0 0
      %890 = vmatprep.subr.bf16.mxu0 0
      %891 = vmatpush1.bf16.msra.mxu0 0
      %892 = vmatprep.subr.bf16.mxu0 0
      %893 = vmatpush1.bf16.msra.mxu0 0
      %894 = vmatprep.subr.bf16.mxu0 0
      %895 = vmatpush1.bf16.msra.mxu0 0
      %896 = vmatprep.subr.bf16.mxu0 0
      %897 = vmatpush1.bf16.msra.mxu0 0
      %898 = vmatprep.subr.bf16.mxu0 0
      %899 = vmatpush1.bf16.msra.mxu0 0
      %900 = vmatprep.subr.bf16.mxu0 0
      %901 = vmatpush1.bf16.msra.mxu0 0
      %902 = vmatprep.subr.bf16.mxu0 0
      %903 = vmatpush1.bf16.msra.mxu0 0
      %904 = vmatprep.subr.bf16.mxu0 0
      %905 = vmatpush1.bf16.msra.mxu0 0
      %906 = vmatprep.subr.bf16.mxu0 0
      %907 = vmatpush1.bf16.msra.mxu0 0
      %908 = vmatprep.subr.bf16.mxu0 0
      %909 = vmatpush1.bf16.msra.mxu0 0
      %910 = vmatprep.subr.bf16.mxu0 0
      %911 = vmatpush1.bf16.msra.mxu0 0
      %912 = vmatprep.mubr.bf16.mxu0 0
      %913 = vmatmul.mubr.bf16.gmra.mrb[0].mxu0 %v828
      %v914 = vpop.f32.mrb[0].mxu0
      %v915 = vadd.f32 0.0, %v914
      %v916 = vpop.f32.mrb[0].mxu0
      %v917 = vpop.f32.mrb[0].mxu0
      %v918 = vpop.f32.mrb[0].mxu0
      %919 = vdwg.mxu0
      %v920 = vadd.f32 %v822, %v874
      %v921 = vadd.f32 %v823, %v876
      %v922 = vadd.f32 %v824, %v915
      %923 = vrot.lane.b32.xlu0 %v384, 127
      %v924 = vpop.permute.xlu0 %923
      %925 = vrot.lane.b32.xlu0 %v385, 127
      %v926 = vpop.permute.xlu0 %925
      %927 = vrot.lane.b32.xlu0 %v386, 127
      %v928 = vpop.permute.xlu0 %927
      %vm929 = vcmask 1039360
      %v930 = vsel %vm929, %v924, %v926
      %v931 = vsel %vm929, %v926, %v928
      %vm932 = vcmask 1039360
      %v935 = vsel %vm932, %v928, %v924
      %s936 = scalar_lea.vmem %s1, 10
      %v937 = vld [vmem:[%s936] sm:$0x3]
      %v939 = vsel %vm419, %v937, 0
      %v942 = vsel %vm423, %v930, 0
      %v945 = vsel %vm423, %v931, 0
      %v947 = vsel %vm423, %v935, 0
      %949 = vmatprep.subr.bf16.mxu0 %v945
      %950 = vmatpush1.bf16.msra.mxu0 %v942
      %951 = vmatprep.subr.bf16.mxu0 0
      %952 = vmatpush1.bf16.msra.mxu0 0
      %953 = vmatprep.subr.bf16.mxu0 0
      %954 = vmatpush1.bf16.msra.mxu0 0
      %955 = vmatprep.subr.bf16.mxu0 0
      %956 = vmatpush1.bf16.msra.mxu0 0
      %957 = vmatprep.subr.bf16.mxu0 0
      %958 = vmatpush1.bf16.msra.mxu0 0
      %959 = vmatprep.subr.bf16.mxu0 0
      %960 = vmatpush1.bf16.msra.mxu0 0
      %961 = vmatprep.subr.bf16.mxu0 0
      %962 = vmatpush1.bf16.msra.mxu0 0
      %963 = vmatprep.subr.bf16.mxu0 0
      %964 = vmatpush1.bf16.msra.mxu0 0
      %965 = vmatprep.subr.bf16.mxu0 0
      %966 = vmatpush1.bf16.msra.mxu0 0
      %967 = vmatprep.subr.bf16.mxu0 0
      %968 = vmatpush1.bf16.msra.mxu0 0
      %969 = vmatprep.subr.bf16.mxu0 0
      %970 = vmatpush1.bf16.msra.mxu0 0
      %971 = vmatprep.subr.bf16.mxu0 0
      %972 = vmatpush1.bf16.msra.mxu0 0
      %973 = vmatprep.subr.bf16.mxu0 0
      %974 = vmatpush1.bf16.msra.mxu0 0
      %975 = vmatprep.subr.bf16.mxu0 0
      %976 = vmatpush1.bf16.msra.mxu0 0
      %977 = vmatprep.subr.bf16.mxu0 0
      %978 = vmatpush1.bf16.msra.mxu0 0
      %979 = vmatprep.subr.bf16.mxu0 0
      %980 = vmatpush1.bf16.msra.mxu0 0
      %981 = vmatprep.mubr.bf16.mxu0 0
      %982 = vmatmul.mubr.bf16.gmra.mrb[0].mxu0 %v939
      %v983 = vpop.f32.mrb[0].mxu0
      %v984 = vadd.f32 0.0, %v983
      %v985 = vpop.f32.mrb[0].mxu0
      %v986 = vadd.f32 0.0, %v985
      %v987 = vpop.f32.mrb[0].mxu0
      %v988 = vpop.f32.mrb[0].mxu0
      %989 = vdwg.mxu0
      %990 = vmatprep.subr.bf16.mxu0 0
      %991 = vmatpush1.bf16.msra.mxu0 %v947
      %992 = vmatprep.subr.bf16.mxu0 0
      %993 = vmatpush1.bf16.msra.mxu0 0
      %994 = vmatprep.subr.bf16.mxu0 0
      %995 = vmatpush1.bf16.msra.mxu0 0
      %996 = vmatprep.subr.bf16.mxu0 0
      %997 = vmatpush1.bf16.msra.mxu0 0
      %998 = vmatprep.subr.bf16.mxu0 0
      %999 = vmatpush1.bf16.msra.mxu0 0
      %1000 = vmatprep.subr.bf16.mxu0 0
      %1001 = vmatpush1.bf16.msra.mxu0 0
      %1002 = vmatprep.subr.bf16.mxu0 0
      %1003 = vmatpush1.bf16.msra.mxu0 0
      %1004 = vmatprep.subr.bf16.mxu0 0
      %1005 = vmatpush1.bf16.msra.mxu0 0
      %1006 = vmatprep.subr.bf16.mxu0 0
      %1007 = vmatpush1.bf16.msra.mxu0 0
      %1008 = vmatprep.subr.bf16.mxu0 0
      %1009 = vmatpush1.bf16.msra.mxu0 0
      %1010 = vmatprep.subr.bf16.mxu0 0
      %1011 = vmatpush1.bf16.msra.mxu0 0
      %1012 = vmatprep.subr.bf16.mxu0 0
      %1013 = vmatpush1.bf16.msra.mxu0 0
      %1014 = vmatprep.subr.bf16.mxu0 0
      %1015 = vmatpush1.bf16.msra.mxu0 0
      %1016 = vmatprep.subr.bf16.mxu0 0
      %1017 = vmatpush1.bf16.msra.mxu0 0
      %1018 = vmatprep.subr.bf16.mxu0 0
      %1019 = vmatpush1.bf16.msra.mxu0 0
      %1020 = vmatprep.subr.bf16.mxu0 0
      %1021 = vmatpush1.bf16.msra.mxu0 0
      %1022 = vmatprep.mubr.bf16.mxu0 0
      %1023 = vmatmul.mubr.bf16.gmra.mrb[0].mxu0 %v939
      %v1024 = vpop.f32.mrb[0].mxu0
      %v1025 = vadd.f32 0.0, %v1024
      %v1026 = vpop.f32.mrb[0].mxu0
      %v1027 = vpop.f32.mrb[0].mxu0
      %v1028 = vpop.f32.mrb[0].mxu0
      %1029 = vdwg.mxu0
      %v1030 = vadd.f32 %v920, %v984
      %v1031 = vadd.f32 %v921, %v986
      %v1032 = vadd.f32 %v922, %v1025
      %1033 = vrot.lane.b32.xlu0 %v384, 111
      %v1034 = vpop.permute.xlu0 %1033
      %1035 = vrot.lane.b32.xlu0 %v385, 111
      %v1036 = vpop.permute.xlu0 %1035
      %1037 = vrot.lane.b32.xlu0 %v386, 111
      %v1038 = vpop.permute.xlu0 %1037
      %vm1039 = vcmask 908288
      %v1040 = vsel %vm1039, %v1034, %v1036
      %v1041 = vsel %vm1039, %v1036, %v1038
      %vm1042 = vcmask 908288
      %v1045 = vsel %vm1042, %v1038, %v1034
      %s1046 = scalar_lea.vmem %s1, 12
      %v1047 = vld [vmem:[%s1046] sm:$0x3]
      %v1049 = vsel %vm419, %v1047, 0
      %v1052 = vsel %vm423, %v1040, 0
      %v1055 = vsel %vm423, %v1041, 0
      %v1057 = vsel %vm423, %v1045, 0
      %1059 = vmatprep.subr.bf16.mxu0 %v1055
      %1060 = vmatpush1.bf16.msra.mxu0 %v1052
      %1061 = vmatprep.subr.bf16.mxu0 0
      %1062 = vmatpush1.bf16.msra.mxu0 0
      %1063 = vmatprep.subr.bf16.mxu0 0
      %1064 = vmatpush1.bf16.msra.mxu0 0
      %1065 = vmatprep.subr.bf16.mxu0 0
      %1066 = vmatpush1.bf16.msra.mxu0 0
      %1067 = vmatprep.subr.bf16.mxu0 0
      %1068 = vmatpush1.bf16.msra.mxu0 0
      %1069 = vmatprep.subr.bf16.mxu0 0
      %1070 = vmatpush1.bf16.msra.mxu0 0
      %1071 = vmatprep.subr.bf16.mxu0 0
      %1072 = vmatpush1.bf16.msra.mxu0 0
      %1073 = vmatprep.subr.bf16.mxu0 0
      %1074 = vmatpush1.bf16.msra.mxu0 0
      %1075 = vmatprep.subr.bf16.mxu0 0
      %1076 = vmatpush1.bf16.msra.mxu0 0
      %1077 = vmatprep.subr.bf16.mxu0 0
      %1078 = vmatpush1.bf16.msra.mxu0 0
      %1079 = vmatprep.subr.bf16.mxu0 0
      %1080 = vmatpush1.bf16.msra.mxu0 0
      %1081 = vmatprep.subr.bf16.mxu0 0
      %1082 = vmatpush1.bf16.msra.mxu0 0
      %1083 = vmatprep.subr.bf16.mxu0 0
      %1084 = vmatpush1.bf16.msra.mxu0 0
      %1085 = vmatprep.subr.bf16.mxu0 0
      %1086 = vmatpush1.bf16.msra.mxu0 0
      %1087 = vmatprep.subr.bf16.mxu0 0
      %1088 = vmatpush1.bf16.msra.mxu0 0
      %1089 = vmatprep.subr.bf16.mxu0 0
      %1090 = vmatpush1.bf16.msra.mxu0 0
      %1091 = vmatprep.mubr.bf16.mxu0 0
      %1092 = vmatmul.mubr.bf16.gmra.mrb[0].mxu0 %v1049
      %v1093 = vpop.f32.mrb[0].mxu0
      %v1094 = vadd.f32 0.0, %v1093
      %v1095 = vpop.f32.mrb[0].mxu0
      %v1096 = vadd.f32 0.0, %v1095
      %v1097 = vpop.f32.mrb[0].mxu0
      %v1098 = vpop.f32.mrb[0].mxu0
      %1099 = vdwg.mxu0
      %1100 = vmatprep.subr.bf16.mxu0 0
      %1101 = vmatpush1.bf16.msra.mxu0 %v1057
      %1102 = vmatprep.subr.bf16.mxu0 0
      %1103 = vmatpush1.bf16.msra.mxu0 0
      %1104 = vmatprep.subr.bf16.mxu0 0
      %1105 = vmatpush1.bf16.msra.mxu0 0
      %1106 = vmatprep.subr.bf16.mxu0 0
      %1107 = vmatpush1.bf16.msra.mxu0 0
      %1108 = vmatprep.subr.bf16.mxu0 0
      %1109 = vmatpush1.bf16.msra.mxu0 0
      %1110 = vmatprep.subr.bf16.mxu0 0
      %1111 = vmatpush1.bf16.msra.mxu0 0
      %1112 = vmatprep.subr.bf16.mxu0 0
      %1113 = vmatpush1.bf16.msra.mxu0 0
      %1114 = vmatprep.subr.bf16.mxu0 0
      %1115 = vmatpush1.bf16.msra.mxu0 0
      %1116 = vmatprep.subr.bf16.mxu0 0
      %1117 = vmatpush1.bf16.msra.mxu0 0
      %1118 = vmatprep.subr.bf16.mxu0 0
      %1119 = vmatpush1.bf16.msra.mxu0 0
      %1120 = vmatprep.subr.bf16.mxu0 0
      %1121 = vmatpush1.bf16.msra.mxu0 0
      %1122 = vmatprep.subr.bf16.mxu0 0
      %1123 = vmatpush1.bf16.msra.mxu0 0
      %1124 = vmatprep.subr.bf16.mxu0 0
      %1125 = vmatpush1.bf16.msra.mxu0 0
      %1126 = vmatprep.subr.bf16.mxu0 0
      %1127 = vmatpush1.bf16.msra.mxu0 0
      %1128 = vmatprep.subr.bf16.mxu0 0
      %1129 = vmatpush1.bf16.msra.mxu0 0
      %1130 = vmatprep.subr.bf16.mxu0 0
      %1131 = vmatpush1.bf16.msra.mxu0 0
      %1132 = vmatprep.mubr.bf16.mxu0 0
      %1133 = vmatmul.mubr.bf16.gmra.mrb[0].mxu0 %v1049
      %v1134 = vpop.f32.mrb[0].mxu0
      %v1135 = vadd.f32 0.0, %v1134
      %v1136 = vpop.f32.mrb[0].mxu0
      %v1137 = vpop.f32.mrb[0].mxu0
      %v1138 = vpop.f32.mrb[0].mxu0
      %1139 = vdwg.mxu0
      %v1140 = vadd.f32 %v1030, %v1094
      %v1141 = vadd.f32 %v1031, %v1096
      %v1142 = vadd.f32 %v1032, %v1135
      %1143 = vrot.lane.b32.xlu0 %v384, 110
      %v1144 = vpop.permute.xlu0 %1143
      %1145 = vrot.lane.b32.xlu0 %v385, 110
      %v1146 = vpop.permute.xlu0 %1145
      %1147 = vrot.lane.b32.xlu0 %v386, 110
      %v1148 = vpop.permute.xlu0 %1147
      %vm1149 = vcmask 900096
      %v1150 = vsel %vm1149, %v1144, %v1146
      %v1151 = vsel %vm1149, %v1146, %v1148
      %vm1152 = vcmask 900096
      %v1155 = vsel %vm1152, %v1148, %v1144
      %s1156 = scalar_lea.vmem %s1, 14
      %v1157 = vld [vmem:[%s1156] sm:$0x3]
      %v1159 = vsel %vm419, %v1157, 0
      %v1162 = vsel %vm423, %v1150, 0
      %v1165 = vsel %vm423, %v1151, 0
      %v1167 = vsel %vm423, %v1155, 0
      %1169 = vmatprep.subr.bf16.mxu0 %v1165
      %1170 = vmatpush1.bf16.msra.mxu0 %v1162
      %1171 = vmatprep.subr.bf16.mxu0 0
      %1172 = vmatpush1.bf16.msra.mxu0 0
      %1173 = vmatprep.subr.bf16.mxu0 0
      %1174 = vmatpush1.bf16.msra.mxu0 0
      %1175 = vmatprep.subr.bf16.mxu0 0
      %1176 = vmatpush1.bf16.msra.mxu0 0
      %1177 = vmatprep.subr.bf16.mxu0 0
      %1178 = vmatpush1.bf16.msra.mxu0 0
      %1179 = vmatprep.subr.bf16.mxu0 0
      %1180 = vmatpush1.bf16.msra.mxu0 0
      %1181 = vmatprep.subr.bf16.mxu0 0
      %1182 = vmatpush1.bf16.msra.mxu0 0
      %1183 = vmatprep.subr.bf16.mxu0 0
      %1184 = vmatpush1.bf16.msra.mxu0 0
      %1185 = vmatprep.subr.bf16.mxu0 0
      %1186 = vmatpush1.bf16.msra.mxu0 0
      %1187 = vmatprep.subr.bf16.mxu0 0
      %1188 = vmatpush1.bf16.msra.mxu0 0
      %1189 = vmatprep.subr.bf16.mxu0 0
      %1190 = vmatpush1.bf16.msra.mxu0 0
      %1191 = vmatprep.subr.bf16.mxu0 0
      %1192 = vmatpush1.bf16.msra.mxu0 0
      %1193 = vmatprep.subr.bf16.mxu0 0
      %1194 = vmatpush1.bf16.msra.mxu0 0
      %1195 = vmatprep.subr.bf16.mxu0 0
      %1196 = vmatpush1.bf16.msra.mxu0 0
      %1197 = vmatprep.subr.bf16.mxu0 0
      %1198 = vmatpush1.bf16.msra.mxu0 0
      %1199 = vmatprep.subr.bf16.mxu0 0
      %1200 = vmatpush1.bf16.msra.mxu0 0
      %1201 = vmatprep.mubr.bf16.mxu0 0
      %1202 = vmatmul.mubr.bf16.gmra.mrb[0].mxu0 %v1159
      %v1203 = vpop.f32.mrb[0].mxu0
      %v1204 = vadd.f32 0.0, %v1203
      %v1205 = vpop.f32.mrb[0].mxu0
      %v1206 = vadd.f32 0.0, %v1205
      %v1207 = vpop.f32.mrb[0].mxu0
      %v1208 = vpop.f32.mrb[0].mxu0
      %1209 = vdwg.mxu0
      %1210 = vmatprep.subr.bf16.mxu0 0
      %1211 = vmatpush1.bf16.msra.mxu0 %v1167
      %1212 = vmatprep.subr.bf16.mxu0 0
      %1213 = vmatpush1.bf16.msra.mxu0 0
      %1214 = vmatprep.subr.bf16.mxu0 0
      %1215 = vmatpush1.bf16.msra.mxu0 0
      %1216 = vmatprep.subr.bf16.mxu0 0
      %1217 = vmatpush1.bf16.msra.mxu0 0
      %1218 = vmatprep.subr.bf16.mxu0 0
      %1219 = vmatpush1.bf16.msra.mxu0 0
      %1220 = vmatprep.subr.bf16.mxu0 0
      %1221 = vmatpush1.bf16.msra.mxu0 0
      %1222 = vmatprep.subr.bf16.mxu0 0
      %1223 = vmatpush1.bf16.msra.mxu0 0
      %1224 = vmatprep.subr.bf16.mxu0 0
      %1225 = vmatpush1.bf16.msra.mxu0 0
      %1226 = vmatprep.subr.bf16.mxu0 0
      %1227 = vmatpush1.bf16.msra.mxu0 0
      %1228 = vmatprep.subr.bf16.mxu0 0
      %1229 = vmatpush1.bf16.msra.mxu0 0
      %1230 = vmatprep.subr.bf16.mxu0 0
      %1231 = vmatpush1.bf16.msra.mxu0 0
      %1232 = vmatprep.subr.bf16.mxu0 0
      %1233 = vmatpush1.bf16.msra.mxu0 0
      %1234 = vmatprep.subr.bf16.mxu0 0
      %1235 = vmatpush1.bf16.msra.mxu0 0
      %1236 = vmatprep.subr.bf16.mxu0 0
      %1237 = vmatpush1.bf16.msra.mxu0 0
      %1238 = vmatprep.subr.bf16.mxu0 0
      %1239 = vmatpush1.bf16.msra.mxu0 0
      %1240 = vmatprep.subr.bf16.mxu0 0
      %1241 = vmatpush1.bf16.msra.mxu0 0
      %1242 = vmatprep.mubr.bf16.mxu0 0
      %1243 = vmatmul.mubr.bf16.gmra.mrb[0].mxu0 %v1159
      %v1244 = vpop.f32.mrb[0].mxu0
      %v1245 = vadd.f32 0.0, %v1244
      %v1246 = vpop.f32.mrb[0].mxu0
      %v1247 = vpop.f32.mrb[0].mxu0
      %v1248 = vpop.f32.mrb[0].mxu0
      %1249 = vdwg.mxu0
      %v1250 = vadd.f32 %v1140, %v1204
      %v1251 = vadd.f32 %v1141, %v1206
      %v1252 = vadd.f32 %v1142, %v1245
      %1253 = vrot.lane.b32.xlu0 %v384, 109
      %v1254 = vpop.permute.xlu0 %1253
      %1255 = vrot.lane.b32.xlu0 %v385, 109
      %v1256 = vpop.permute.xlu0 %1255
      %1257 = vrot.lane.b32.xlu0 %v386, 109
      %v1258 = vpop.permute.xlu0 %1257
      %vm1259 = vcmask 891904
      %v1260 = vsel %vm1259, %v1254, %v1256
      %v1261 = vsel %vm1259, %v1256, %v1258
      %vm1262 = vcmask 891904
      %v1265 = vsel %vm1262, %v1258, %v1254
      %s1266 = scalar_lea.vmem %s1, 16
      %v1267 = vld [vmem:[%s1266] sm:$0x3]
      %v1269 = vsel %vm419, %v1267, 0
      %v1272 = vsel %vm423, %v1260, 0
      %v1275 = vsel %vm423, %v1261, 0
      %v1277 = vsel %vm423, %v1265, 0
      %1279 = vmatprep.subr.bf16.mxu0 %v1275
      %1280 = vmatpush1.bf16.msra.mxu0 %v1272
      %1281 = vmatprep.subr.bf16.mxu0 0
      %1282 = vmatpush1.bf16.msra.mxu0 0
      %1283 = vmatprep.subr.bf16.mxu0 0
      %1284 = vmatpush1.bf16.msra.mxu0 0
      %1285 = vmatprep.subr.bf16.mxu0 0
      %1286 = vmatpush1.bf16.msra.mxu0 0
      %1287 = vmatprep.subr.bf16.mxu0 0
      %1288 = vmatpush1.bf16.msra.mxu0 0
      %1289 = vmatprep.subr.bf16.mxu0 0
      %1290 = vmatpush1.bf16.msra.mxu0 0
      %1291 = vmatprep.subr.bf16.mxu0 0
      %1292 = vmatpush1.bf16.msra.mxu0 0
      %1293 = vmatprep.subr.bf16.mxu0 0
      %1294 = vmatpush1.bf16.msra.mxu0 0
      %1295 = vmatprep.subr.bf16.mxu0 0
      %1296 = vmatpush1.bf16.msra.mxu0 0
      %1297 = vmatprep.subr.bf16.mxu0 0
      %1298 = vmatpush1.bf16.msra.mxu0 0
      %1299 = vmatprep.subr.bf16.mxu0 0
      %1300 = vmatpush1.bf16.msra.mxu0 0
      %1301 = vmatprep.subr.bf16.mxu0 0
      %1302 = vmatpush1.bf16.msra.mxu0 0
      %1303 = vmatprep.subr.bf16.mxu0 0
      %1304 = vmatpush1.bf16.msra.mxu0 0
      %1305 = vmatprep.subr.bf16.mxu0 0
      %1306 = vmatpush1.bf16.msra.mxu0 0
      %1307 = vmatprep.subr.bf16.mxu0 0
      %1308 = vmatpush1.bf16.msra.mxu0 0
      %1309 = vmatprep.subr.bf16.mxu0 0
      %1310 = vmatpush1.bf16.msra.mxu0 0
      %1311 = vmatprep.mubr.bf16.mxu0 0
      %1312 = vmatmul.mubr.bf16.gmra.mrb[0].mxu0 %v1269
      %v1313 = vpop.f32.mrb[0].mxu0
      %v1314 = vadd.f32 0.0, %v1313
      %v1315 = vpop.f32.mrb[0].mxu0
      %v1316 = vadd.f32 0.0, %v1315
      %v1317 = vpop.f32.mrb[0].mxu0
      %v1318 = vpop.f32.mrb[0].mxu0
      %1319 = vdwg.mxu0
      %1320 = vmatprep.subr.bf16.mxu0 0
      %1321 = vmatpush1.bf16.msra.mxu0 %v1277
      %1322 = vmatprep.subr.bf16.mxu0 0
      %1323 = vmatpush1.bf16.msra.mxu0 0
      %1324 = vmatprep.subr.bf16.mxu0 0
      %1325 = vmatpush1.bf16.msra.mxu0 0
      %1326 = vmatprep.subr.bf16.mxu0 0
      %1327 = vmatpush1.bf16.msra.mxu0 0
      %1328 = vmatprep.subr.bf16.mxu0 0
      %1329 = vmatpush1.bf16.msra.mxu0 0
      %1330 = vmatprep.subr.bf16.mxu0 0
      %1331 = vmatpush1.bf16.msra.mxu0 0
      %1332 = vmatprep.subr.bf16.mxu0 0
      %1333 = vmatpush1.bf16.msra.mxu0 0
      %1334 = vmatprep.subr.bf16.mxu0 0
      %1335 = vmatpush1.bf16.msra.mxu0 0
      %1336 = vmatprep.subr.bf16.mxu0 0
      %1337 = vmatpush1.bf16.msra.mxu0 0
      %1338 = vmatprep.subr.bf16.mxu0 0
      %1339 = vmatpush1.bf16.msra.mxu0 0
      %1340 = vmatprep.subr.bf16.mxu0 0
      %1341 = vmatpush1.bf16.msra.mxu0 0
      %1342 = vmatprep.subr.bf16.mxu0 0
      %1343 = vmatpush1.bf16.msra.mxu0 0
      %1344 = vmatprep.subr.bf16.mxu0 0
      %1345 = vmatpush1.bf16.msra.mxu0 0
      %1346 = vmatprep.subr.bf16.mxu0 0
      %1347 = vmatpush1.bf16.msra.mxu0 0
      %1348 = vmatprep.subr.bf16.mxu0 0
      %1349 = vmatpush1.bf16.msra.mxu0 0
      %1350 = vmatprep.subr.bf16.mxu0 0
      %1351 = vmatpush1.bf16.msra.mxu0 0
      %1352 = vmatprep.mubr.bf16.mxu0 0
      %1353 = vmatmul.mubr.bf16.gmra.mrb[0].mxu0 %v1269
      %v1354 = vpop.f32.mrb[0].mxu0
      %v1355 = vadd.f32 0.0, %v1354
      %v1356 = vpop.f32.mrb[0].mxu0
      %v1357 = vpop.f32.mrb[0].mxu0
      %v1358 = vpop.f32.mrb[0].mxu0
      %1359 = vdwg.mxu0
      %v1360 = vadd.f32 %v1250, %v1314
      %v1361 = vadd.f32 %v1251, %v1316
      %v1362 = vadd.f32 %v1252, %v1355
      %v1363 = vld [vmem:[%s2] sm:$0x7]
      %v1365 = vlaneseq
      %v1366 = vshrl.u32 %v1365, 7
      %v1367 = vsub.s32 0, %v1366
      %v1368 = vrot.slane %v1363, %v1367
      %v1369 = vlaneseq
      %v1370 = vshrl.u32 %v1369, 7
      %v1371 = vsub.s32 1, %v1370
      %v1372 = vrot.slane %v1363, %v1371
      %v1373 = vlaneseq
      %v1374 = vshrl.u32 %v1373, 7
      %v1375 = vsub.s32 2, %v1374
      %v1376 = vrot.slane %v1363, %v1375
      %v1380 = vmul.f32 %v1360, %v1368
      %v1381 = vmul.f32 %v1361, %v1372
      %v1382 = vmul.f32 %v1362, %v1376
      %v1385 = vcombine.low %v1380, %v1381
      %1387 = vst [vmem:[%s318] sm:$0xff] %v1385
      %1388 = vst [vmem:[%s318 + $0x8] sm:$0xf] %v1382
      %vm1389 = vcmask 1043456
      %v1390 = vsel %vm1389, %v1380, 0.0
      %v1391 = vsel %vm1389, %v1381, 0.0
      %v1392 = vadd.f32 %v1390, %v1391
      %v1393 = vsel %vm1389, %v1382, 0.0
      %v1394 = vadd.f32 %v1392, %v1393
      %1395 = vadd.xlane.f32.xlu0 %v1394
      %v1396 = vpop.xlane.xlu0 %1395
      %vm1397 = vcmask 3072
      %1398 = vst.msk [vmem:[%s322] sm:$0xf] %vm1397, %v1396
      %v1399 = vmul.f32 %v1380, %v1380
      %v1400 = vmul.f32 %v1381, %v1381
      %v1401 = vmul.f32 %v1382, %v1382
      %v1402 = vsel %vm1389, %v1399, 0.0
      %v1403 = vsel %vm1389, %v1400, 0.0
      %v1404 = vadd.f32 %v1402, %v1403
      %v1405 = vsel %vm1389, %v1401, 0.0
      %v1406 = vadd.f32 %v1404, %v1405
      %1407 = vadd.xlane.f32.xlu0 %v1406
      %v1408 = vpop.xlane.xlu0 %1407
      %1409 = vst.msk [vmem:[%s326] sm:$0xf] %vm1397, %v1408
      %p1410 = scmp.lt.s32.totalorder %s20, 1
      %s1411 = scalar_select %p1410, %s20, 1
      %s1412 = smul.addr %s1411, 3
      %s1413 = smul.addr %s1412, 4
      %s1414 = scalar_lea.vmem %s6, %s1413
      %p1415 = scmp.lt.s32.totalorder %s20, 1
      %s1416 = scalar_select %p1415, %s20, 1
      %s1417 = smul.addr %s1416, 4
      %s1418 = scalar_lea.vmem %s7, %s1417
      %p1419 = scmp.lt.s32.totalorder %s20, 1
      %s1420 = scalar_select %p1419, %s20, 1
      %s1421 = smul.addr %s1420, 4
      %s1422 = scalar_lea.vmem %s8, %s1421
      // Predicated region
      $region45: #{basic_block_forward.4} parent=43 // pred_check
        %p1423 = pneg %p169
      $region46: #{basic_block_forward.4} parent=43 // pred_check_branch
        %1425 = sbr.rel (%p1423) target = $region48
      $region47: #{basic_block_forward.4} parent=43 // pred_region
        _
      $region48: #{basic_block_forward.4} parent=43 // pred_fallthru
        _
      // Predicated region
      $region49: #{basic_block_forward.4} parent=43 // pred_check
        %p1426 = pneg %p195
      $region50: #{basic_block_forward.4} parent=43 // pred_check_branch
        %1428 = sbr.rel (%p1426) target = $region52
      $region51: #{basic_block_forward.4} parent=43 // pred_region
        _
      $region52: #{basic_block_forward.4} parent=43 // pred_fallthru
        _
      // Predicated region
      $region53: #{basic_block_forward.4} parent=43 // pred_check
        %p1429 = pneg %p221
      $region54: #{basic_block_forward.4} parent=43 // pred_check_branch
        %1431 = sbr.rel (%p1429) target = $region56
      $region55: #{basic_block_forward.4} parent=43 // pred_region
        _
      $region56: #{basic_block_forward.4} parent=43 // pred_fallthru
        _
    $region44: #{basic_block_forward.4} parent=5 // pred_fallthru
      _
    %p1432 = scmp.le.s32.totalorder 2, %s15
    // Predicated region
    $region57: #{basic_block_forward.4} parent=5 // pred_check
      %p1433 = pneg %p1432
    $region58: #{basic_block_forward.4} parent=5 // pred_check_branch
      %1435 = sbr.rel (%p1433) target = $region60
    $region59: #{basic_block_forward.4} parent=5 // pred_region
      %s1436 = ssub.s32 %s15, 2
      // Predicated region
      $region61: #{basic_block_forward.4} parent=59 // pred_check
        %p1437 = pneg %p175
      $region62: #{basic_block_forward.4} parent=59 // pred_check_branch
        %1439 = sbr.rel (%p1437) target = $region64
      $region63: #{basic_block_forward.4} parent=59 // pred_region
        %p1440 = scmp.lt.s32.totalorder %s21, 1
        %s1441 = scalar_select %p1440, %s21, 1
        %s1442 = smul.addr %s1441, 3
        %s1443 = smul.addr %s1442, 4
        %s1444 = scalar_lea.vmem %s6, %s1443
      $region64: #{basic_block_forward.4} parent=59 // pred_fallthru
        _
      // Predicated region
      $region65: #{basic_block_forward.4} parent=59 // pred_check
        %p1445 = pneg %p201
      $region66: #{basic_block_forward.4} parent=59 // pred_check_branch
        %1447 = sbr.rel (%p1445) target = $region68
      $region67: #{basic_block_forward.4} parent=59 // pred_region
        %p1448 = scmp.lt.s32.totalorder %s21, 1
        %s1449 = scalar_select %p1448, %s21, 1
        %s1450 = smul.addr %s1449, 4
        %s1451 = scalar_lea.vmem %s7, %s1450
      $region68: #{basic_block_forward.4} parent=59 // pred_fallthru
        _
      // Predicated region
      $region69: #{basic_block_forward.4} parent=59 // pred_check
        %p1452 = pneg %p227
      $region70: #{basic_block_forward.4} parent=59 // pred_check_branch
        %1454 = sbr.rel (%p1452) target = $region72
      $region71: #{basic_block_forward.4} parent=59 // pred_region
        %p1455 = scmp.lt.s32.totalorder %s21, 1
        %s1456 = scalar_select %p1455, %s21, 1
        %s1457 = smul.addr %s1456, 4
        %s1458 = scalar_lea.vmem %s8, %s1457
      $region72: #{basic_block_forward.4} parent=59 // pred_fallthru
        _
    $region60: #{basic_block_forward.4} parent=5 // pred_fallthru
      _
  $region6: #{basic_block_forward.4} parent=0 // loop_footer
    %s19 = sadd.s32 1, %s15
  $region7: #{basic_block_forward.4} parent=0 // loop_footer_branch
    %14 = sbr.rel target = $region3
  $region8: #{basic_block_forward.4} parent=0 // loop_exit
    _

</llo_original>
